<compile_context>
chip_gen: v7x
topology: tpu7x:2x2x1
jax: 0.10.0
libtpu: 0.0.40
codegen_flags: <defaults>
</compile_context>

<pallas_src>
import functools

import jax
import jax.numpy as jnp
from jax.experimental import pallas as pl
from jax.experimental.pallas import tpu as pltpu


def _round_up(a: int, b: int) -> int:
    return (a + b - 1) // b * b


# --------------------------------------------------------------------------- #
# 1x1 convolution (to_qk_0) as a channels-major matmul, no HBM transposes.
# x stays (B, Cin, H*W); grid = (batch, token tiles); weight resident in VMEM.
# --------------------------------------------------------------------------- #
def _conv1x1_kernel(w_ref, x_ref, o_ref):
    w = w_ref[...].astype(jnp.float32)          # (Cout, Cin)
    x = x_ref[0].astype(jnp.float32)            # (Cin, tn)
    o_ref[0] = jnp.dot(w, x, preferred_element_type=jnp.float32).astype(o_ref.dtype)


def conv1x1_tokens(x_tok, w, *, tile_n):
    """x_tok: (B, Cin, Np) with Np % tile_n == 0; w: (Cout, Cin) -> (B, Cout, Np)."""
    B, Cin, Np = x_tok.shape
    Cout = w.shape[0]
    return pl.pallas_call(
        _conv1x1_kernel,
        out_shape=jax.ShapeDtypeStruct((B, Cout, Np), x_tok.dtype),
        grid_spec=pltpu.PrefetchScalarGridSpec(
            num_scalar_prefetch=0,
            grid=(B, Np // tile_n),
            in_specs=[
                pl.BlockSpec((Cout, Cin), lambda b, t: (0, 0)),          # resident weight
                pl.BlockSpec((1, Cin, tile_n), lambda b, t: (b, 0, t)),  # token tile
            ],
            out_specs=pl.BlockSpec((1, Cout, tile_n), lambda b, t: (b, 0, t)),
        ),
        compiler_params=pltpu.CompilerParams(
            dimension_semantics=("parallel", "parallel")),
    )(w, x_tok)


# --------------------------------------------------------------------------- #
# Fused multi-scale channel attention.
#   - per batch element: compute all four (c4, c4) attention matrices once (t == 0)
#     into a VMEM scratch from the resident qk blocks (q/k split via channel slices);
#   - per token tile: v = W_v @ x_tile (+ bias) in VMEM, then each level's attn @ v_l
#     is written directly into its channel slice of the (B, dim, N) output block.
# --------------------------------------------------------------------------- #
def _msa_kernel(temp_ref, wv_ref, bv_ref, qk0_ref, qk123_ref, x_ref, o_ref,
                attn_sc, *, c4):
    t = pl.program_id(1)

    @pl.when(t == 0)
    def _():
        for l in range(4):
            if l == 0:
                qk = qk0_ref[0].astype(jnp.float32)           # (c2, Np)
            else:
                qk = qk123_ref[l - 1, 0].astype(jnp.float32)  # (c2, Mp)
            k = qk[:c4]                                       # k = qk[:, :c4]
            q = qk[c4:]                                       # q = qk[:, c4:]
            # F.normalize(., dim=-1): x / max(||x||, 1e-12)  (zero-padded cols are inert)
            q = q * jax.lax.rsqrt(jnp.maximum(jnp.sum(q * q, axis=-1, keepdims=True), 1e-24))
            k = k * jax.lax.rsqrt(jnp.maximum(jnp.sum(k * k, axis=-1, keepdims=True), 1e-24))
            a = jax.lax.dot_general(q, k, (((1,), (1,)), ((), ())),
                                    preferred_element_type=jnp.float32)   # (c4, c4)
            a = a * temp_ref[l]
            a = a - jnp.max(a, axis=-1, keepdims=True)
            p = jnp.exp(a)
            attn_sc[l] = p / jnp.sum(p, axis=-1, keepdims=True)

    # v projection fused here: v = W_v @ x_tile + b_v, never materialized in HBM.
    x = x_ref[0].astype(jnp.float32)                                       # (dim, tn)
    v = jnp.dot(wv_ref[...].astype(jnp.float32), x,
                preferred_element_type=jnp.float32)
    v = v + bv_ref[...].astype(jnp.float32)                                # (dim, tn)

    for l in range(4):
        out_l = jnp.dot(attn_sc[l], v[l * c4:(l + 1) * c4],
                        preferred_element_type=jnp.float32)                # (c4, tn)
        o_ref[0, l * c4:(l + 1) * c4, :] = out_l.astype(o_ref.dtype)


def multiscale_channel_attention(x_tok, qk0_tok, qk_pyr, wv, bv, temps, *, c4, tile_n):
    """
    x_tok   : (B, dim, Np)         token-padded input activations
    qk0_tok : (B, c2, Np)          level-0 qk (padding columns are exactly zero)
    qk_pyr  : (3, B, c2, Mp)       levels 1..3 qk, zero padded to a common 128-multiple Mp
    wv, bv  : (dim, dim), (dim, 1) stacked per-level 1x1 v weights / biases
    temps   : (4,) f32             per-level temperatures (SMEM)
    returns : (B, dim, Np)         level l occupies channels [l*c4, (l+1)*c4)
    """
    B, dim, Np = x_tok.shape
    c2 = 2 * c4
    Mp = qk_pyr.shape[-1]
    kern = functools.partial(_msa_kernel, c4=c4)
    return pl.pallas_call(
        kern,
        out_shape=jax.ShapeDtypeStruct((B, dim, Np), x_tok.dtype),
        grid_spec=pltpu.PrefetchScalarGridSpec(
            num_scalar_prefetch=0,
            grid=(B, Np // tile_n),
            in_specs=[
                pl.BlockSpec(memory_space=pltpu.MemorySpace.SMEM),        # temps
                pl.BlockSpec((dim, dim), lambda b, t: (0, 0)),            # W_v resident
                pl.BlockSpec((dim, 1), lambda b, t: (0, 0)),              # b_v resident
                pl.BlockSpec((1, c2, Np), lambda b, t: (b, 0, 0)),        # qk level 0
                pl.BlockSpec((3, 1, c2, Mp), lambda b, t: (0, b, 0, 0)),  # qk levels 1..3
                pl.BlockSpec((1, dim, tile_n), lambda b, t: (b, 0, t)),   # x token tile
            ],
            out_specs=pl.BlockSpec((1, dim, tile_n), lambda b, t: (b, 0, t)),
            scratch_shapes=[pltpu.VMEM((4, c4, c4), jnp.float32)],
        ),
        compiler_params=pltpu.CompilerParams(
            dimension_semantics=("parallel", "arbitrary")),
    )(temps, wv, bv, qk0_tok, qk_pyr, x_tok)


# --------------------------------------------------------------------------- #
# GroupNorm(groups, C) + ReLU (two-pass mean/var, f32)
# TODO(synk): for very large H*W the (Cg, H*W) block should be token-tiled (v7x 64 MiB VMEM);
#             fine at restoration-test sizes and well within v5e/v6e limits.
# --------------------------------------------------------------------------- #
def _groupnorm_relu_kernel(x_ref, w_ref, b_ref, o_ref, *, eps):
    x = x_ref[0, 0].astype(jnp.float32)                        # (Cg, N)
    n_elem = x.shape[0] * x.shape[1]
    row_sum = jnp.sum(x, axis=1, keepdims=True)                # (Cg, 1)
    mean = jnp.sum(row_sum, axis=0, keepdims=True) / n_elem    # (1, 1)
    d = x - mean
    row_sq = jnp.sum(d * d, axis=1, keepdims=True)
    var = jnp.sum(row_sq, axis=0, keepdims=True) / n_elem
    inv = jax.lax.rsqrt(var + eps)
    w = w_ref[0].astype(jnp.float32)                           # (Cg, 1)
    b = b_ref[0].astype(jnp.float32)
    y = d * inv * w + b
    o_ref[0, 0] = jnp.maximum(y, 0.0).astype(o_ref.dtype)


def groupnorm_relu(x, weight, bias, *, groups=4, eps=1e-5):
    B, C, H, W = x.shape
    G = groups
    Cg = C // G
    N = H * W
    xg = x.reshape(B, G, Cg, N)                                # free reshape (channels-major)
    wg = weight.reshape(G, Cg, 1)
    bg = bias.reshape(G, Cg, 1)
    out = pl.pallas_call(
        functools.partial(_groupnorm_relu_kernel, eps=eps),
        out_shape=jax.ShapeDtypeStruct((B, G, Cg, N), x.dtype),
        grid_spec=pltpu.PrefetchScalarGridSpec(
            num_scalar_prefetch=0,
            grid=(B, G),
            in_specs=[
                pl.BlockSpec((1, 1, Cg, N), lambda b, g: (b, g, 0, 0)),
                pl.BlockSpec((1, Cg, 1), lambda b, g: (g, 0, 0)),
                pl.BlockSpec((1, Cg, 1), lambda b, g: (g, 0, 0)),
            ],
            out_specs=pl.BlockSpec((1, 1, Cg, N), lambda b, g: (b, g, 0, 0)),
        ),
        compiler_params=pltpu.CompilerParams(
            dimension_semantics=("parallel", "parallel")),
    )(xg, wg, bg)
    return out.reshape(B, C, H, W)


# --------------------------------------------------------------------------- #
# 3x3 convolutions (left to XLA)
# --------------------------------------------------------------------------- #
def conv2d_3x3(x, w, b=None, *, stride=1):
    # TODO(synk): 3x3 (optionally strided) conv left to XLA conv; no clean Pallas path used here.
    out = jax.lax.conv_general_dilated(
        x, w, window_strides=(stride, stride), padding=((1, 1), (1, 1)),
        dimension_numbers=("NCHW", "OIHW", "NCHW"))
    if b is not None:
        out = out + b.reshape(1, -1, 1, 1)
    return out


# --------------------------------------------------------------------------- #
# MultiScaleAttention forward
# --------------------------------------------------------------------------- #
def multiscale_attention_forward(params, x, *, max_tile_tokens=2048):
    B, dim, H, W = x.shape
    assert dim % 32 == 0, "dim must be a multiple of 32 (c4 multiple of 8 sublanes)"
    c2, c4 = dim // 2, dim // 4
    N = H * W

    # One token tiling shared by the 1x1 conv and the attention kernel.
    tile_n = min(max_tile_tokens, _round_up(N, 128))
    Np = _round_up(N, tile_n)

    x_tok = x.reshape(B, dim, N)                               # free reshape, no transpose
    if Np != N:
        x_tok = jnp.pad(x_tok, ((0, 0), (0, 0), (0, Np - N)))

    # to_qk_0 (1x1, no bias): padded token columns come out exactly zero.
    qk0_tok = conv1x1_tokens(x_tok, params["to_qk_0_w"], tile_n=tile_n)   # (B, c2, Np)

    # strided 3x3 qk pyramid (XLA conv), fed from the un-padded level-0 qk.
    qk0 = qk0_tok[:, :, :N].reshape(B, c2, H, W)
    qk1 = conv2d_3x3(qk0, params["to_qk_1_w"], None, stride=2)
    qk2 = conv2d_3x3(qk1, params["to_qk_2_w"], None, stride=2)
    qk3 = conv2d_3x3(qk2, params["to_qk_3_w"], None, stride=2)

    # Pack levels 1..3, zero-padding their spatial axis to a common 128-lane multiple
    # (zero columns do not change the L2 norm or q k^T).
    pyr = [qk1, qk2, qk3]
    ms = [p.shape[2] * p.shape[3] for p in pyr]
    Mp = _round_up(max(ms), 128)
    qk_pyr = jnp.stack(
        [jnp.pad(p.reshape(B, c2, -1), ((0, 0), (0, 0), (0, Mp - m)))
         for p, m in zip(pyr, ms)], axis=0)                               # (3, B, c2, Mp)

    # Stacked per-level v 1x1 weights/biases (consumed inside the attention kernel).
    wv = jnp.concatenate([params[f"v{i}_w"] for i in range(4)], axis=0)   # (dim, dim)
    bv = jnp.concatenate([params[f"v{i}_b"] for i in range(4)], axis=0).reshape(dim, 1)
    temps = jnp.stack([params[f"temp{i}"] for i in range(4)]).astype(jnp.float32)

    out = multiscale_channel_attention(
        x_tok, qk0_tok, qk_pyr, wv.astype(jnp.float32), bv.astype(jnp.float32),
        temps, c4=c4, tile_n=tile_n)                                      # (B, dim, Np)
    out = out[:, :, :N].reshape(B, dim, H, W)

    # project_out: conv3x3 -> GroupNorm(4, dim) -> ReLU -> conv3x3
    out = conv2d_3x3(out, params["proj0_w"], params["proj0_b"], stride=1)
    out = groupnorm_relu(out, params["gn_w"], params["gn_b"], groups=4)
    out = conv2d_3x3(out, params["proj1_w"], params["proj1_b"], stride=1)
    return out


# --------------------------------------------------------------------------- #
# Pure-JAX reference (for correctness check)
# --------------------------------------------------------------------------- #
def reference_forward(params, x):
    B, dim, H, W = x.shape
    c4 = dim // 4
    hp = jax.lax.Precision.HIGHEST

    def conv1x1_ref(xx, w, b):
        out = jnp.einsum("oc,bchw->bohw", w, xx, precision=hp)
        if b is not None:
            out = out + b.reshape(1, -1, 1, 1)
        return out

    qk0 = conv1x1_ref(x, params["to_qk_0_w"], None)
    qk1 = conv2d_3x3(qk0, params["to_qk_1_w"], None, stride=2)
    qk2 = conv2d_3x3(qk1, params["to_qk_2_w"], None, stride=2)
    qk3 = conv2d_3x3(qk2, params["to_qk_3_w"], None, stride=2)

    outs = []
    for i, qk in enumerate((qk0, qk1, qk2, qk3)):
        v = conv1x1_ref(x, params[f"v{i}_w"], params[f"v{i}_b"]).reshape(B, c4, H * W)
        k = qk[:, :c4].reshape(B, c4, -1)
        q = qk[:, c4:].reshape(B, c4, -1)
        qn = q / jnp.maximum(jnp.linalg.norm(q, axis=-1, keepdims=True), 1e-12)
        kn = k / jnp.maximum(jnp.linalg.norm(k, axis=-1, keepdims=True), 1e-12)
        attn = jnp.einsum("bcm,bdm->bcd", qn, kn, precision=hp) * params[f"temp{i}"]
        attn = jax.nn.softmax(attn, axis=-1)
        outs.append(jnp.einsum("bcd,bdn->bcn", attn, v, precision=hp))

    out = jnp.concatenate(outs, axis=1).reshape(B, dim, H, W)
    out = conv2d_3x3(out, params["proj0_w"], params["proj0_b"], stride=1)

    G = 4
    xg = out.reshape(B, G, -1)
    mean = xg.mean(axis=-1, keepdims=True)
    var = xg.var(axis=-1, keepdims=True)
    xg = (xg - mean) / jnp.sqrt(var + 1e-5)
    out = xg.reshape(B, dim, H, W) * params["gn_w"].reshape(1, dim, 1, 1) \
        + params["gn_b"].reshape(1, dim, 1, 1)
    out = jnp.maximum(out, 0.0)
    out = conv2d_3x3(out, params["proj1_w"], params["proj1_b"], stride=1)
    return out


# --------------------------------------------------------------------------- #
# Parameter construction
# --------------------------------------------------------------------------- #
def init_params(key, dim):
    c2, c4 = dim // 2, dim // 4
    keys = iter(jax.random.split(key, 24))

    def nrm(shape, fan_in):
        return jax.random.normal(next(keys), shape, jnp.float32) / (fan_in ** 0.5)

    p = {}
    p["to_qk_0_w"] = nrm((c2, dim), dim)                 # 1x1, no bias
    p["to_qk_1_w"] = nrm((c2, c2, 3, 3), c2 * 9)         # 3x3 s2, no bias
    p["to_qk_2_w"] = nrm((c2, c2, 3, 3), c2 * 9)
    p["to_qk_3_w"] = nrm((c2, c2, 3, 3), c2 * 9)
    for i in range(4):
        p[f"v{i}_w"] = nrm((c4, dim), dim)               # 1x1, bias=True (PyTorch default)
        p[f"v{i}_b"] = nrm((c4,), dim)
        p[f"temp{i}"] = jnp.asarray(1.0 + 0.25 * i, jnp.float32)
    p["proj0_w"] = nrm((dim, dim, 3, 3), dim * 9)
    p["proj0_b"] = nrm((dim,), dim)
    p["gn_w"] = 1.0 + 0.1 * jax.random.normal(next(keys), (dim,), jnp.float32)
    p["gn_b"] = 0.1 * jax.random.normal(next(keys), (dim,), jnp.float32)
    p["proj1_w"] = nrm((dim, dim, 3, 3), dim * 9)
    p["proj1_b"] = nrm((dim,), dim)
    return p


if __name__ == "__main__":
    key = jax.random.PRNGKey(0)
    k_x, k_p = jax.random.split(key)
    B, dim, H, W = 2, 64, 32, 32
    params = init_params(k_p, dim)
    x = jax.random.normal(k_x, (B, dim, H, W), dtype=jnp.float32)

    # max_tile_tokens=512 -> 2 token tiles per batch element, exercising the t>0
    # (attention-scratch reuse) path; larger inputs would use the default 2048 tiles.
    fwd = jax.jit(functools.partial(multiscale_attention_forward, max_tile_tokens=512))
    out = jax.block_until_ready(fwd(params, x))
    assert out.shape == (B, dim, H, W)

    ref = jax.block_until_ready(jax.jit(reference_forward)(params, x))
    max_err = float(jnp.max(jnp.abs(out - ref)))
    assert max_err < 2e-3, f"max abs err {max_err}"

    print("KERNEL_OK")
</pallas_src>

<mosaic_0001>
module attributes {stable_mosaic.version = 11 : i64} {
  func.func @_conv1x1_kernel(%arg0: i32, %arg1: i32, %arg2: memref<32x64xf32, #tpu.memory_space<vmem>>, %arg3: memref<1x64x512xf32, #tpu.memory_space<vmem>>, %arg4: memref<1x32x512xf32, #tpu.memory_space<vmem>>) attributes {dimension_semantics = [#tpu.dimension_semantics<parallel>, #tpu.dimension_semantics<parallel>], iteration_bounds = array<i64: 2, 2>, scalar_prefetch = 0 : i64, scratch_operands = 0 : i64, tpu.core_type = #tpu.core_type<tc>, window_params = [{pipeline_mode = #tpu.pipeline_mode<synchronous>, transform_indices = @transform_0, window_bounds = array<i64: 32, 64>}, {transform_indices = @transform_1, window_bounds = array<i64: 1, 64, 512>}, {transform_indices = @transform_2, window_bounds = array<i64: 1, 32, 512>}]} {
    %c0 = arith.constant 0 : index
    %c0_0 = arith.constant 0 : index
    %0 = vector.load %arg2[%c0, %c0_0] : memref<32x64xf32, #tpu.memory_space<vmem>>, vector<32x64xf32>
    %c0_1 = arith.constant 0 : index
    %c0_2 = arith.constant 0 : index
    %c0_3 = arith.constant 0 : index
    %1 = vector.load %arg3[%c0_1, %c0_2, %c0_3] : memref<1x64x512xf32, #tpu.memory_space<vmem>>, vector<1x64x512xf32>
    %2 = vector.shape_cast %1 : vector<1x64x512xf32> to vector<64x512xf32>
    %cst = arith.constant dense<0.000000e+00> : vector<32x512xf32>
    %3 = tpu.matmul %0, %2, %cst {dimension_numbers = #tpu.dot_dimension_numbers<[1], [0], [0], [1], [0, 0, 1, 1], [], []>} : vector<32x64xf32>, vector<64x512xf32>, vector<32x512xf32> -> vector<32x512xf32>
    %c0_4 = arith.constant 0 : index
    %c0_5 = arith.constant 0 : index
    %c0_6 = arith.constant 0 : index
    %4 = vector.load %arg4[%c0_4, %c0_5, %c0_6] : memref<1x32x512xf32, #tpu.memory_space<vmem>>, vector<1x32x512xf32>
    %5 = vector.shape_cast %4 : vector<1x32x512xf32> to vector<32x512xf32>
    %6 = vector.shape_cast %3 : vector<32x512xf32> to vector<1x32x512xf32>
    tpu.vector_store %arg4[%c0_4, %c0_5, %c0_6], %6 {strides = array<i32>} : memref<1x32x512xf32, #tpu.memory_space<vmem>>, vector<1x32x512xf32>,
    return
  }
  func.func @transform_0(%arg0: i32, %arg1: i32) -> (i32, i32) {
    %c0_i32 = arith.constant 0 : i32
    %c0_i32_0 = arith.constant 0 : i32
    %c0_i32_1 = arith.constant 0 : i32
    return %c0_i32, %c0_i32_0 : i32, i32
  }
  func.func @transform_1(%arg0: i32, %arg1: i32) -> (i32, i32, i32) {
    %c0_i32 = arith.constant 0 : i32
    %c0_i32_0 = arith.constant 0 : i32
    return %arg0, %c0_i32, %arg1 : i32, i32, i32
  }
  func.func @transform_2(%arg0: i32, %arg1: i32) -> (i32, i32, i32) {
    %c0_i32 = arith.constant 0 : i32
    %c0_i32_0 = arith.constant 0 : i32
    return %arg0, %c0_i32, %arg1 : i32, i32, i32
  }
}

module attributes {stable_mosaic.version = 11 : i64} {
  func.func @_msa_kernel(%arg0: i32, %arg1: i32, %arg2: memref<4xf32, #tpu.memory_space<smem>>, %arg3: memref<64x64xf32, #tpu.memory_space<vmem>>, %arg4: memref<64x1xf32, #tpu.memory_space<vmem>>, %arg5: memref<1x32x1024xf32, #tpu.memory_space<vmem>>, %arg6: memref<3x1x32x256xf32, #tpu.memory_space<vmem>>, %arg7: memref<1x64x512xf32, #tpu.memory_space<vmem>>, %arg8: memref<1x64x512xf32, #tpu.memory_space<vmem>>, %arg9: memref<4x16x16xf32, #tpu.memory_space<vmem>>) attributes {dimension_semantics = [#tpu.dimension_semantics<parallel>, #tpu.dimension_semantics<arbitrary>], iteration_bounds = array<i64: 2, 2>, scalar_prefetch = 0 : i64, scratch_operands = 1 : i64, tpu.core_type = #tpu.core_type<tc>, window_params = [{transform_indices = @transform_0, window_bounds = array<i64: 4>}, {pipeline_mode = #tpu.pipeline_mode<synchronous>, transform_indices = @transform_1, window_bounds = array<i64: 64, 64>}, {pipeline_mode = #tpu.pipeline_mode<synchronous>, transform_indices = @transform_2, window_bounds = array<i64: 64, 1>}, {transform_indices = @transform_3, window_bounds = array<i64: 1, 32, 1024>}, {transform_indices = @transform_4, window_bounds = array<i64: 3, 1, 32, 256>}, {transform_indices = @transform_5, window_bounds = array<i64: 1, 64, 512>}, {transform_indices = @transform_6, window_bounds = array<i64: 1, 64, 512>}]} {
    %c0_i32 = arith.constant 0 : i32
    %0 = arith.cmpi eq, %arg1, %c0_i32 : i32
    %1 = arith.extui %0 : i1 to i32
    %c0_i32_0 = arith.constant 0 : i32
    %2 = arith.cmpi ne, %1, %c0_i32_0 : i32
    scf.if %2 {
      %c0_29 = arith.constant 0 : index
      %c0_30 = arith.constant 0 : index
      %c0_31 = arith.constant 0 : index
      %38 = vector.load %arg5[%c0_29, %c0_30, %c0_31] : memref<1x32x1024xf32, #tpu.memory_space<vmem>>, vector<1x32x1024xf32>
      %39 = vector.shape_cast %38 : vector<1x32x1024xf32> to vector<32x1024xf32>
      %40 = vector.extract_strided_slice %39 {offsets = [0, 0], sizes = [16, 1024], strides = [1, 1]} : vector<32x1024xf32> to vector<16x1024xf32>
      %41 = vector.extract_strided_slice %39 {offsets = [16, 0], sizes = [16, 1024], strides = [1, 1]} : vector<32x1024xf32> to vector<16x1024xf32>
      %42 = arith.mulf %41, %41 : vector<16x1024xf32>
      %cst_32 = arith.constant dense<0.000000e+00> : vector<16xf32>
      %43 = vector.multi_reduction <add>, %42, %cst_32 [1] : vector<16x1024xf32> to vector<16xf32>
      %44 = vector.shape_cast %43 : vector<16xf32> to vector<16x1xf32>
      %cst_33 = arith.constant 1.000000e-24 : f32
      %45 = vector.broadcast %cst_33 : f32 to vector<16x1xf32>
      %46 = arith.maximumf %44, %45 : vector<16x1xf32>
      %47 = math.rsqrt %46 : vector<16x1xf32>
      %48 = vector.broadcast %47 : vector<16x1xf32> to vector<16x1024xf32>
      %49 = arith.mulf %41, %48 : vector<16x1024xf32>
      %50 = arith.mulf %40, %40 : vector<16x1024xf32>
      %cst_34 = arith.constant dense<0.000000e+00> : vector<16xf32>
      %51 = vector.multi_reduction <add>, %50, %cst_34 [1] : vector<16x1024xf32> to vector<16xf32>
      %52 = vector.shape_cast %51 : vector<16xf32> to vector<16x1xf32>
      %cst_35 = arith.constant 1.000000e-24 : f32
      %53 = vector.broadcast %cst_35 : f32 to vector<16x1xf32>
      %54 = arith.maximumf %52, %53 : vector<16x1xf32>
      %55 = math.rsqrt %54 : vector<16x1xf32>
      %56 = vector.broadcast %55 : vector<16x1xf32> to vector<16x1024xf32>
      %57 = arith.mulf %40, %56 : vector<16x1024xf32>
      %cst_36 = arith.constant dense<0.000000e+00> : vector<16x16xf32>
      %58 = tpu.matmul %49, %57, %cst_36 {dimension_numbers = #tpu.dot_dimension_numbers<[1], [1], [0], [0], [0, 0, 1, 0], [], []>} : vector<16x1024xf32>, vector<16x1024xf32>, vector<16x16xf32> -> vector<16x16xf32>
      %c0_37 = arith.constant 0 : index
      %59 = memref.load %arg2[%c0_37] : memref<4xf32, #tpu.memory_space<smem>>
      %60 = vector.broadcast %59 : f32 to vector<16x16xf32>
      %61 = arith.mulf %58, %60 : vector<16x16xf32>
      %cst_38 = arith.constant dense<0xFF800000> : vector<16xf32>
      %62 = vector.multi_reduction <maximumf>, %61, %cst_38 [1] : vector<16x16xf32> to vector<16xf32>
      %63 = vector.shape_cast %62 : vector<16xf32> to vector<16x1xf32>
      %64 = vector.broadcast %63 : vector<16x1xf32> to vector<16x16xf32>
      %65 = arith.subf %61, %64 : vector<16x16xf32>
      %66 = math.exp %65 : vector<16x16xf32>
      %cst_39 = arith.constant dense<0.000000e+00> : vector<16xf32>
      %67 = vector.multi_reduction <add>, %66, %cst_39 [1] : vector<16x16xf32> to vector<16xf32>
      %68 = vector.shape_cast %67 : vector<16xf32> to vector<16x1xf32>
      %69 = vector.broadcast %68 : vector<16x1xf32> to vector<16x16xf32>
      %70 = arith.divf %66, %69 : vector<16x16xf32>
      %c0_40 = arith.constant 0 : index
      %c0_41 = arith.constant 0 : index
      %c0_42 = arith.constant 0 : index
      %71 = vector.load %arg9[%c0_40, %c0_41, %c0_42] : memref<4x16x16xf32, #tpu.memory_space<vmem>>, vector<1x16x16xf32>
      %72 = vector.shape_cast %71 : vector<1x16x16xf32> to vector<16x16xf32>
      %73 = vector.shape_cast %70 : vector<16x16xf32> to vector<1x16x16xf32>
      tpu.vector_store %arg9[%c0_40, %c0_41, %c0_42], %73 {strides = array<i32>} : memref<4x16x16xf32, #tpu.memory_space<vmem>>, vector<1x16x16xf32>,
      %c0_43 = arith.constant 0 : index
      %c0_44 = arith.constant 0 : index
      %c0_45 = arith.constant 0 : index
      %c0_46 = arith.constant 0 : index
      %74 = vector.load %arg6[%c0_43, %c0_44, %c0_45, %c0_46] : memref<3x1x32x256xf32, #tpu.memory_space<vmem>>, vector<1x1x32x256xf32>
      %75 = vector.shape_cast %74 : vector<1x1x32x256xf32> to vector<32x256xf32>
      %76 = vector.extract_strided_slice %75 {offsets = [0, 0], sizes = [16, 256], strides = [1, 1]} : vector<32x256xf32> to vector<16x256xf32>
      %77 = vector.extract_strided_slice %75 {offsets = [16, 0], sizes = [16, 256], strides = [1, 1]} : vector<32x256xf32> to vector<16x256xf32>
      %78 = arith.mulf %77, %77 : vector<16x256xf32>
      %cst_47 = arith.constant dense<0.000000e+00> : vector<16xf32>
      %79 = vector.multi_reduction <add>, %78, %cst_47 [1] : vector<16x256xf32> to vector<16xf32>
      %80 = vector.shape_cast %79 : vector<16xf32> to vector<16x1xf32>
      %cst_48 = arith.constant 1.000000e-24 : f32
      %81 = vector.broadcast %cst_48 : f32 to vector<16x1xf32>
      %82 = arith.maximumf %80, %81 : vector<16x1xf32>
      %83 = math.rsqrt %82 : vector<16x1xf32>
      %84 = vector.broadcast %83 : vector<16x1xf32> to vector<16x256xf32>
      %85 = arith.mulf %77, %84 : vector<16x256xf32>
      %86 = arith.mulf %76, %76 : vector<16x256xf32>
      %cst_49 = arith.constant dense<0.000000e+00> : vector<16xf32>
      %87 = vector.multi_reduction <add>, %86, %cst_49 [1] : vector<16x256xf32> to vector<16xf32>
      %88 = vector.shape_cast %87 : vector<16xf32> to vector<16x1xf32>
      %cst_50 = arith.constant 1.000000e-24 : f32
      %89 = vector.broadcast %cst_50 : f32 to vector<16x1xf32>
      %90 = arith.maximumf %88, %89 : vector<16x1xf32>
      %91 = math.rsqrt %90 : vector<16x1xf32>
      %92 = vector.broadcast %91 : vector<16x1xf32> to vector<16x256xf32>
      %93 = arith.mulf %76, %92 : vector<16x256xf32>
      %cst_51 = arith.constant dense<0.000000e+00> : vector<16x16xf32>
      %94 = tpu.matmul %85, %93, %cst_51 {dimension_numbers = #tpu.dot_dimension_numbers<[1], [1], [0], [0], [0, 0, 1, 0], [], []>} : vector<16x256xf32>, vector<16x256xf32>, vector<16x16xf32> -> vector<16x16xf32>
      %c1_52 = arith.constant 1 : index
      %95 = memref.load %arg2[%c1_52] : memref<4xf32, #tpu.memory_space<smem>>
      %96 = vector.broadcast %95 : f32 to vector<16x16xf32>
      %97 = arith.mulf %94, %96 : vector<16x16xf32>
      %cst_53 = arith.constant dense<0xFF800000> : vector<16xf32>
      %98 = vector.multi_reduction <maximumf>, %97, %cst_53 [1] : vector<16x16xf32> to vector<16xf32>
      %99 = vector.shape_cast %98 : vector<16xf32> to vector<16x1xf32>
      %100 = vector.broadcast %99 : vector<16x1xf32> to vector<16x16xf32>
      %101 = arith.subf %97, %100 : vector<16x16xf32>
      %102 = math.exp %101 : vector<16x16xf32>
      %cst_54 = arith.constant dense<0.000000e+00> : vector<16xf32>
      %103 = vector.multi_reduction <add>, %102, %cst_54 [1] : vector<16x16xf32> to vector<16xf32>
      %104 = vector.shape_cast %103 : vector<16xf32> to vector<16x1xf32>
      %105 = vector.broadcast %104 : vector<16x1xf32> to vector<16x16xf32>
      %106 = arith.divf %102, %105 : vector<16x16xf32>
      %c1_55 = arith.constant 1 : index
      %c0_56 = arith.constant 0 : index
      %c0_57 = arith.constant 0 : index
      %107 = vector.load %arg9[%c1_55, %c0_56, %c0_57] : memref<4x16x16xf32, #tpu.memory_space<vmem>>, vector<1x16x16xf32>
      %108 = vector.shape_cast %107 : vector<1x16x16xf32> to vector<16x16xf32>
      %109 = vector.shape_cast %106 : vector<16x16xf32> to vector<1x16x16xf32>
      tpu.vector_store %arg9[%c1_55, %c0_56, %c0_57], %109 {strides = array<i32>} : memref<4x16x16xf32, #tpu.memory_space<vmem>>, vector<1x16x16xf32>,
      %c1_58 = arith.constant 1 : index
      %c0_59 = arith.constant 0 : index
      %c0_60 = arith.constant 0 : index
      %c0_61 = arith.constant 0 : index
      %110 = vector.load %arg6[%c1_58, %c0_59, %c0_60, %c0_61] : memref<3x1x32x256xf32, #tpu.memory_space<vmem>>, vector<1x1x32x256xf32>
      %111 = vector.shape_cast %110 : vector<1x1x32x256xf32> to vector<32x256xf32>
      %112 = vector.extract_strided_slice %111 {offsets = [0, 0], sizes = [16, 256], strides = [1, 1]} : vector<32x256xf32> to vector<16x256xf32>
      %113 = vector.extract_strided_slice %111 {offsets = [16, 0], sizes = [16, 256], strides = [1, 1]} : vector<32x256xf32> to vector<16x256xf32>
      %114 = arith.mulf %113, %113 : vector<16x256xf32>
      %cst_62 = arith.constant dense<0.000000e+00> : vector<16xf32>
      %115 = vector.multi_reduction <add>, %114, %cst_62 [1] : vector<16x256xf32> to vector<16xf32>
      %116 = vector.shape_cast %115 : vector<16xf32> to vector<16x1xf32>
      %cst_63 = arith.constant 1.000000e-24 : f32
      %117 = vector.broadcast %cst_63 : f32 to vector<16x1xf32>
      %118 = arith.maximumf %116, %117 : vector<16x1xf32>
      %119 = math.rsqrt %118 : vector<16x1xf32>
      %120 = vector.broadcast %119 : vector<16x1xf32> to vector<16x256xf32>
      %121 = arith.mulf %113, %120 : vector<16x256xf32>
      %122 = arith.mulf %112, %112 : vector<16x256xf32>
      %cst_64 = arith.constant dense<0.000000e+00> : vector<16xf32>
      %123 = vector.multi_reduction <add>, %122, %cst_64 [1] : vector<16x256xf32> to vector<16xf32>
      %124 = vector.shape_cast %123 : vector<16xf32> to vector<16x1xf32>
      %cst_65 = arith.constant 1.000000e-24 : f32
      %125 = vector.broadcast %cst_65 : f32 to vector<16x1xf32>
      %126 = arith.maximumf %124, %125 : vector<16x1xf32>
      %127 = math.rsqrt %126 : vector<16x1xf32>
      %128 = vector.broadcast %127 : vector<16x1xf32> to vector<16x256xf32>
      %129 = arith.mulf %112, %128 : vector<16x256xf32>
      %cst_66 = arith.constant dense<0.000000e+00> : vector<16x16xf32>
      %130 = tpu.matmul %121, %129, %cst_66 {dimension_numbers = #tpu.dot_dimension_numbers<[1], [1], [0], [0], [0, 0, 1, 0], [], []>} : vector<16x256xf32>, vector<16x256xf32>, vector<16x16xf32> -> vector<16x16xf32>
      %c2_67 = arith.constant 2 : index
      %131 = memref.load %arg2[%c2_67] : memref<4xf32, #tpu.memory_space<smem>>
      %132 = vector.broadcast %131 : f32 to vector<16x16xf32>
      %133 = arith.mulf %130, %132 : vector<16x16xf32>
      %cst_68 = arith.constant dense<0xFF800000> : vector<16xf32>
      %134 = vector.multi_reduction <maximumf>, %133, %cst_68 [1] : vector<16x16xf32> to vector<16xf32>
      %135 = vector.shape_cast %134 : vector<16xf32> to vector<16x1xf32>
      %136 = vector.broadcast %135 : vector<16x1xf32> to vector<16x16xf32>
      %137 = arith.subf %133, %136 : vector<16x16xf32>
      %138 = math.exp %137 : vector<16x16xf32>
      %cst_69 = arith.constant dense<0.000000e+00> : vector<16xf32>
      %139 = vector.multi_reduction <add>, %138, %cst_69 [1] : vector<16x16xf32> to vector<16xf32>
      %140 = vector.shape_cast %139 : vector<16xf32> to vector<16x1xf32>
      %141 = vector.broadcast %140 : vector<16x1xf32> to vector<16x16xf32>
      %142 = arith.divf %138, %141 : vector<16x16xf32>
      %c2_70 = arith.constant 2 : index
      %c0_71 = arith.constant 0 : index
      %c0_72 = arith.constant 0 : index
      %143 = vector.load %arg9[%c2_70, %c0_71, %c0_72] : memref<4x16x16xf32, #tpu.memory_space<vmem>>, vector<1x16x16xf32>
      %144 = vector.shape_cast %143 : vector<1x16x16xf32> to vector<16x16xf32>
      %145 = vector.shape_cast %142 : vector<16x16xf32> to vector<1x16x16xf32>
      tpu.vector_store %arg9[%c2_70, %c0_71, %c0_72], %145 {strides = array<i32>} : memref<4x16x16xf32, #tpu.memory_space<vmem>>, vector<1x16x16xf32>,
      %c2_73 = arith.constant 2 : index
      %c0_74 = arith.constant 0 : index
      %c0_75 = arith.constant 0 : index
      %c0_76 = arith.constant 0 : index
      %146 = vector.load %arg6[%c2_73, %c0_74, %c0_75, %c0_76] : memref<3x1x32x256xf32, #tpu.memory_space<vmem>>, vector<1x1x32x256xf32>
      %147 = vector.shape_cast %146 : vector<1x1x32x256xf32> to vector<32x256xf32>
      %148 = vector.extract_strided_slice %147 {offsets = [0, 0], sizes = [16, 256], strides = [1, 1]} : vector<32x256xf32> to vector<16x256xf32>
      %149 = vector.extract_strided_slice %147 {offsets = [16, 0], sizes = [16, 256], strides = [1, 1]} : vector<32x256xf32> to vector<16x256xf32>
      %150 = arith.mulf %149, %149 : vector<16x256xf32>
      %cst_77 = arith.constant dense<0.000000e+00> : vector<16xf32>
      %151 = vector.multi_reduction <add>, %150, %cst_77 [1] : vector<16x256xf32> to vector<16xf32>
      %152 = vector.shape_cast %151 : vector<16xf32> to vector<16x1xf32>
      %cst_78 = arith.constant 1.000000e-24 : f32
      %153 = vector.broadcast %cst_78 : f32 to vector<16x1xf32>
      %154 = arith.maximumf %152, %153 : vector<16x1xf32>
      %155 = math.rsqrt %154 : vector<16x1xf32>
      %156 = vector.broadcast %155 : vector<16x1xf32> to vector<16x256xf32>
      %157 = arith.mulf %149, %156 : vector<16x256xf32>
      %158 = arith.mulf %148, %148 : vector<16x256xf32>
      %cst_79 = arith.constant dense<0.000000e+00> : vector<16xf32>
      %159 = vector.multi_reduction <add>, %158, %cst_79 [1] : vector<16x256xf32> to vector<16xf32>
      %160 = vector.shape_cast %159 : vector<16xf32> to vector<16x1xf32>
      %cst_80 = arith.constant 1.000000e-24 : f32
      %161 = vector.broadcast %cst_80 : f32 to vector<16x1xf32>
      %162 = arith.maximumf %160, %161 : vector<16x1xf32>
      %163 = math.rsqrt %162 : vector<16x1xf32>
      %164 = vector.broadcast %163 : vector<16x1xf32> to vector<16x256xf32>
      %165 = arith.mulf %148, %164 : vector<16x256xf32>
      %cst_81 = arith.constant dense<0.000000e+00> : vector<16x16xf32>
      %166 = tpu.matmul %157, %165, %cst_81 {dimension_numbers = #tpu.dot_dimension_numbers<[1], [1], [0], [0], [0, 0, 1, 0], [], []>} : vector<16x256xf32>, vector<16x256xf32>, vector<16x16xf32> -> vector<16x16xf32>
      %c3_82 = arith.constant 3 : index
      %167 = memref.load %arg2[%c3_82] : memref<4xf32, #tpu.memory_space<smem>>
      %168 = vector.broadcast %167 : f32 to vector<16x16xf32>
      %169 = arith.mulf %166, %168 : vector<16x16xf32>
      %cst_83 = arith.constant dense<0xFF800000> : vector<16xf32>
      %170 = vector.multi_reduction <maximumf>, %169, %cst_83 [1] : vector<16x16xf32> to vector<16xf32>
      %171 = vector.shape_cast %170 : vector<16xf32> to vector<16x1xf32>
      %172 = vector.broadcast %171 : vector<16x1xf32> to vector<16x16xf32>
      %173 = arith.subf %169, %172 : vector<16x16xf32>
      %174 = math.exp %173 : vector<16x16xf32>
      %cst_84 = arith.constant dense<0.000000e+00> : vector<16xf32>
      %175 = vector.multi_reduction <add>, %174, %cst_84 [1] : vector<16x16xf32> to vector<16xf32>
      %176 = vector.shape_cast %175 : vector<16xf32> to vector<16x1xf32>
      %177 = vector.broadcast %176 : vector<16x1xf32> to vector<16x16xf32>
      %178 = arith.divf %174, %177 : vector<16x16xf32>
      %c3_85 = arith.constant 3 : index
      %c0_86 = arith.constant 0 : index
      %c0_87 = arith.constant 0 : index
      %179 = vector.load %arg9[%c3_85, %c0_86, %c0_87] : memref<4x16x16xf32, #tpu.memory_space<vmem>>, vector<1x16x16xf32>
      %180 = vector.shape_cast %179 : vector<1x16x16xf32> to vector<16x16xf32>
      %181 = vector.shape_cast %178 : vector<16x16xf32> to vector<1x16x16xf32>
      tpu.vector_store %arg9[%c3_85, %c0_86, %c0_87], %181 {strides = array<i32>} : memref<4x16x16xf32, #tpu.memory_space<vmem>>, vector<1x16x16xf32>,
    } else {
    }
    %c0 = arith.constant 0 : index
    %c0_1 = arith.constant 0 : index
    %c0_2 = arith.constant 0 : index
    %3 = vector.load %arg7[%c0, %c0_1, %c0_2] : memref<1x64x512xf32, #tpu.memory_space<vmem>>, vector<1x64x512xf32>
    %4 = vector.shape_cast %3 : vector<1x64x512xf32> to vector<64x512xf32>
    %c0_3 = arith.constant 0 : index
    %c0_4 = arith.constant 0 : index
    %5 = vector.load %arg3[%c0_3, %c0_4] : memref<64x64xf32, #tpu.memory_space<vmem>>, vector<64x64xf32>
    %cst = arith.constant dense<0.000000e+00> : vector<64x512xf32>
    %6 = tpu.matmul %5, %4, %cst {dimension_numbers = #tpu.dot_dimension_numbers<[1], [0], [0], [1], [0, 0, 1, 1], [], []>} : vector<64x64xf32>, vector<64x512xf32>, vector<64x512xf32> -> vector<64x512xf32>
    %c0_5 = arith.constant 0 : index
    %c0_6 = arith.constant 0 : index
    %7 = vector.load %arg4[%c0_5, %c0_6] : memref<64x1xf32, #tpu.memory_space<vmem>>, vector<64x1xf32>
    %8 = vector.broadcast %7 : vector<64x1xf32> to vector<64x512xf32>
    %9 = arith.addf %6, %8 : vector<64x512xf32>
    %c0_7 = arith.constant 0 : index
    %c0_8 = arith.constant 0 : index
    %c0_9 = arith.constant 0 : index
    %10 = vector.load %arg9[%c0_7, %c0_8, %c0_9] : memref<4x16x16xf32, #tpu.memory_space<vmem>>, vector<1x16x16xf32>
    %11 = vector.shape_cast %10 : vector<1x16x16xf32> to vector<16x16xf32>
    %12 = vector.extract_strided_slice %9 {offsets = [0, 0], sizes = [16, 512], strides = [1, 1]} : vector<64x512xf32> to vector<16x512xf32>
    %cst_10 = arith.constant dense<0.000000e+00> : vector<16x512xf32>
    %13 = tpu.matmul %11, %12, %cst_10 {dimension_numbers = #tpu.dot_dimension_numbers<[1], [0], [0], [1], [0, 0, 1, 1], [], []>} : vector<16x16xf32>, vector<16x512xf32>, vector<16x512xf32> -> vector<16x512xf32>
    %c0_11 = arith.constant 0 : index
    %c0_12 = arith.constant 0 : index
    %c0_13 = arith.constant 0 : index
    %14 = vector.load %arg8[%c0_11, %c0_12, %c0_13] : memref<1x64x512xf32, #tpu.memory_space<vmem>>, vector<1x16x512xf32>
    %15 = vector.shape_cast %14 : vector<1x16x512xf32> to vector<16x512xf32>
    %16 = vector.shape_cast %13 : vector<16x512xf32> to vector<1x16x512xf32>
    tpu.vector_store %arg8[%c0_11, %c0_12, %c0_13], %16 {strides = array<i32>} : memref<1x64x512xf32, #tpu.memory_space<vmem>>, vector<1x16x512xf32>,
    %c1 = arith.constant 1 : index
    %c0_14 = arith.constant 0 : index
    %c0_15 = arith.constant 0 : index
    %17 = vector.load %arg9[%c1, %c0_14, %c0_15] : memref<4x16x16xf32, #tpu.memory_space<vmem>>, vector<1x16x16xf32>
    %18 = vector.shape_cast %17 : vector<1x16x16xf32> to vector<16x16xf32>
    %19 = vector.extract_strided_slice %9 {offsets = [16, 0], sizes = [16, 512], strides = [1, 1]} : vector<64x512xf32> to vector<16x512xf32>
    %cst_16 = arith.constant dense<0.000000e+00> : vector<16x512xf32>
    %20 = tpu.matmul %18, %19, %cst_16 {dimension_numbers = #tpu.dot_dimension_numbers<[1], [0], [0], [1], [0, 0, 1, 1], [], []>} : vector<16x16xf32>, vector<16x512xf32>, vector<16x512xf32> -> vector<16x512xf32>
    %c0_17 = arith.constant 0 : index
    %c16 = arith.constant 16 : index
    %c0_18 = arith.constant 0 : index
    %21 = vector.load %arg8[%c0_17, %c16, %c0_18] : memref<1x64x512xf32, #tpu.memory_space<vmem>>, vector<1x16x512xf32>
    %22 = vector.shape_cast %21 : vector<1x16x512xf32> to vector<16x512xf32>
    %23 = vector.shape_cast %20 : vector<16x512xf32> to vector<1x16x512xf32>
    tpu.vector_store %arg8[%c0_17, %c16, %c0_18], %23 {strides = array<i32>} : memref<1x64x512xf32, #tpu.memory_space<vmem>>, vector<1x16x512xf32>,
    %c2 = arith.constant 2 : index
    %c0_19 = arith.constant 0 : index
    %c0_20 = arith.constant 0 : index
    %24 = vector.load %arg9[%c2, %c0_19, %c0_20] : memref<4x16x16xf32, #tpu.memory_space<vmem>>, vector<1x16x16xf32>
    %25 = vector.shape_cast %24 : vector<1x16x16xf32> to vector<16x16xf32>
    %26 = vector.extract_strided_slice %9 {offsets = [32, 0], sizes = [16, 512], strides = [1, 1]} : vector<64x512xf32> to vector<16x512xf32>
    %cst_21 = arith.constant dense<0.000000e+00> : vector<16x512xf32>
    %27 = tpu.matmul %25, %26, %cst_21 {dimension_numbers = #tpu.dot_dimension_numbers<[1], [0], [0], [1], [0, 0, 1, 1], [], []>} : vector<16x16xf32>, vector<16x512xf32>, vector<16x512xf32> -> vector<16x512xf32>
    %c0_22 = arith.constant 0 : index
    %c32 = arith.constant 32 : index
    %c0_23 = arith.constant 0 : index
    %28 = vector.load %arg8[%c0_22, %c32, %c0_23] : memref<1x64x512xf32, #tpu.memory_space<vmem>>, vector<1x16x512xf32>
    %29 = vector.shape_cast %28 : vector<1x16x512xf32> to vector<16x512xf32>
    %30 = vector.shape_cast %27 : vector<16x512xf32> to vector<1x16x512xf32>
    tpu.vector_store %arg8[%c0_22, %c32, %c0_23], %30 {strides = array<i32>} : memref<1x64x512xf32, #tpu.memory_space<vmem>>, vector<1x16x512xf32>,
    %c3 = arith.constant 3 : index
    %c0_24 = arith.constant 0 : index
    %c0_25 = arith.constant 0 : index
    %31 = vector.load %arg9[%c3, %c0_24, %c0_25] : memref<4x16x16xf32, #tpu.memory_space<vmem>>, vector<1x16x16xf32>
    %32 = vector.shape_cast %31 : vector<1x16x16xf32> to vector<16x16xf32>
    %33 = vector.extract_strided_slice %9 {offsets = [48, 0], sizes = [16, 512], strides = [1, 1]} : vector<64x512xf32> to vector<16x512xf32>
    %cst_26 = arith.constant dense<0.000000e+00> : vector<16x512xf32>
    %34 = tpu.matmul %32, %33, %cst_26 {dimension_numbers = #tpu.dot_dimension_numbers<[1], [0], [0], [1], [0, 0, 1, 1], [], []>} : vector<16x16xf32>, vector<16x512xf32>, vector<16x512xf32> -> vector<16x512xf32>
    %c0_27 = arith.constant 0 : index
    %c48 = arith.constant 48 : index
    %c0_28 = arith.constant 0 : index
    %35 = vector.load %arg8[%c0_27, %c48, %c0_28] : memref<1x64x512xf32, #tpu.memory_space<vmem>>, vector<1x16x512xf32>
    %36 = vector.shape_cast %35 : vector<1x16x512xf32> to vector<16x512xf32>
    %37 = vector.shape_cast %34 : vector<16x512xf32> to vector<1x16x512xf32>
    tpu.vector_store %arg8[%c0_27, %c48, %c0_28], %37 {strides = array<i32>} : memref<1x64x512xf32, #tpu.memory_space<vmem>>, vector<1x16x512xf32>,
    return
  }
  func.func @transform_0(%arg0: i32, %arg1: i32) -> i32 {
    %c0_i32 = arith.constant 0 : i32
    %c0_i32_0 = arith.constant 0 : i32
    return %c0_i32 : i32
  }
  func.func @transform_1(%arg0: i32, %arg1: i32) -> (i32, i32) {
    %c0_i32 = arith.constant 0 : i32
    %c0_i32_0 = arith.constant 0 : i32
    %c0_i32_1 = arith.constant 0 : i32
    return %c0_i32, %c0_i32_0 : i32, i32
  }
  func.func @transform_2(%arg0: i32, %arg1: i32) -> (i32, i32) {
    %c0_i32 = arith.constant 0 : i32
    %c0_i32_0 = arith.constant 0 : i32
    %c0_i32_1 = arith.constant 0 : i32
    return %c0_i32, %c0_i32_0 : i32, i32
  }
  func.func @transform_3(%arg0: i32, %arg1: i32) -> (i32, i32, i32) {
    %c0_i32 = arith.constant 0 : i32
    %c0_i32_0 = arith.constant 0 : i32
    %c0_i32_1 = arith.constant 0 : i32
    return %arg0, %c0_i32, %c0_i32_0 : i32, i32, i32
  }
  func.func @transform_4(%arg0: i32, %arg1: i32) -> (i32, i32, i32, i32) {
    %c0_i32 = arith.constant 0 : i32
    %c0_i32_0 = arith.constant 0 : i32
    %c0_i32_1 = arith.constant 0 : i32
    %c0_i32_2 = arith.constant 0 : i32
    return %c0_i32, %arg0, %c0_i32_0, %c0_i32_1 : i32, i32, i32, i32
  }
  func.func @transform_5(%arg0: i32, %arg1: i32) -> (i32, i32, i32) {
    %c0_i32 = arith.constant 0 : i32
    %c0_i32_0 = arith.constant 0 : i32
    return %arg0, %c0_i32, %arg1 : i32, i32, i32
  }
  func.func @transform_6(%arg0: i32, %arg1: i32) -> (i32, i32, i32) {
    %c0_i32 = arith.constant 0 : i32
    %c0_i32_0 = arith.constant 0 : i32
    return %arg0, %c0_i32, %arg1 : i32, i32, i32
  }
}

module attributes {stable_mosaic.version = 11 : i64} {
  func.func @_groupnorm_relu_kernel(%arg0: i32, %arg1: i32, %arg2: memref<1x1x16x1024xf32, #tpu.memory_space<vmem>>, %arg3: memref<1x16x1xf32, #tpu.memory_space<vmem>>, %arg4: memref<1x16x1xf32, #tpu.memory_space<vmem>>, %arg5: memref<1x1x16x1024xf32, #tpu.memory_space<vmem>>) attributes {dimension_semantics = [#tpu.dimension_semantics<parallel>, #tpu.dimension_semantics<parallel>], iteration_bounds = array<i64: 2, 4>, scalar_prefetch = 0 : i64, scratch_operands = 0 : i64, tpu.core_type = #tpu.core_type<tc>, window_params = [{transform_indices = @transform_0, window_bounds = array<i64: 1, 1, 16, 1024>}, {transform_indices = @transform_1, window_bounds = array<i64: 1, 16, 1>}, {transform_indices = @transform_2, window_bounds = array<i64: 1, 16, 1>}, {transform_indices = @transform_3, window_bounds = array<i64: 1, 1, 16, 1024>}]} {
    %c0 = arith.constant 0 : index
    %c0_0 = arith.constant 0 : index
    %c0_1 = arith.constant 0 : index
    %c0_2 = arith.constant 0 : index
    %0 = vector.load %arg2[%c0, %c0_0, %c0_1, %c0_2] : memref<1x1x16x1024xf32, #tpu.memory_space<vmem>>, vector<1x1x16x1024xf32>
    %1 = vector.shape_cast %0 : vector<1x1x16x1024xf32> to vector<16x1024xf32>
    %cst = arith.constant dense<0.000000e+00> : vector<16xf32>
    %2 = vector.multi_reduction <add>, %1, %cst [1] : vector<16x1024xf32> to vector<16xf32>
    %3 = vector.shape_cast %2 : vector<16xf32> to vector<16x1xf32>
    %cst_3 = arith.constant dense<0.000000e+00> : vector<1xf32>
    %4 = vector.multi_reduction <add>, %3, %cst_3 [0] : vector<16x1xf32> to vector<1xf32>
    %5 = vector.shape_cast %4 : vector<1xf32> to vector<1x1xf32>
    %cst_4 = arith.constant 1.638400e+04 : f32
    %6 = vector.broadcast %cst_4 : f32 to vector<1x1xf32>
    %7 = arith.divf %5, %6 : vector<1x1xf32>
    %8 = vector.broadcast %7 : vector<1x1xf32> to vector<16x1024xf32>
    %9 = arith.subf %1, %8 : vector<16x1024xf32>
    %10 = arith.mulf %9, %9 : vector<16x1024xf32>
    %cst_5 = arith.constant dense<0.000000e+00> : vector<16xf32>
    %11 = vector.multi_reduction <add>, %10, %cst_5 [1] : vector<16x1024xf32> to vector<16xf32>
    %12 = vector.shape_cast %11 : vector<16xf32> to vector<16x1xf32>
    %cst_6 = arith.constant dense<0.000000e+00> : vector<1xf32>
    %13 = vector.multi_reduction <add>, %12, %cst_6 [0] : vector<16x1xf32> to vector<1xf32>
    %14 = vector.shape_cast %13 : vector<1xf32> to vector<1x1xf32>
    %cst_7 = arith.constant 1.638400e+04 : f32
    %15 = vector.broadcast %cst_7 : f32 to vector<1x1xf32>
    %16 = arith.divf %14, %15 : vector<1x1xf32>
    %cst_8 = arith.constant 9.99999974E-6 : f32
    %17 = vector.broadcast %cst_8 : f32 to vector<1x1xf32>
    %18 = arith.addf %16, %17 : vector<1x1xf32>
    %19 = math.rsqrt %18 : vector<1x1xf32>
    %c0_9 = arith.constant 0 : index
    %c0_10 = arith.constant 0 : index
    %c0_11 = arith.constant 0 : index
    %20 = vector.load %arg3[%c0_9, %c0_10, %c0_11] : memref<1x16x1xf32, #tpu.memory_space<vmem>>, vector<1x16x1xf32>
    %21 = vector.shape_cast %20 : vector<1x16x1xf32> to vector<16x1xf32>
    %c0_12 = arith.constant 0 : index
    %c0_13 = arith.constant 0 : index
    %c0_14 = arith.constant 0 : index
    %22 = vector.load %arg4[%c0_12, %c0_13, %c0_14] : memref<1x16x1xf32, #tpu.memory_space<vmem>>, vector<1x16x1xf32>
    %23 = vector.shape_cast %22 : vector<1x16x1xf32> to vector<16x1xf32>
    %24 = vector.broadcast %19 : vector<1x1xf32> to vector<16x1024xf32>
    %25 = arith.mulf %9, %24 : vector<16x1024xf32>
    %26 = vector.broadcast %21 : vector<16x1xf32> to vector<16x1024xf32>
    %27 = arith.mulf %25, %26 : vector<16x1024xf32>
    %28 = vector.broadcast %23 : vector<16x1xf32> to vector<16x1024xf32>
    %29 = arith.addf %27, %28 : vector<16x1024xf32>
    %cst_15 = arith.constant 0.000000e+00 : f32
    %30 = vector.broadcast %cst_15 : f32 to vector<16x1024xf32>
    %31 = arith.maximumf %29, %30 : vector<16x1024xf32>
    %c0_16 = arith.constant 0 : index
    %c0_17 = arith.constant 0 : index
    %c0_18 = arith.constant 0 : index
    %c0_19 = arith.constant 0 : index
    %32 = vector.load %arg5[%c0_16, %c0_17, %c0_18, %c0_19] : memref<1x1x16x1024xf32, #tpu.memory_space<vmem>>, vector<1x1x16x1024xf32>
    %33 = vector.shape_cast %32 : vector<1x1x16x1024xf32> to vector<16x1024xf32>
    %34 = vector.shape_cast %31 : vector<16x1024xf32> to vector<1x1x16x1024xf32>
    tpu.vector_store %arg5[%c0_16, %c0_17, %c0_18, %c0_19], %34 {strides = array<i32>} : memref<1x1x16x1024xf32, #tpu.memory_space<vmem>>, vector<1x1x16x1024xf32>,
    return
  }
  func.func @transform_0(%arg0: i32, %arg1: i32) -> (i32, i32, i32, i32) {
    %c0_i32 = arith.constant 0 : i32
    %c0_i32_0 = arith.constant 0 : i32
    %c0_i32_1 = arith.constant 0 : i32
    return %arg0, %arg1, %c0_i32, %c0_i32_0 : i32, i32, i32, i32
  }
  func.func @transform_1(%arg0: i32, %arg1: i32) -> (i32, i32, i32) {
    %c0_i32 = arith.constant 0 : i32
    %c0_i32_0 = arith.constant 0 : i32
    %c0_i32_1 = arith.constant 0 : i32
    return %arg1, %c0_i32, %c0_i32_0 : i32, i32, i32
  }
  func.func @transform_2(%arg0: i32, %arg1: i32) -> (i32, i32, i32) {
    %c0_i32 = arith.constant 0 : i32
    %c0_i32_0 = arith.constant 0 : i32
    %c0_i32_1 = arith.constant 0 : i32
    return %arg1, %c0_i32, %c0_i32_0 : i32, i32, i32
  }
  func.func @transform_3(%arg0: i32, %arg1: i32) -> (i32, i32, i32, i32) {
    %c0_i32 = arith.constant 0 : i32
    %c0_i32_0 = arith.constant 0 : i32
    %c0_i32_1 = arith.constant 0 : i32
    return %arg0, %arg1, %c0_i32, %c0_i32_0 : i32, i32, i32, i32
  }
}

</mosaic_0001>

<llo_original>
// kernel: multiscale_attention_forward.3
$region0: #{multiscale_attention_forward.3}
  #allocation0 [shape = 'u32[]', space=smem, size = 0x4, offset = 0x4, fixed_abs, tag = 'smem constant byte address 0x4 - core index']
  #allocation1 [shape = 'u32[144,128]{1,0:T(1,128)}', space=vmem, size = 0x12000, scoped, tag = 'internal scratch']
  %s0 = inlined_call_operand.vmem [shape: f32[32,64], index: 0, kind: input, shape index: {}]
  %s1 = inlined_call_operand.vmem [shape: f32[2,64,1024], index: 1, kind: input, shape index: {}]
  %s2 = inlined_call_operand.vmem [shape: f32[2,32,1024], index: 2, kind: output, shape index: {}]
  %s3 = sld [smem:[#allocation0]]
  $region83: #{multiscale_attention_forward.3} parent=0
    _
  %s5 = ssub.s32 1, %s3
  %s6 = scalar_select 0, %s5, %s3
  $region1: #{multiscale_attention_forward.3} parent=0
    #allocation2 [shape = 'u8[262144]{0}', space=vmem, size = 0x40000, scoped, tag = 'input window, operand 1']
    #allocation3 [shape = 'u8[131072]{0}', space=vmem, size = 0x20000, scoped, tag = 'output window, operand 0']
    loop: start=0, step=1, limit=6
    $region2: #{multiscale_attention_forward.3} parent=1 // loop_pre_header
      _
    $region3: #{multiscale_attention_forward.3} parent=1 // loop_header
      %s8 = sphi 0, %s12
      %p9 = scmp.ge.s32.totalorder %s8, 6
      %s15 = sphi 0, %s27
      %s16 = sphi 0, %s23
      %s17 = sphi 0, %s15
      %s18 = sphi 0, %s16
      %s19 = sphi 0, %s17
      %s20 = sphi 0, %s18
      %s28 = sphi 0, %s28
      %s30 = sphi 0, %s28
      %s31 = sphi 0, %s30
      %s45 = sphi 0, %s31
      %s53 = sphi 0, %s55
      %s56 = sphi 0, %s53
      %s57 = sphi 0, %s56
      %s73 = sphi 0, %s57
      %s81 = sphi 0, %s83
      %s84 = sphi 0, %s81
      %s85 = sphi 0, %s84
      %s101 = sphi 0, %s85
    $region4: #{multiscale_attention_forward.3} parent=1 // loop_header_branch
      %11 = sbr.rel (%p9) target = $region8
    $region5: #{multiscale_attention_forward.3} parent=1 // loop_body
      %s13 = ssub.s32 %s8, 1
      %s14 = ssub.s32 %s8, 2
      %s21 = sadd.s32 1, %s16
      %p22 = scmp.ge.s32.totalorder %s21, 2
      %s23 = scalar_select %p22, 0, %s21
      %s24 = sadd.s32 1, %s15
      %s25 = scalar_select %p22, %s24, %s15
      %p26 = scmp.ge.s32.totalorder %s25, 2
      %s27 = scalar_select %p26, 0, %s25
      %s29 = sadd.s32 %s28, 1
      %p32 = scmp.eq.s32.totalorder %s8, 3
      %p33 = scmp.ne.s32.totalorder %s28, %s30
      %p34 = scmp.eq.s32.totalorder %s8, 0
      %p35 = por %p33, %p34
      %p36 = scmp.ne.s32.totalorder %s28, %s30
      %p37 = scmp.eq.s32.totalorder %s13, 3
      %p38 = por %p36, %p37
      %p39 = scmp.ne.s32.totalorder %s30, %s31
      %p40 = scmp.eq.s32.totalorder %s13, 0
      %p41 = por %p39, %p40
      %p42 = scmp.ne.s32.totalorder %s30, %s31
      %p43 = scmp.eq.s32.totalorder %s14, 3
      %p44 = por %p42, %p43
      %p46 = scmp.ne.s32.totalorder %s31, %s45
      %p47 = scmp.eq.s32.totalorder %s14, 0
      %p48 = por %p46, %p47
      %s49 = ssub.s32 %s15, %s27
      %s50 = ssub.s32 %s16, %s23
      %s51 = sor.u32 %s49, %s50
      %p52 = scmp.eq.s32.totalorder %s51, 0
      %s54 = sadd.s32 %s53, 1
      %s55 = scalar_select %p52, %s53, %s54
      %p58 = pneg %p52
      %p59 = scmp.eq.s32.totalorder %s8, 3
      %p60 = por %p58, %p59
      %p61 = scmp.ne.s32.totalorder %s53, %s56
      %p62 = scmp.eq.s32.totalorder %s8, 0
      %p63 = por %p61, %p62
      %p64 = scmp.ne.s32.totalorder %s53, %s56
      %p65 = scmp.eq.s32.totalorder %s13, 3
      %p66 = por %p64, %p65
      %p67 = scmp.ne.s32.totalorder %s56, %s57
      %p68 = scmp.eq.s32.totalorder %s13, 0
      %p69 = por %p67, %p68
      %p70 = scmp.ne.s32.totalorder %s56, %s57
      %p71 = scmp.eq.s32.totalorder %s14, 3
      %p72 = por %p70, %p71
      %p74 = scmp.ne.s32.totalorder %s57, %s73
      %p75 = scmp.eq.s32.totalorder %s14, 0
      %p76 = por %p74, %p75
      %s77 = ssub.s32 %s15, %s27
      %s78 = ssub.s32 %s16, %s23
      %s79 = sor.u32 %s77, %s78
      %p80 = scmp.eq.s32.totalorder %s79, 0
      %s82 = sadd.s32 %s81, 1
      %s83 = scalar_select %p80, %s81, %s82
      %p86 = pneg %p80
      %p87 = scmp.eq.s32.totalorder %s8, 3
      %p88 = por %p86, %p87
      %p89 = scmp.ne.s32.totalorder %s81, %s84
      %p90 = scmp.eq.s32.totalorder %s8, 0
      %p91 = por %p89, %p90
      %p92 = scmp.ne.s32.totalorder %s81, %s84
      %p93 = scmp.eq.s32.totalorder %s13, 3
      %p94 = por %p92, %p93
      %p95 = scmp.ne.s32.totalorder %s84, %s85
      %p96 = scmp.eq.s32.totalorder %s13, 0
      %p97 = por %p95, %p96
      %p98 = scmp.ne.s32.totalorder %s84, %s85
      %p99 = scmp.eq.s32.totalorder %s14, 3
      %p100 = por %p98, %p99
      %p102 = scmp.ne.s32.totalorder %s85, %s101
      %p103 = scmp.eq.s32.totalorder %s14, 0
      %p104 = por %p102, %p103
      %p105 = scmp.le.s32.totalorder 1, %s8
      %p106 = scmp.lt.s32.totalorder %s8, 5
      %p107 = pnand %p105, %p106
      %p108 = pneg %p107
      // Predicated region
      $region9: #{multiscale_attention_forward.3} parent=5 // pred_check
        _
      $region10: #{multiscale_attention_forward.3} parent=5 // pred_check_branch
        %110 = sbr.rel (%p107) target = $region12
      $region11: #{multiscale_attention_forward.3} parent=5 // pred_region
        %s111 = ssub.s32 %s8, 1
        // Predicated region
        $region13: #{multiscale_attention_forward.3} parent=11 // pred_check
          %p112 = pneg %p41
        $region14: #{multiscale_attention_forward.3} parent=11 // pred_check_branch
          %114 = sbr.rel (%p112) target = $region16
        $region15: #{multiscale_attention_forward.3} parent=11 // pred_region
          _
        $region16: #{multiscale_attention_forward.3} parent=11 // pred_fallthru
          _
      $region12: #{multiscale_attention_forward.3} parent=5 // pred_fallthru
        _
      %p115 = scmp.lt.s32.totalorder %s8, 4
      // Predicated region
      $region17: #{multiscale_attention_forward.3} parent=5 // pred_check
        %p116 = pneg %p115
      $region18: #{multiscale_attention_forward.3} parent=5 // pred_check_branch
        %118 = sbr.rel (%p116) target = $region20
      $region19: #{multiscale_attention_forward.3} parent=5 // pred_region
        // Predicated region
        $region21: #{multiscale_attention_forward.3} parent=19 // pred_check
          %p119 = pneg %p63
        $region22: #{multiscale_attention_forward.3} parent=19 // pred_check_branch
          %121 = sbr.rel (%p119) target = $region24
        $region23: #{multiscale_attention_forward.3} parent=19 // pred_region
          %s122 = sand.u32 %s53, 1
          %s123 = sand.u32 %s53, 1
          %s124 = smul.addr %s123, 256
          %s125 = scalar_lea.vmem [#allocation2], %s124
          %s126 = smul.u32 4, %s16
          %s127 = smul.addr %s15, 64
          %s128 = sadd.s32 %s126, %s127
          %s129 = smul.addr %s128, 8
          %s130 = scalar_lea.vmem %s1, %s129
          // Predicated region
          $region25: #{multiscale_attention_forward.3} parent=23 // pred_check
            _
          $region26: #{multiscale_attention_forward.3} parent=23 // pred_check_branch
            %132 = sbr.rel (0) target = $region28
          $region27: #{multiscale_attention_forward.3} parent=23 // pred_region
            // Predicated region
            $region29: #{multiscale_attention_forward.3} parent=27 // pred_check
              _
            $region30: #{multiscale_attention_forward.3} parent=27 // pred_check_branch
              %134 = sbr.rel (0) target = $region32
            $region31: #{multiscale_attention_forward.3} parent=27 // pred_region
              loop: start=0, step=1, limit=1
              $region33: #{multiscale_attention_forward.3} parent=31 // loop_pre_header
                _
              $region34: #{multiscale_attention_forward.3} parent=31 // loop_header
                %s136 = sphi 0, %s140
                %p137 = scmp.ge.s32.totalorder %s136, 1
                %s141 = sphi %s130, %s130
                %s142 = sphi %s125, %s125
              $region35: #{multiscale_attention_forward.3} parent=31 // loop_header_branch
                %139 = sbr.rel (%p137) target = $region39
              $region36: #{multiscale_attention_forward.3} parent=31 // loop_body
                %v143 = vld [vmem:[%s141] sm:$0xff]
                %144 = vst [vmem:[%s142] sm:$0xff] %v143
                %v145 = vld [vmem:[%s141 + $0x8] sm:$0xff]
                %146 = vst [vmem:[%s142 + $0x8] sm:$0xff] %v145
                %v147 = vld [vmem:[%s141 + $0x10] sm:$0xff]
                %148 = vst [vmem:[%s142 + $0x10] sm:$0xff] %v147
                %v149 = vld [vmem:[%s141 + $0x18] sm:$0xff]
                %150 = vst [vmem:[%s142 + $0x18] sm:$0xff] %v149
                %v151 = vld [vmem:[%s141 + $0x40] sm:$0xff]
                %152 = vst [vmem:[%s142 + $0x20] sm:$0xff] %v151
                %v153 = vld [vmem:[%s141 + $0x48] sm:$0xff]
                %154 = vst [vmem:[%s142 + $0x28] sm:$0xff] %v153
                %v155 = vld [vmem:[%s141 + $0x50] sm:$0xff]
                %156 = vst [vmem:[%s142 + $0x30] sm:$0xff] %v155
                %v157 = vld [vmem:[%s141 + $0x58] sm:$0xff]
                %158 = vst [vmem:[%s142 + $0x38] sm:$0xff] %v157
                %v159 = vld [vmem:[%s141 + $0x80] sm:$0xff]
                %160 = vst [vmem:[%s142 + $0x40] sm:$0xff] %v159
                %v161 = vld [vmem:[%s141 + $0x88] sm:$0xff]
                %162 = vst [vmem:[%s142 + $0x48] sm:$0xff] %v161
                %v163 = vld [vmem:[%s141 + $0x90] sm:$0xff]
                %164 = vst [vmem:[%s142 + $0x50] sm:$0xff] %v163
                %v165 = vld [vmem:[%s141 + $0x98] sm:$0xff]
                %166 = vst [vmem:[%s142 + $0x58] sm:$0xff] %v165
                %v167 = vld [vmem:[%s141 + $0xc0] sm:$0xff]
                %168 = vst [vmem:[%s142 + $0x60] sm:$0xff] %v167
                %v169 = vld [vmem:[%s141 + $0xc8] sm:$0xff]
                %170 = vst [vmem:[%s142 + $0x68] sm:$0xff] %v169
                %v171 = vld [vmem:[%s141 + $0xd0] sm:$0xff]
                %172 = vst [vmem:[%s142 + $0x70] sm:$0xff] %v171
                %v173 = vld [vmem:[%s141 + $0xd8] sm:$0xff]
                %174 = vst [vmem:[%s142 + $0x78] sm:$0xff] %v173
                %v175 = vld [vmem:[%s141 + $0x100] sm:$0xff]
                %176 = vst [vmem:[%s142 + $0x80] sm:$0xff] %v175
                %v177 = vld [vmem:[%s141 + $0x108] sm:$0xff]
                %178 = vst [vmem:[%s142 + $0x88] sm:$0xff] %v177
                %v179 = vld [vmem:[%s141 + $0x110] sm:$0xff]
                %180 = vst [vmem:[%s142 + $0x90] sm:$0xff] %v179
                %v181 = vld [vmem:[%s141 + $0x118] sm:$0xff]
                %182 = vst [vmem:[%s142 + $0x98] sm:$0xff] %v181
                %v183 = vld [vmem:[%s141 + $0x140] sm:$0xff]
                %184 = vst [vmem:[%s142 + $0xa0] sm:$0xff] %v183
                %v185 = vld [vmem:[%s141 + $0x148] sm:$0xff]
                %186 = vst [vmem:[%s142 + $0xa8] sm:$0xff] %v185
                %v187 = vld [vmem:[%s141 + $0x150] sm:$0xff]
                %188 = vst [vmem:[%s142 + $0xb0] sm:$0xff] %v187
                %v189 = vld [vmem:[%s141 + $0x158] sm:$0xff]
                %190 = vst [vmem:[%s142 + $0xb8] sm:$0xff] %v189
                %v191 = vld [vmem:[%s141 + $0x180] sm:$0xff]
                %192 = vst [vmem:[%s142 + $0xc0] sm:$0xff] %v191
                %v193 = vld [vmem:[%s141 + $0x188] sm:$0xff]
                %194 = vst [vmem:[%s142 + $0xc8] sm:$0xff] %v193
                %v195 = vld [vmem:[%s141 + $0x190] sm:$0xff]
                %196 = vst [vmem:[%s142 + $0xd0] sm:$0xff] %v195
                %v197 = vld [vmem:[%s141 + $0x198] sm:$0xff]
                %198 = vst [vmem:[%s142 + $0xd8] sm:$0xff] %v197
                %v199 = vld [vmem:[%s141 + $0x1c0] sm:$0xff]
                %200 = vst [vmem:[%s142 + $0xe0] sm:$0xff] %v199
                %v201 = vld [vmem:[%s141 + $0x1c8] sm:$0xff]
                %202 = vst [vmem:[%s142 + $0xe8] sm:$0xff] %v201
                %v203 = vld [vmem:[%s141 + $0x1d0] sm:$0xff]
                %204 = vst [vmem:[%s142 + $0xf0] sm:$0xff] %v203
                %v205 = vld [vmem:[%s141 + $0x1d8] sm:$0xff]
                %206 = vst [vmem:[%s142 + $0xf8] sm:$0xff] %v205
              $region37: #{multiscale_attention_forward.3} parent=31 // loop_footer
                %s140 = sadd.s32 1, %s136
              $region38: #{multiscale_attention_forward.3} parent=31 // loop_footer_branch
                %135 = sbr.rel target = $region34
              $region39: #{multiscale_attention_forward.3} parent=31 // loop_exit
                _
            $region32: #{multiscale_attention_forward.3} parent=27 // pred_fallthru
              _
            // Predicated region
            $region40: #{multiscale_attention_forward.3} parent=27 // pred_check
              _
            $region41: #{multiscale_attention_forward.3} parent=27 // pred_check_branch
              %208 = sbr.rel target = $region43
            $region42: #{multiscale_attention_forward.3} parent=27 // pred_region
              _
            $region43: #{multiscale_attention_forward.3} parent=27 // pred_fallthru
              _
          $region28: #{multiscale_attention_forward.3} parent=23 // pred_fallthru
            _
          %209 = vnop
        $region24: #{multiscale_attention_forward.3} parent=19 // pred_fallthru
          _
      $region20: #{multiscale_attention_forward.3} parent=5 // pred_fallthru
        _
      %p210 = scmp.le.s32.totalorder 1, %s8
      %p211 = scmp.lt.s32.totalorder %s8, 5
      %p212 = pnand %p210, %p211
      %p213 = pneg %p212
      // Predicated region
      $region44: #{multiscale_attention_forward.3} parent=5 // pred_check
        _
      $region45: #{multiscale_attention_forward.3} parent=5 // pred_check_branch
        %215 = sbr.rel (%p212) target = $region47
      $region46: #{multiscale_attention_forward.3} parent=5 // pred_region
        %s216 = ssub.s32 %s8, 1
        %s217 = sand.u32 %s56, 1
        %s218 = sand.u32 %s56, 1
        %s219 = smul.addr %s218, 256
        %s220 = scalar_lea.vmem [#allocation2], %s219
        // Predicated region
        $region48: #{multiscale_attention_forward.3} parent=46 // pred_check
          %p221 = pneg %p69
        $region49: #{multiscale_attention_forward.3} parent=46 // pred_check_branch
          %223 = sbr.rel (%p221) target = $region51
        $region50: #{multiscale_attention_forward.3} parent=46 // pred_region
          _
        $region51: #{multiscale_attention_forward.3} parent=46 // pred_fallthru
          _
        %p224 = pneg %p41
        %p225 = pneg %p38
        %s226 = sand.u32 %s56, 1
        %s227 = sand.u32 %s56, 1
        %s228 = smul.addr %s227, 256
        %s229 = scalar_lea.vmem [#allocation2], %s228
        %p230 = pneg %p69
        %p231 = pneg %p66
        %p232 = pneg %p97
        %p233 = pneg %p94
        %s234 = sand.u32 %s84, 1
        %s235 = sand.u32 %s84, 1
        %s236 = smul.addr %s235, 128
        %s237 = scalar_lea.vmem [#allocation3], %s236
        %s238 = smul.u32 4, %s18
        %s239 = smul.u32 4, %s18
        %v240 = vld [vmem:[%s0] sm:$0xff]
        %v241 = vld [vmem:[%s0 + $0x8] sm:$0xff]
        %v242 = vld [vmem:[%s0 + $0x10] sm:$0xff]
        %v243 = vld [vmem:[%s0 + $0x18] sm:$0xff]
        %v244 = vld [vmem:[%s220] sm:$0xff]
        %v245 = vld [vmem:[%s220 + $0x8] sm:$0xff]
        %v246 = vld [vmem:[%s220 + $0x10] sm:$0xff]
        %v247 = vld [vmem:[%s220 + $0x18] sm:$0xff]
        %v248 = vld [vmem:[%s220 + $0x20] sm:$0xff]
        %v249 = vld [vmem:[%s220 + $0x28] sm:$0xff]
        %v250 = vld [vmem:[%s220 + $0x30] sm:$0xff]
        %v251 = vld [vmem:[%s220 + $0x38] sm:$0xff]
        %v252 = vld [vmem:[%s220 + $0x40] sm:$0xff]
        %v253 = vld [vmem:[%s220 + $0x48] sm:$0xff]
        %v254 = vld [vmem:[%s220 + $0x50] sm:$0xff]
        %v255 = vld [vmem:[%s220 + $0x58] sm:$0xff]
        %v256 = vld [vmem:[%s220 + $0x60] sm:$0xff]
        %v257 = vld [vmem:[%s220 + $0x68] sm:$0xff]
        %v258 = vld [vmem:[%s220 + $0x70] sm:$0xff]
        %v259 = vld [vmem:[%s220 + $0x78] sm:$0xff]
        %v260 = vld [vmem:[%s220 + $0x80] sm:$0xff]
        %v261 = vld [vmem:[%s220 + $0x88] sm:$0xff]
        %v262 = vld [vmem:[%s220 + $0x90] sm:$0xff]
        %v263 = vld [vmem:[%s220 + $0x98] sm:$0xff]
        %v264 = vld [vmem:[%s220 + $0xa0] sm:$0xff]
        %v265 = vld [vmem:[%s220 + $0xa8] sm:$0xff]
        %v266 = vld [vmem:[%s220 + $0xb0] sm:$0xff]
        %v267 = vld [vmem:[%s220 + $0xb8] sm:$0xff]
        %v268 = vld [vmem:[%s220 + $0xc0] sm:$0xff]
        %v269 = vld [vmem:[%s220 + $0xc8] sm:$0xff]
        %v270 = vld [vmem:[%s220 + $0xd0] sm:$0xff]
        %v271 = vld [vmem:[%s220 + $0xd8] sm:$0xff]
        %v272 = vld [vmem:[%s220 + $0xe0] sm:$0xff]
        %v273 = vld [vmem:[%s220 + $0xe8] sm:$0xff]
        %v274 = vld [vmem:[%s220 + $0xf0] sm:$0xff]
        %v275 = vld [vmem:[%s220 + $0xf8] sm:$0xff]
        %vm276 = vcmask 523264
        %v278 = vsel %vm276, %v240, 0
        %v281 = vsel %vm276, %v241, 0
        %v284 = vsel %vm276, %v242, 0
        %v287 = vsel %vm276, %v243, 0
        %289 = vmatprep.subr.mxu0 %v245
        %290 = vmatpush1.msra.mxu0 %v244
        %291 = vmatprep.subr.mxu0 %v249
        %292 = vmatpush1.msra.mxu0 %v248
        %293 = vmatprep.subr.mxu0 %v253
        %294 = vmatpush1.msra.mxu0 %v252
        %295 = vmatprep.subr.mxu0 %v257
        %296 = vmatpush1.msra.mxu0 %v256
        %297 = vmatprep.subr.mxu0 %v261
        %298 = vmatpush1.msra.mxu0 %v260
        %299 = vmatprep.subr.mxu0 %v265
        %300 = vmatpush1.msra.mxu0 %v264
        %301 = vmatprep.subr.mxu0 %v269
        %302 = vmatpush1.msra.mxu0 %v268
        %303 = vmatprep.subr.mxu0 %v273
        %304 = vmatpush1.msra.mxu0 %v272
        %305 = vmatprep.subr.mxu0 0.0
        %306 = vmatpush1.msra.mxu0 0.0
        %307 = vmatprep.subr.mxu0 0.0
        %308 = vmatpush1.msra.mxu0 0.0
        %309 = vmatprep.subr.mxu0 0.0
        %310 = vmatpush1.msra.mxu0 0.0
        %311 = vmatprep.subr.mxu0 0.0
        %312 = vmatpush1.msra.mxu0 0.0
        %313 = vmatprep.subr.mxu0 0.0
        %314 = vmatpush1.msra.mxu0 0.0
        %315 = vmatprep.subr.mxu0 0.0
        %316 = vmatpush1.msra.mxu0 0.0
        %317 = vmatprep.subr.mxu0 0.0
        %318 = vmatpush1.msra.mxu0 0.0
        %319 = vmatprep.subr.mxu0 0.0
        %320 = vmatpush1.msra.mxu0 0.0
        %321 = vmatprep.subr.mxu0 0.0
        %322 = vmatpush1.msra.mxu0 0.0
        %323 = vmatprep.subr.mxu0 0.0
        %324 = vmatpush1.msra.mxu0 0.0
        %325 = vmatprep.subr.mxu0 0.0
        %326 = vmatpush1.msra.mxu0 0.0
        %327 = vmatprep.subr.mxu0 0.0
        %328 = vmatpush1.msra.mxu0 0.0
        %329 = vmatprep.subr.mxu0 0.0
        %330 = vmatpush1.msra.mxu0 0.0
        %331 = vmatprep.subr.mxu0 0.0
        %332 = vmatpush1.msra.mxu0 0.0
        %333 = vmatprep.subr.mxu0 0.0
        %334 = vmatpush1.msra.mxu0 0.0
        %335 = vmatprep.subr.mxu0 0.0
        %336 = vmatpush1.msra.mxu0 0.0
        %337 = vmatprep.subr.mxu0 0.0
        %338 = vmatpush1.msra.mxu0 0.0
        %339 = vmatprep.subr.mxu0 0.0
        %340 = vmatpush1.msra.mxu0 0.0
        %341 = vmatprep.subr.mxu0 0.0
        %342 = vmatpush1.msra.mxu0 0.0
        %343 = vmatprep.subr.mxu0 0.0
        %344 = vmatpush1.msra.mxu0 0.0
        %345 = vmatprep.subr.mxu0 0.0
        %346 = vmatpush1.msra.mxu0 0.0
        %347 = vmatprep.subr.mxu0 0.0
        %348 = vmatpush1.msra.mxu0 0.0
        %349 = vmatprep.subr.mxu0 0.0
        %350 = vmatpush1.msra.mxu0 0.0
        %351 = vmatprep.subr.mxu0 0.0
        %352 = vmatpush1.msra.mxu0 0.0
        %353 = vmatprep.mubr.f32.mxu0 0.0
        %354 = vmatmul.mubr.f32.gmra.mrb[0].mxu0 %v278
        %v355 = vpop.f32.mrb[0].mxu0
        %v356 = vadd.f32 0.0, %v355
        %v357 = vpop.f32.mrb[0].mxu0
        %v358 = vadd.f32 0.0, %v357
        %359 = vmatprep.mubr.f32.mxu0 0.0
        %360 = vmatmul.mubr.f32.gmra.mrb[0].mxu0 %v281
        %v361 = vpop.f32.mrb[0].mxu0
        %v362 = vadd.f32 0.0, %v361
        %v363 = vpop.f32.mrb[0].mxu0
        %v364 = vadd.f32 0.0, %v363
        %365 = vmatprep.mubr.f32.mxu0 0.0
        %366 = vmatmul.mubr.f32.gmra.mrb[0].mxu0 %v284
        %v367 = vpop.f32.mrb[0].mxu0
        %v368 = vadd.f32 0.0, %v367
        %v369 = vpop.f32.mrb[0].mxu0
        %v370 = vadd.f32 0.0, %v369
        %371 = vmatprep.mubr.f32.mxu0 0.0
        %372 = vmatmul.mubr.f32.gmra.mrb[0].mxu0 %v287
        %v373 = vpop.f32.mrb[0].mxu0
        %v374 = vadd.f32 0.0, %v373
        %v375 = vpop.f32.mrb[0].mxu0
        %v376 = vadd.f32 0.0, %v375
        %377 = vdwg.mxu0
        %378 = vmatprep.subr.mxu0 %v247
        %379 = vmatpush1.msra.mxu0 %v246
        %380 = vmatprep.subr.mxu0 %v251
        %381 = vmatpush1.msra.mxu0 %v250
        %382 = vmatprep.subr.mxu0 %v255
        %383 = vmatpush1.msra.mxu0 %v254
        %384 = vmatprep.subr.mxu0 %v259
        %385 = vmatpush1.msra.mxu0 %v258
        %386 = vmatprep.subr.mxu0 %v263
        %387 = vmatpush1.msra.mxu0 %v262
        %388 = vmatprep.subr.mxu0 %v267
        %389 = vmatpush1.msra.mxu0 %v266
        %390 = vmatprep.subr.mxu0 %v271
        %391 = vmatpush1.msra.mxu0 %v270
        %392 = vmatprep.subr.mxu0 %v275
        %393 = vmatpush1.msra.mxu0 %v274
        %394 = vmatprep.subr.mxu0 0.0
        %395 = vmatpush1.msra.mxu0 0.0
        %396 = vmatprep.subr.mxu0 0.0
        %397 = vmatpush1.msra.mxu0 0.0
        %398 = vmatprep.subr.mxu0 0.0
        %399 = vmatpush1.msra.mxu0 0.0
        %400 = vmatprep.subr.mxu0 0.0
        %401 = vmatpush1.msra.mxu0 0.0
        %402 = vmatprep.subr.mxu0 0.0
        %403 = vmatpush1.msra.mxu0 0.0
        %404 = vmatprep.subr.mxu0 0.0
        %405 = vmatpush1.msra.mxu0 0.0
        %406 = vmatprep.subr.mxu0 0.0
        %407 = vmatpush1.msra.mxu0 0.0
        %408 = vmatprep.subr.mxu0 0.0
        %409 = vmatpush1.msra.mxu0 0.0
        %410 = vmatprep.subr.mxu0 0.0
        %411 = vmatpush1.msra.mxu0 0.0
        %412 = vmatprep.subr.mxu0 0.0
        %413 = vmatpush1.msra.mxu0 0.0
        %414 = vmatprep.subr.mxu0 0.0
        %415 = vmatpush1.msra.mxu0 0.0
        %416 = vmatprep.subr.mxu0 0.0
        %417 = vmatpush1.msra.mxu0 0.0
        %418 = vmatprep.subr.mxu0 0.0
        %419 = vmatpush1.msra.mxu0 0.0
        %420 = vmatprep.subr.mxu0 0.0
        %421 = vmatpush1.msra.mxu0 0.0
        %422 = vmatprep.subr.mxu0 0.0
        %423 = vmatpush1.msra.mxu0 0.0
        %424 = vmatprep.subr.mxu0 0.0
        %425 = vmatpush1.msra.mxu0 0.0
        %426 = vmatprep.subr.mxu0 0.0
        %427 = vmatpush1.msra.mxu0 0.0
        %428 = vmatprep.subr.mxu0 0.0
        %429 = vmatpush1.msra.mxu0 0.0
        %430 = vmatprep.subr.mxu0 0.0
        %431 = vmatpush1.msra.mxu0 0.0
        %432 = vmatprep.subr.mxu0 0.0
        %433 = vmatpush1.msra.mxu0 0.0
        %434 = vmatprep.subr.mxu0 0.0
        %435 = vmatpush1.msra.mxu0 0.0
        %436 = vmatprep.subr.mxu0 0.0
        %437 = vmatpush1.msra.mxu0 0.0
        %438 = vmatprep.subr.mxu0 0.0
        %439 = vmatpush1.msra.mxu0 0.0
        %440 = vmatprep.subr.mxu0 0.0
        %441 = vmatpush1.msra.mxu0 0.0
        %442 = vmatprep.mubr.f32.mxu0 0.0
        %443 = vmatmul.mubr.f32.gmra.mrb[0].mxu0 %v278
        %v444 = vpop.f32.mrb[0].mxu0
        %v445 = vadd.f32 0.0, %v444
        %v446 = vpop.f32.mrb[0].mxu0
        %v447 = vadd.f32 0.0, %v446
        %448 = vmatprep.mubr.f32.mxu0 0.0
        %449 = vmatmul.mubr.f32.gmra.mrb[0].mxu0 %v281
        %v450 = vpop.f32.mrb[0].mxu0
        %v451 = vadd.f32 0.0, %v450
        %v452 = vpop.f32.mrb[0].mxu0
        %v453 = vadd.f32 0.0, %v452
        %454 = vmatprep.mubr.f32.mxu0 0.0
        %455 = vmatmul.mubr.f32.gmra.mrb[0].mxu0 %v284
        %v456 = vpop.f32.mrb[0].mxu0
        %v457 = vadd.f32 0.0, %v456
        %v458 = vpop.f32.mrb[0].mxu0
        %v459 = vadd.f32 0.0, %v458
        %460 = vmatprep.mubr.f32.mxu0 0.0
        %461 = vmatmul.mubr.f32.gmra.mrb[0].mxu0 %v287
        %v462 = vpop.f32.mrb[0].mxu0
        %v463 = vadd.f32 0.0, %v462
        %v464 = vpop.f32.mrb[0].mxu0
        %v465 = vadd.f32 0.0, %v464
        %466 = vdwg.mxu0
        %467 = vst [vmem:[%s237] sm:$0xff] %v356
        %468 = vst [vmem:[%s237 + $0x8] sm:$0xff] %v358
        %469 = vst [vmem:[%s237 + $0x10] sm:$0xff] %v445
        %470 = vst [vmem:[%s237 + $0x18] sm:$0xff] %v447
        %471 = vst [vmem:[%s237 + $0x20] sm:$0xff] %v362
        %472 = vst [vmem:[%s237 + $0x28] sm:$0xff] %v364
        %473 = vst [vmem:[%s237 + $0x30] sm:$0xff] %v451
        %474 = vst [vmem:[%s237 + $0x38] sm:$0xff] %v453
        %475 = vst [vmem:[%s237 + $0x40] sm:$0xff] %v368
        %476 = vst [vmem:[%s237 + $0x48] sm:$0xff] %v370
        %477 = vst [vmem:[%s237 + $0x50] sm:$0xff] %v457
        %478 = vst [vmem:[%s237 + $0x58] sm:$0xff] %v459
        %479 = vst [vmem:[%s237 + $0x60] sm:$0xff] %v374
        %480 = vst [vmem:[%s237 + $0x68] sm:$0xff] %v376
        %481 = vst [vmem:[%s237 + $0x70] sm:$0xff] %v463
        %482 = vst [vmem:[%s237 + $0x78] sm:$0xff] %v465
        %s483 = sand.u32 %s84, 1
        %s484 = sand.u32 %s84, 1
        %s485 = smul.addr %s484, 128
        %s486 = scalar_lea.vmem [#allocation3], %s485
        // Predicated region
        $region52: #{multiscale_attention_forward.3} parent=46 // pred_check
          %p487 = pneg %p94
        $region53: #{multiscale_attention_forward.3} parent=46 // pred_check_branch
          %489 = sbr.rel (%p487) target = $region55
        $region54: #{multiscale_attention_forward.3} parent=46 // pred_region
          %s490 = smul.u32 4, %s18
          %s491 = smul.addr %s17, 32
          %s492 = sadd.s32 %s490, %s491
          %s493 = smul.addr %s492, 8
          %s494 = scalar_lea.vmem %s2, %s493
          // Predicated region
          $region56: #{multiscale_attention_forward.3} parent=54 // pred_check
            _
          $region57: #{multiscale_attention_forward.3} parent=54 // pred_check_branch
            %496 = sbr.rel (0) target = $region59
          $region58: #{multiscale_attention_forward.3} parent=54 // pred_region
            // Predicated region
            $region60: #{multiscale_attention_forward.3} parent=58 // pred_check
              _
            $region61: #{multiscale_attention_forward.3} parent=58 // pred_check_branch
              %498 = sbr.rel (0) target = $region63
            $region62: #{multiscale_attention_forward.3} parent=58 // pred_region
              loop: start=0, step=1, limit=1
              $region64: #{multiscale_attention_forward.3} parent=62 // loop_pre_header
                _
              $region65: #{multiscale_attention_forward.3} parent=62 // loop_header
                %s500 = sphi 0, %s504
                %p501 = scmp.ge.s32.totalorder %s500, 1
                %s505 = sphi %s486, %s486
                %s506 = sphi %s494, %s494
              $region66: #{multiscale_attention_forward.3} parent=62 // loop_header_branch
                %503 = sbr.rel (%p501) target = $region70
              $region67: #{multiscale_attention_forward.3} parent=62 // loop_body
                %v507 = vld [vmem:[%s505] sm:$0xff]
                %508 = vst [vmem:[%s506] sm:$0xff] %v507
                %v509 = vld [vmem:[%s505 + $0x8] sm:$0xff]
                %510 = vst [vmem:[%s506 + $0x8] sm:$0xff] %v509
                %v511 = vld [vmem:[%s505 + $0x10] sm:$0xff]
                %512 = vst [vmem:[%s506 + $0x10] sm:$0xff] %v511
                %v513 = vld [vmem:[%s505 + $0x18] sm:$0xff]
                %514 = vst [vmem:[%s506 + $0x18] sm:$0xff] %v513
                %v515 = vld [vmem:[%s505 + $0x20] sm:$0xff]
                %516 = vst [vmem:[%s506 + $0x40] sm:$0xff] %v515
                %v517 = vld [vmem:[%s505 + $0x28] sm:$0xff]
                %518 = vst [vmem:[%s506 + $0x48] sm:$0xff] %v517
                %v519 = vld [vmem:[%s505 + $0x30] sm:$0xff]
                %520 = vst [vmem:[%s506 + $0x50] sm:$0xff] %v519
                %v521 = vld [vmem:[%s505 + $0x38] sm:$0xff]
                %522 = vst [vmem:[%s506 + $0x58] sm:$0xff] %v521
                %v523 = vld [vmem:[%s505 + $0x40] sm:$0xff]
                %524 = vst [vmem:[%s506 + $0x80] sm:$0xff] %v523
                %v525 = vld [vmem:[%s505 + $0x48] sm:$0xff]
                %526 = vst [vmem:[%s506 + $0x88] sm:$0xff] %v525
                %v527 = vld [vmem:[%s505 + $0x50] sm:$0xff]
                %528 = vst [vmem:[%s506 + $0x90] sm:$0xff] %v527
                %v529 = vld [vmem:[%s505 + $0x58] sm:$0xff]
                %530 = vst [vmem:[%s506 + $0x98] sm:$0xff] %v529
                %v531 = vld [vmem:[%s505 + $0x60] sm:$0xff]
                %532 = vst [vmem:[%s506 + $0xc0] sm:$0xff] %v531
                %v533 = vld [vmem:[%s505 + $0x68] sm:$0xff]
                %534 = vst [vmem:[%s506 + $0xc8] sm:$0xff] %v533
                %v535 = vld [vmem:[%s505 + $0x70] sm:$0xff]
                %536 = vst [vmem:[%s506 + $0xd0] sm:$0xff] %v535
                %v537 = vld [vmem:[%s505 + $0x78] sm:$0xff]
                %538 = vst [vmem:[%s506 + $0xd8] sm:$0xff] %v537
              $region68: #{multiscale_attention_forward.3} parent=62 // loop_footer
                %s504 = sadd.s32 1, %s500
              $region69: #{multiscale_attention_forward.3} parent=62 // loop_footer_branch
                %499 = sbr.rel target = $region65
              $region70: #{multiscale_attention_forward.3} parent=62 // loop_exit
                _
            $region63: #{multiscale_attention_forward.3} parent=58 // pred_fallthru
              _
            // Predicated region
            $region71: #{multiscale_attention_forward.3} parent=58 // pred_check
              _
            $region72: #{multiscale_attention_forward.3} parent=58 // pred_check_branch
              %540 = sbr.rel target = $region74
            $region73: #{multiscale_attention_forward.3} parent=58 // pred_region
              _
            $region74: #{multiscale_attention_forward.3} parent=58 // pred_fallthru
              _
          $region59: #{multiscale_attention_forward.3} parent=54 // pred_fallthru
            _
          %541 = vnop
        $region55: #{multiscale_attention_forward.3} parent=46 // pred_fallthru
          _
      $region47: #{multiscale_attention_forward.3} parent=5 // pred_fallthru
        _
      %p542 = scmp.le.s32.totalorder 2, %s8
      // Predicated region
      $region75: #{multiscale_attention_forward.3} parent=5 // pred_check
        %p543 = pneg %p542
      $region76: #{multiscale_attention_forward.3} parent=5 // pred_check_branch
        %545 = sbr.rel (%p543) target = $region78
      $region77: #{multiscale_attention_forward.3} parent=5 // pred_region
        %s546 = ssub.s32 %s8, 2
        // Predicated region
        $region79: #{multiscale_attention_forward.3} parent=77 // pred_check
          %p547 = pneg %p100
        $region80: #{multiscale_attention_forward.3} parent=77 // pred_check_branch
          %549 = sbr.rel (%p547) target = $region82
        $region81: #{multiscale_attention_forward.3} parent=77 // pred_region
          %s550 = sand.u32 %s85, 1
          %s551 = sand.u32 %s85, 1
          %s552 = smul.addr %s551, 128
          %s553 = scalar_lea.vmem [#allocation3], %s552
        $region82: #{multiscale_attention_forward.3} parent=77 // pred_fallthru
          _
      $region78: #{multiscale_attention_forward.3} parent=5 // pred_fallthru
        _
    $region6: #{multiscale_attention_forward.3} parent=1 // loop_footer
      %s12 = sadd.s32 1, %s8
    $region7: #{multiscale_attention_forward.3} parent=1 // loop_footer_branch
      %7 = sbr.rel target = $region3
    $region8: #{multiscale_attention_forward.3} parent=1 // loop_exit
      _

// kernel: multiscale_attention_forward.4
$region0: #{multiscale_attention_forward.4}
  #allocation0 [shape = 'u32[]', space=smem, size = 0x4, offset = 0x4, fixed_abs, tag = 'smem constant byte address 0x4 - core index']
  #allocation1 [shape = 'u32[144,128]{1,0:T(1,128)}', space=vmem, size = 0x12000, scoped, tag = 'internal scratch']
  #allocation2 [shape = 'f32[4,16,16]{2,1,0:T(8,128)}', space=vmem, size = 0x8000, scoped, tag = 'scratch operand']
  %s0 = inlined_call_operand.vmem [shape: f32[4], index: 0, kind: input, shape index: {}]
  %s1 = inlined_call_operand.vmem [shape: f32[64,64], index: 1, kind: input, shape index: {}]
  %s2 = inlined_call_operand.vmem [shape: f32[64,1], index: 2, kind: input, shape index: {}]
  %s3 = inlined_call_operand.vmem [shape: f32[2,32,1024], index: 3, kind: input, shape index: {}]
  %s4 = inlined_call_operand.vmem [shape: f32[3,2,32,256], index: 4, kind: input, shape index: {}]
  %s5 = inlined_call_operand.vmem [shape: f32[2,64,1024], index: 5, kind: input, shape index: {}]
  %s6 = inlined_call_operand.vmem [shape: f32[2,64,1024], index: 6, kind: output, shape index: {}]
  %s7 = sld [smem:[#allocation0]]
  $region130: #{multiscale_attention_forward.4} parent=0
    _
  %s9 = ssub.s32 1, %s7
  %s10 = scalar_select 0, %s9, %s7
  $region1: #{multiscale_attention_forward.4} parent=0
    #allocation3 [shape = 'u8[512]{0}', space=smem, size = 0x200, scoped, tag = 'input window, operand 0, single buffered']
    #allocation4 [shape = 's32[2]{0}', space=sflag, size = 0x8, scoped, tag = 'scoped memory for multiscale_attention_forward.4']
    #allocation5 [shape = 'u8[196608]{0}', space=vmem, size = 0x30000, scoped, tag = 'input window, operand 4']
    #allocation6 [shape = 'u8[262144]{0}', space=vmem, size = 0x40000, scoped, tag = 'input window, operand 5']
    #allocation7 [shape = 'u8[262144]{0}', space=vmem, size = 0x40000, scoped, tag = 'output window, operand 0']
    %11 = vsyncpa [#allocation4], 0
    loop: start=0, step=1, limit=6
    $region2: #{multiscale_attention_forward.4} parent=1 // loop_pre_header
      _
    $region3: #{multiscale_attention_forward.4} parent=1 // loop_header
      %s13 = sphi 0, %s17
      %p14 = scmp.ge.s32.totalorder %s13, 6
      %s20 = sphi 0, %s32
      %s21 = sphi 0, %s28
      %s22 = sphi 0, %s20
      %s23 = sphi 0, %s21
      %s24 = sphi 0, %s22
      %s25 = sphi 0, %s23
      %s33 = sphi 0, %s33
      %s35 = sphi 0, %s33
      %s36 = sphi 0, %s35
      %s50 = sphi 0, %s36
      %s54 = sphi 0, %s54
      %s56 = sphi 0, %s54
      %s57 = sphi 0, %s56
      %s71 = sphi 0, %s57
      %s75 = sphi 0, %s75
      %s77 = sphi 0, %s75
      %s78 = sphi 0, %s77
      %s92 = sphi 0, %s78
      %s98 = sphi 0, %s100
      %s101 = sphi 0, %s98
      %s102 = sphi 0, %s101
      %s118 = sphi 0, %s102
      %s124 = sphi 0, %s126
      %s127 = sphi 0, %s124
      %s128 = sphi 0, %s127
      %s144 = sphi 0, %s128
      %s152 = sphi 0, %s154
      %s155 = sphi 0, %s152
      %s156 = sphi 0, %s155
      %s172 = sphi 0, %s156
      %s180 = sphi 0, %s182
      %s183 = sphi 0, %s180
      %s184 = sphi 0, %s183
      %s200 = sphi 0, %s184
    $region4: #{multiscale_attention_forward.4} parent=1 // loop_header_branch
      %16 = sbr.rel (%p14) target = $region8
    $region5: #{multiscale_attention_forward.4} parent=1 // loop_body
      %s18 = ssub.s32 %s13, 1
      %s19 = ssub.s32 %s13, 2
      %s26 = sadd.s32 1, %s21
      %p27 = scmp.ge.s32.totalorder %s26, 2
      %s28 = scalar_select %p27, 0, %s26
      %s29 = sadd.s32 1, %s20
      %s30 = scalar_select %p27, %s29, %s20
      %p31 = scmp.ge.s32.totalorder %s30, 2
      %s32 = scalar_select %p31, 0, %s30
      %s34 = sadd.s32 %s33, 1
      %p37 = scmp.eq.s32.totalorder %s13, 3
      %p38 = scmp.ne.s32.totalorder %s33, %s35
      %p39 = scmp.eq.s32.totalorder %s13, 0
      %p40 = por %p38, %p39
      %p41 = scmp.ne.s32.totalorder %s33, %s35
      %p42 = scmp.eq.s32.totalorder %s18, 3
      %p43 = por %p41, %p42
      %p44 = scmp.ne.s32.totalorder %s35, %s36
      %p45 = scmp.eq.s32.totalorder %s18, 0
      %p46 = por %p44, %p45
      %p47 = scmp.ne.s32.totalorder %s35, %s36
      %p48 = scmp.eq.s32.totalorder %s19, 3
      %p49 = por %p47, %p48
      %p51 = scmp.ne.s32.totalorder %s36, %s50
      %p52 = scmp.eq.s32.totalorder %s19, 0
      %p53 = por %p51, %p52
      %s55 = sadd.s32 %s54, 1
      %p58 = scmp.eq.s32.totalorder %s13, 3
      %p59 = scmp.ne.s32.totalorder %s54, %s56
      %p60 = scmp.eq.s32.totalorder %s13, 0
      %p61 = por %p59, %p60
      %p62 = scmp.ne.s32.totalorder %s54, %s56
      %p63 = scmp.eq.s32.totalorder %s18, 3
      %p64 = por %p62, %p63
      %p65 = scmp.ne.s32.totalorder %s56, %s57
      %p66 = scmp.eq.s32.totalorder %s18, 0
      %p67 = por %p65, %p66
      %p68 = scmp.ne.s32.totalorder %s56, %s57
      %p69 = scmp.eq.s32.totalorder %s19, 3
      %p70 = por %p68, %p69
      %p72 = scmp.ne.s32.totalorder %s57, %s71
      %p73 = scmp.eq.s32.totalorder %s19, 0
      %p74 = por %p72, %p73
      %s76 = sadd.s32 %s75, 1
      %p79 = scmp.eq.s32.totalorder %s13, 3
      %p80 = scmp.ne.s32.totalorder %s75, %s77
      %p81 = scmp.eq.s32.totalorder %s13, 0
      %p82 = por %p80, %p81
      %p83 = scmp.ne.s32.totalorder %s75, %s77
      %p84 = scmp.eq.s32.totalorder %s18, 3
      %p85 = por %p83, %p84
      %p86 = scmp.ne.s32.totalorder %s77, %s78
      %p87 = scmp.eq.s32.totalorder %s18, 0
      %p88 = por %p86, %p87
      %p89 = scmp.ne.s32.totalorder %s77, %s78
      %p90 = scmp.eq.s32.totalorder %s19, 3
      %p91 = por %p89, %p90
      %p93 = scmp.ne.s32.totalorder %s78, %s92
      %p94 = scmp.eq.s32.totalorder %s19, 0
      %p95 = por %p93, %p94
      %s96 = ssub.s32 %s20, %s32
      %p97 = scmp.eq.s32.totalorder %s96, 0
      %s99 = sadd.s32 %s98, 1
      %s100 = scalar_select %p97, %s98, %s99
      %p103 = pneg %p97
      %p104 = scmp.eq.s32.totalorder %s13, 3
      %p105 = por %p103, %p104
      %p106 = scmp.ne.s32.totalorder %s98, %s101
      %p107 = scmp.eq.s32.totalorder %s13, 0
      %p108 = por %p106, %p107
      %p109 = scmp.ne.s32.totalorder %s98, %s101
      %p110 = scmp.eq.s32.totalorder %s18, 3
      %p111 = por %p109, %p110
      %p112 = scmp.ne.s32.totalorder %s101, %s102
      %p113 = scmp.eq.s32.totalorder %s18, 0
      %p114 = por %p112, %p113
      %p115 = scmp.ne.s32.totalorder %s101, %s102
      %p116 = scmp.eq.s32.totalorder %s19, 3
      %p117 = por %p115, %p116
      %p119 = scmp.ne.s32.totalorder %s102, %s118
      %p120 = scmp.eq.s32.totalorder %s19, 0
      %p121 = por %p119, %p120
      %s122 = ssub.s32 %s20, %s32
      %p123 = scmp.eq.s32.totalorder %s122, 0
      %s125 = sadd.s32 %s124, 1
      %s126 = scalar_select %p123, %s124, %s125
      %p129 = pneg %p123
      %p130 = scmp.eq.s32.totalorder %s13, 3
      %p131 = por %p129, %p130
      %p132 = scmp.ne.s32.totalorder %s124, %s127
      %p133 = scmp.eq.s32.totalorder %s13, 0
      %p134 = por %p132, %p133
      %p135 = scmp.ne.s32.totalorder %s124, %s127
      %p136 = scmp.eq.s32.totalorder %s18, 3
      %p137 = por %p135, %p136
      %p138 = scmp.ne.s32.totalorder %s127, %s128
      %p139 = scmp.eq.s32.totalorder %s18, 0
      %p140 = por %p138, %p139
      %p141 = scmp.ne.s32.totalorder %s127, %s128
      %p142 = scmp.eq.s32.totalorder %s19, 3
      %p143 = por %p141, %p142
      %p145 = scmp.ne.s32.totalorder %s128, %s144
      %p146 = scmp.eq.s32.totalorder %s19, 0
      %p147 = por %p145, %p146
      %s148 = ssub.s32 %s20, %s32
      %s149 = ssub.s32 %s21, %s28
      %s150 = sor.u32 %s148, %s149
      %p151 = scmp.eq.s32.totalorder %s150, 0
      %s153 = sadd.s32 %s152, 1
      %s154 = scalar_select %p151, %s152, %s153
      %p157 = pneg %p151
      %p158 = scmp.eq.s32.totalorder %s13, 3
      %p159 = por %p157, %p158
      %p160 = scmp.ne.s32.totalorder %s152, %s155
      %p161 = scmp.eq.s32.totalorder %s13, 0
      %p162 = por %p160, %p161
      %p163 = scmp.ne.s32.totalorder %s152, %s155
      %p164 = scmp.eq.s32.totalorder %s18, 3
      %p165 = por %p163, %p164
      %p166 = scmp.ne.s32.totalorder %s155, %s156
      %p167 = scmp.eq.s32.totalorder %s18, 0
      %p168 = por %p166, %p167
      %p169 = scmp.ne.s32.totalorder %s155, %s156
      %p170 = scmp.eq.s32.totalorder %s19, 3
      %p171 = por %p169, %p170
      %p173 = scmp.ne.s32.totalorder %s156, %s172
      %p174 = scmp.eq.s32.totalorder %s19, 0
      %p175 = por %p173, %p174
      %s176 = ssub.s32 %s20, %s32
      %s177 = ssub.s32 %s21, %s28
      %s178 = sor.u32 %s176, %s177
      %p179 = scmp.eq.s32.totalorder %s178, 0
      %s181 = sadd.s32 %s180, 1
      %s182 = scalar_select %p179, %s180, %s181
      %p185 = pneg %p179
      %p186 = scmp.eq.s32.totalorder %s13, 3
      %p187 = por %p185, %p186
      %p188 = scmp.ne.s32.totalorder %s180, %s183
      %p189 = scmp.eq.s32.totalorder %s13, 0
      %p190 = por %p188, %p189
      %p191 = scmp.ne.s32.totalorder %s180, %s183
      %p192 = scmp.eq.s32.totalorder %s18, 3
      %p193 = por %p191, %p192
      %p194 = scmp.ne.s32.totalorder %s183, %s184
      %p195 = scmp.eq.s32.totalorder %s18, 0
      %p196 = por %p194, %p195
      %p197 = scmp.ne.s32.totalorder %s183, %s184
      %p198 = scmp.eq.s32.totalorder %s19, 3
      %p199 = por %p197, %p198
      %p201 = scmp.ne.s32.totalorder %s184, %s200
      %p202 = scmp.eq.s32.totalorder %s19, 0
      %p203 = por %p201, %p202
      %p204 = scmp.le.s32.totalorder 1, %s13
      %p205 = scmp.lt.s32.totalorder %s13, 5
      %p206 = pnand %p204, %p205
      %p207 = pneg %p206
      // Predicated region
      $region9: #{multiscale_attention_forward.4} parent=5 // pred_check
        _
      $region10: #{multiscale_attention_forward.4} parent=5 // pred_check_branch
        %209 = sbr.rel (%p206) target = $region12
      $region11: #{multiscale_attention_forward.4} parent=5 // pred_region
        %s210 = ssub.s32 %s13, 1
        // Predicated region
        $region13: #{multiscale_attention_forward.4} parent=11 // pred_check
          %p211 = pneg %p46
        $region14: #{multiscale_attention_forward.4} parent=11 // pred_check_branch
          %213 = sbr.rel (%p211) target = $region16
        $region15: #{multiscale_attention_forward.4} parent=11 // pred_region
          %s215 = ssub.s32 16, 16
          %216 = vsyncadd [#allocation4], %s215
          %s218 = sshll.u32 %s0, 4
          %s219 = int_to_ptr.vmem [resolvable:$true] %s218
          %221 = dma.vmem_to_smem %s219, 16, [#allocation3], [#allocation4]
        $region16: #{multiscale_attention_forward.4} parent=11 // pred_fallthru
          _
        // Predicated region
        $region17: #{multiscale_attention_forward.4} parent=11 // pred_check
          %p222 = pneg %p67
        $region18: #{multiscale_attention_forward.4} parent=11 // pred_check_branch
          %224 = sbr.rel (%p222) target = $region20
        $region19: #{multiscale_attention_forward.4} parent=11 // pred_region
          _
        $region20: #{multiscale_attention_forward.4} parent=11 // pred_fallthru
          _
        // Predicated region
        $region21: #{multiscale_attention_forward.4} parent=11 // pred_check
          %p225 = pneg %p88
        $region22: #{multiscale_attention_forward.4} parent=11 // pred_check_branch
          %227 = sbr.rel (%p225) target = $region24
        $region23: #{multiscale_attention_forward.4} parent=11 // pred_region
          _
        $region24: #{multiscale_attention_forward.4} parent=11 // pred_fallthru
          _
      $region12: #{multiscale_attention_forward.4} parent=5 // pred_fallthru
        _
      %p228 = scmp.lt.s32.totalorder %s13, 4
      // Predicated region
      $region25: #{multiscale_attention_forward.4} parent=5 // pred_check
        %p229 = pneg %p228
      $region26: #{multiscale_attention_forward.4} parent=5 // pred_check_branch
        %231 = sbr.rel (%p229) target = $region28
      $region27: #{multiscale_attention_forward.4} parent=5 // pred_region
        // Predicated region
        $region29: #{multiscale_attention_forward.4} parent=27 // pred_check
          %p232 = pneg %p108
        $region30: #{multiscale_attention_forward.4} parent=27 // pred_check_branch
          %234 = sbr.rel (%p232) target = $region32
        $region31: #{multiscale_attention_forward.4} parent=27 // pred_region
          %p235 = scmp.lt.s32.totalorder %s20, 1
          %s236 = scalar_select %p235, %s20, 1
          %s237 = smul.addr %s236, 32
          %s238 = smul.addr %s237, 8
          %s239 = scalar_lea.vmem %s3, %s238
        $region32: #{multiscale_attention_forward.4} parent=27 // pred_fallthru
          _
        // Predicated region
        $region33: #{multiscale_attention_forward.4} parent=27 // pred_check
          %p240 = pneg %p134
        $region34: #{multiscale_attention_forward.4} parent=27 // pred_check_branch
          %242 = sbr.rel (%p240) target = $region36
        $region35: #{multiscale_attention_forward.4} parent=27 // pred_region
          %s243 = sand.u32 %s124, 1
          %s244 = sand.u32 %s124, 1
          %s245 = smul.addr %s244, 192
          %s246 = scalar_lea.vmem [#allocation5], %s245
          %s247 = smul.addr %s20, 8
          %s248 = smul.addr %s247, 8
          %s249 = scalar_lea.vmem %s4, %s248
          // Predicated region
          $region37: #{multiscale_attention_forward.4} parent=35 // pred_check
            _
          $region38: #{multiscale_attention_forward.4} parent=35 // pred_check_branch
            %251 = sbr.rel (0) target = $region40
          $region39: #{multiscale_attention_forward.4} parent=35 // pred_region
            // Predicated region
            $region41: #{multiscale_attention_forward.4} parent=39 // pred_check
              _
            $region42: #{multiscale_attention_forward.4} parent=39 // pred_check_branch
              %253 = sbr.rel (0) target = $region44
            $region43: #{multiscale_attention_forward.4} parent=39 // pred_region
              loop: start=0, step=1, limit=1
              $region45: #{multiscale_attention_forward.4} parent=43 // loop_pre_header
                _
              $region46: #{multiscale_attention_forward.4} parent=43 // loop_header
                %s255 = sphi 0, %s259
                %p256 = scmp.ge.s32.totalorder %s255, 1
                %s260 = sphi %s249, %s249
                %s261 = sphi %s246, %s246
              $region47: #{multiscale_attention_forward.4} parent=43 // loop_header_branch
                %258 = sbr.rel (%p256) target = $region51
              $region48: #{multiscale_attention_forward.4} parent=43 // loop_body
                %v262 = vld [vmem:[%s260] sm:$0xff]
                %263 = vst [vmem:[%s261] sm:$0xff] %v262
                %v264 = vld [vmem:[%s260 + $0x8] sm:$0xff]
                %265 = vst [vmem:[%s261 + $0x8] sm:$0xff] %v264
                %v266 = vld [vmem:[%s260 + $0x10] sm:$0xff]
                %267 = vst [vmem:[%s261 + $0x10] sm:$0xff] %v266
                %v268 = vld [vmem:[%s260 + $0x18] sm:$0xff]
                %269 = vst [vmem:[%s261 + $0x18] sm:$0xff] %v268
                %v270 = vld [vmem:[%s260 + $0x20] sm:$0xff]
                %271 = vst [vmem:[%s261 + $0x20] sm:$0xff] %v270
                %v272 = vld [vmem:[%s260 + $0x28] sm:$0xff]
                %273 = vst [vmem:[%s261 + $0x28] sm:$0xff] %v272
                %v274 = vld [vmem:[%s260 + $0x30] sm:$0xff]
                %275 = vst [vmem:[%s261 + $0x30] sm:$0xff] %v274
                %v276 = vld [vmem:[%s260 + $0x38] sm:$0xff]
                %277 = vst [vmem:[%s261 + $0x38] sm:$0xff] %v276
                %v278 = vld [vmem:[%s260 + $0x80] sm:$0xff]
                %279 = vst [vmem:[%s261 + $0x40] sm:$0xff] %v278
                %v280 = vld [vmem:[%s260 + $0x88] sm:$0xff]
                %281 = vst [vmem:[%s261 + $0x48] sm:$0xff] %v280
                %v282 = vld [vmem:[%s260 + $0x90] sm:$0xff]
                %283 = vst [vmem:[%s261 + $0x50] sm:$0xff] %v282
                %v284 = vld [vmem:[%s260 + $0x98] sm:$0xff]
                %285 = vst [vmem:[%s261 + $0x58] sm:$0xff] %v284
                %v286 = vld [vmem:[%s260 + $0xa0] sm:$0xff]
                %287 = vst [vmem:[%s261 + $0x60] sm:$0xff] %v286
                %v288 = vld [vmem:[%s260 + $0xa8] sm:$0xff]
                %289 = vst [vmem:[%s261 + $0x68] sm:$0xff] %v288
                %v290 = vld [vmem:[%s260 + $0xb0] sm:$0xff]
                %291 = vst [vmem:[%s261 + $0x70] sm:$0xff] %v290
                %v292 = vld [vmem:[%s260 + $0xb8] sm:$0xff]
                %293 = vst [vmem:[%s261 + $0x78] sm:$0xff] %v292
                %v294 = vld [vmem:[%s260 + $0x100] sm:$0xff]
                %295 = vst [vmem:[%s261 + $0x80] sm:$0xff] %v294
                %v296 = vld [vmem:[%s260 + $0x108] sm:$0xff]
                %297 = vst [vmem:[%s261 + $0x88] sm:$0xff] %v296
                %v298 = vld [vmem:[%s260 + $0x110] sm:$0xff]
                %299 = vst [vmem:[%s261 + $0x90] sm:$0xff] %v298
                %v300 = vld [vmem:[%s260 + $0x118] sm:$0xff]
                %301 = vst [vmem:[%s261 + $0x98] sm:$0xff] %v300
                %v302 = vld [vmem:[%s260 + $0x120] sm:$0xff]
                %303 = vst [vmem:[%s261 + $0xa0] sm:$0xff] %v302
                %v304 = vld [vmem:[%s260 + $0x128] sm:$0xff]
                %305 = vst [vmem:[%s261 + $0xa8] sm:$0xff] %v304
                %v306 = vld [vmem:[%s260 + $0x130] sm:$0xff]
                %307 = vst [vmem:[%s261 + $0xb0] sm:$0xff] %v306
                %v308 = vld [vmem:[%s260 + $0x138] sm:$0xff]
                %309 = vst [vmem:[%s261 + $0xb8] sm:$0xff] %v308
              $region49: #{multiscale_attention_forward.4} parent=43 // loop_footer
                %s259 = sadd.s32 1, %s255
              $region50: #{multiscale_attention_forward.4} parent=43 // loop_footer_branch
                %254 = sbr.rel target = $region46
              $region51: #{multiscale_attention_forward.4} parent=43 // loop_exit
                _
            $region44: #{multiscale_attention_forward.4} parent=39 // pred_fallthru
              _
            // Predicated region
            $region52: #{multiscale_attention_forward.4} parent=39 // pred_check
              _
            $region53: #{multiscale_attention_forward.4} parent=39 // pred_check_branch
              %311 = sbr.rel target = $region55
            $region54: #{multiscale_attention_forward.4} parent=39 // pred_region
              _
            $region55: #{multiscale_attention_forward.4} parent=39 // pred_fallthru
              _
          $region40: #{multiscale_attention_forward.4} parent=35 // pred_fallthru
            _
          %312 = vnop
        $region36: #{multiscale_attention_forward.4} parent=27 // pred_fallthru
          _
        // Predicated region
        $region56: #{multiscale_attention_forward.4} parent=27 // pred_check
          %p313 = pneg %p162
        $region57: #{multiscale_attention_forward.4} parent=27 // pred_check_branch
          %315 = sbr.rel (%p313) target = $region59
        $region58: #{multiscale_attention_forward.4} parent=27 // pred_region
          %s316 = sand.u32 %s152, 1
          %s317 = sand.u32 %s152, 1
          %s318 = smul.addr %s317, 256
          %s319 = scalar_lea.vmem [#allocation6], %s318
          %s320 = smul.u32 4, %s21
          %s321 = smul.addr %s20, 64
          %s322 = sadd.s32 %s320, %s321
          %s323 = smul.addr %s322, 8
          %s324 = scalar_lea.vmem %s5, %s323
          // Predicated region
          $region60: #{multiscale_attention_forward.4} parent=58 // pred_check
            _
          $region61: #{multiscale_attention_forward.4} parent=58 // pred_check_branch
            %326 = sbr.rel (0) target = $region63
          $region62: #{multiscale_attention_forward.4} parent=58 // pred_region
            // Predicated region
            $region64: #{multiscale_attention_forward.4} parent=62 // pred_check
              _
            $region65: #{multiscale_attention_forward.4} parent=62 // pred_check_branch
              %328 = sbr.rel (0) target = $region67
            $region66: #{multiscale_attention_forward.4} parent=62 // pred_region
              loop: start=0, step=1, limit=1
              $region68: #{multiscale_attention_forward.4} parent=66 // loop_pre_header
                _
              $region69: #{multiscale_attention_forward.4} parent=66 // loop_header
                %s330 = sphi 0, %s334
                %p331 = scmp.ge.s32.totalorder %s330, 1
                %s335 = sphi %s324, %s324
                %s336 = sphi %s319, %s319
              $region70: #{multiscale_attention_forward.4} parent=66 // loop_header_branch
                %333 = sbr.rel (%p331) target = $region74
              $region71: #{multiscale_attention_forward.4} parent=66 // loop_body
                %v337 = vld [vmem:[%s335] sm:$0xff]
                %338 = vst [vmem:[%s336] sm:$0xff] %v337
                %v339 = vld [vmem:[%s335 + $0x8] sm:$0xff]
                %340 = vst [vmem:[%s336 + $0x8] sm:$0xff] %v339
                %v341 = vld [vmem:[%s335 + $0x10] sm:$0xff]
                %342 = vst [vmem:[%s336 + $0x10] sm:$0xff] %v341
                %v343 = vld [vmem:[%s335 + $0x18] sm:$0xff]
                %344 = vst [vmem:[%s336 + $0x18] sm:$0xff] %v343
                %v345 = vld [vmem:[%s335 + $0x40] sm:$0xff]
                %346 = vst [vmem:[%s336 + $0x20] sm:$0xff] %v345
                %v347 = vld [vmem:[%s335 + $0x48] sm:$0xff]
                %348 = vst [vmem:[%s336 + $0x28] sm:$0xff] %v347
                %v349 = vld [vmem:[%s335 + $0x50] sm:$0xff]
                %350 = vst [vmem:[%s336 + $0x30] sm:$0xff] %v349
                %v351 = vld [vmem:[%s335 + $0x58] sm:$0xff]
                %352 = vst [vmem:[%s336 + $0x38] sm:$0xff] %v351
                %v353 = vld [vmem:[%s335 + $0x80] sm:$0xff]
                %354 = vst [vmem:[%s336 + $0x40] sm:$0xff] %v353
                %v355 = vld [vmem:[%s335 + $0x88] sm:$0xff]
                %356 = vst [vmem:[%s336 + $0x48] sm:$0xff] %v355
                %v357 = vld [vmem:[%s335 + $0x90] sm:$0xff]
                %358 = vst [vmem:[%s336 + $0x50] sm:$0xff] %v357
                %v359 = vld [vmem:[%s335 + $0x98] sm:$0xff]
                %360 = vst [vmem:[%s336 + $0x58] sm:$0xff] %v359
                %v361 = vld [vmem:[%s335 + $0xc0] sm:$0xff]
                %362 = vst [vmem:[%s336 + $0x60] sm:$0xff] %v361
                %v363 = vld [vmem:[%s335 + $0xc8] sm:$0xff]
                %364 = vst [vmem:[%s336 + $0x68] sm:$0xff] %v363
                %v365 = vld [vmem:[%s335 + $0xd0] sm:$0xff]
                %366 = vst [vmem:[%s336 + $0x70] sm:$0xff] %v365
                %v367 = vld [vmem:[%s335 + $0xd8] sm:$0xff]
                %368 = vst [vmem:[%s336 + $0x78] sm:$0xff] %v367
                %v369 = vld [vmem:[%s335 + $0x100] sm:$0xff]
                %370 = vst [vmem:[%s336 + $0x80] sm:$0xff] %v369
                %v371 = vld [vmem:[%s335 + $0x108] sm:$0xff]
                %372 = vst [vmem:[%s336 + $0x88] sm:$0xff] %v371
                %v373 = vld [vmem:[%s335 + $0x110] sm:$0xff]
                %374 = vst [vmem:[%s336 + $0x90] sm:$0xff] %v373
                %v375 = vld [vmem:[%s335 + $0x118] sm:$0xff]
                %376 = vst [vmem:[%s336 + $0x98] sm:$0xff] %v375
                %v377 = vld [vmem:[%s335 + $0x140] sm:$0xff]
                %378 = vst [vmem:[%s336 + $0xa0] sm:$0xff] %v377
                %v379 = vld [vmem:[%s335 + $0x148] sm:$0xff]
                %380 = vst [vmem:[%s336 + $0xa8] sm:$0xff] %v379
                %v381 = vld [vmem:[%s335 + $0x150] sm:$0xff]
                %382 = vst [vmem:[%s336 + $0xb0] sm:$0xff] %v381
                %v383 = vld [vmem:[%s335 + $0x158] sm:$0xff]
                %384 = vst [vmem:[%s336 + $0xb8] sm:$0xff] %v383
                %v385 = vld [vmem:[%s335 + $0x180] sm:$0xff]
                %386 = vst [vmem:[%s336 + $0xc0] sm:$0xff] %v385
                %v387 = vld [vmem:[%s335 + $0x188] sm:$0xff]
                %388 = vst [vmem:[%s336 + $0xc8] sm:$0xff] %v387
                %v389 = vld [vmem:[%s335 + $0x190] sm:$0xff]
                %390 = vst [vmem:[%s336 + $0xd0] sm:$0xff] %v389
                %v391 = vld [vmem:[%s335 + $0x198] sm:$0xff]
                %392 = vst [vmem:[%s336 + $0xd8] sm:$0xff] %v391
                %v393 = vld [vmem:[%s335 + $0x1c0] sm:$0xff]
                %394 = vst [vmem:[%s336 + $0xe0] sm:$0xff] %v393
                %v395 = vld [vmem:[%s335 + $0x1c8] sm:$0xff]
                %396 = vst [vmem:[%s336 + $0xe8] sm:$0xff] %v395
                %v397 = vld [vmem:[%s335 + $0x1d0] sm:$0xff]
                %398 = vst [vmem:[%s336 + $0xf0] sm:$0xff] %v397
                %v399 = vld [vmem:[%s335 + $0x1d8] sm:$0xff]
                %400 = vst [vmem:[%s336 + $0xf8] sm:$0xff] %v399
              $region72: #{multiscale_attention_forward.4} parent=66 // loop_footer
                %s334 = sadd.s32 1, %s330
              $region73: #{multiscale_attention_forward.4} parent=66 // loop_footer_branch
                %329 = sbr.rel target = $region69
              $region74: #{multiscale_attention_forward.4} parent=66 // loop_exit
                _
            $region67: #{multiscale_attention_forward.4} parent=62 // pred_fallthru
              _
            // Predicated region
            $region75: #{multiscale_attention_forward.4} parent=62 // pred_check
              _
            $region76: #{multiscale_attention_forward.4} parent=62 // pred_check_branch
              %402 = sbr.rel target = $region78
            $region77: #{multiscale_attention_forward.4} parent=62 // pred_region
              _
            $region78: #{multiscale_attention_forward.4} parent=62 // pred_fallthru
              _
          $region63: #{multiscale_attention_forward.4} parent=58 // pred_fallthru
            _
          %403 = vnop
        $region59: #{multiscale_attention_forward.4} parent=27 // pred_fallthru
          _
      $region28: #{multiscale_attention_forward.4} parent=5 // pred_fallthru
        _
      %p404 = scmp.le.s32.totalorder 1, %s13
      %p405 = scmp.lt.s32.totalorder %s13, 5
      %p406 = pnand %p404, %p405
      %p407 = pneg %p406
      // Predicated region
      $region79: #{multiscale_attention_forward.4} parent=5 // pred_check
        _
      $region80: #{multiscale_attention_forward.4} parent=5 // pred_check_branch
        %409 = sbr.rel (%p406) target = $region82
      $region81: #{multiscale_attention_forward.4} parent=5 // pred_region
        %s410 = ssub.s32 %s13, 1
        // Predicated region
        $region83: #{multiscale_attention_forward.4} parent=81 // pred_check
          %p411 = pneg %p46
        $region84: #{multiscale_attention_forward.4} parent=81 // pred_check_branch
          %413 = sbr.rel (%p411) target = $region86
        $region85: #{multiscale_attention_forward.4} parent=81 // pred_region
          %414 = dma.done [#allocation4], 16
        $region86: #{multiscale_attention_forward.4} parent=81 // pred_fallthru
          _
        %s415 = sand.u32 %s127, 1
        %s416 = sand.u32 %s127, 1
        %s417 = smul.addr %s416, 192
        %s418 = scalar_lea.vmem [#allocation5], %s417
        // Predicated region
        $region87: #{multiscale_attention_forward.4} parent=81 // pred_check
          %p419 = pneg %p140
        $region88: #{multiscale_attention_forward.4} parent=81 // pred_check_branch
          %421 = sbr.rel (%p419) target = $region90
        $region89: #{multiscale_attention_forward.4} parent=81 // pred_region
          _
        $region90: #{multiscale_attention_forward.4} parent=81 // pred_fallthru
          _
        %s422 = sand.u32 %s155, 1
        %s423 = sand.u32 %s155, 1
        %s424 = smul.addr %s423, 256
        %s425 = scalar_lea.vmem [#allocation6], %s424
        // Predicated region
        $region91: #{multiscale_attention_forward.4} parent=81 // pred_check
          %p426 = pneg %p168
        $region92: #{multiscale_attention_forward.4} parent=81 // pred_check_branch
          %428 = sbr.rel (%p426) target = $region94
        $region93: #{multiscale_attention_forward.4} parent=81 // pred_region
          _
        $region94: #{multiscale_attention_forward.4} parent=81 // pred_fallthru
          _
        %429 = sfence
        %p430 = pneg %p46
        %p431 = pneg %p43
        %p432 = pneg %p67
        %p433 = pneg %p64
        %p434 = pneg %p88
        %p435 = pneg %p85
        %p436 = scmp.lt.s32.totalorder %s22, 1
        %s437 = scalar_select %p436, %s22, 1
        %s438 = smul.addr %s437, 32
        %s439 = smul.addr %s438, 8
        %s440 = scalar_lea.vmem %s3, %s439
        %p441 = pneg %p114
        %p442 = pneg %p111
        %s443 = sand.u32 %s127, 1
        %s444 = sand.u32 %s127, 1
        %s445 = smul.addr %s444, 192
        %s446 = scalar_lea.vmem [#allocation5], %s445
        %p447 = pneg %p140
        %p448 = pneg %p137
        %s449 = sand.u32 %s155, 1
        %s450 = sand.u32 %s155, 1
        %s451 = smul.addr %s450, 256
        %s452 = scalar_lea.vmem [#allocation6], %s451
        %p453 = pneg %p168
        %p454 = pneg %p165
        %p455 = pneg %p196
        %p456 = pneg %p193
        %s457 = sand.u32 %s183, 1
        %s458 = sand.u32 %s183, 1
        %s459 = smul.addr %s458, 256
        %s460 = scalar_lea.vmem [#allocation7], %s459
        %p461 = scmp.lt.s32.totalorder %s22, 1
        %s462 = scalar_select %p461, %s22, 1
        %s463 = smul.addr %s462, 32
        %s464 = smul.addr %s463, 8
        %s465 = scalar_lea.vmem %s3, %s464
        %s466 = smul.u32 4, %s23
        %s467 = smul.u32 4, %s23
        %p468 = scmp.eq.s32.totalorder %s23, 0
        // Predicated region
        $region95: #{multiscale_attention_forward.4} parent=81 // pred_check
          %p469 = pneg %p468
        $region96: #{multiscale_attention_forward.4} parent=81 // pred_check_branch
          %471 = sbr.rel (%p469) target = $region98
        $region97: #{multiscale_attention_forward.4} parent=81 // pred_region
          %v472 = vld [vmem:[%s465] sm:$0xff]
          %v473 = vld [vmem:[%s465 + $0x8] sm:$0xff]
          %v474 = vld [vmem:[%s465 + $0x10] sm:$0xff]
          %v475 = vld [vmem:[%s465 + $0x18] sm:$0xff]
          %v476 = vld [vmem:[%s465 + $0x20] sm:$0xff]
          %v477 = vld [vmem:[%s465 + $0x28] sm:$0xff]
          %v478 = vld [vmem:[%s465 + $0x30] sm:$0xff]
          %v479 = vld [vmem:[%s465 + $0x38] sm:$0xff]
          %v480 = vld [vmem:[%s465 + $0x40] sm:$0xff]
          %v481 = vld [vmem:[%s465 + $0x48] sm:$0xff]
          %v482 = vld [vmem:[%s465 + $0x50] sm:$0xff]
          %v483 = vld [vmem:[%s465 + $0x58] sm:$0xff]
          %v484 = vld [vmem:[%s465 + $0x60] sm:$0xff]
          %v485 = vld [vmem:[%s465 + $0x68] sm:$0xff]
          %v486 = vld [vmem:[%s465 + $0x70] sm:$0xff]
          %v487 = vld [vmem:[%s465 + $0x78] sm:$0xff]
          %v488 = vld [vmem:[%s465 + $0x80] sm:$0xff]
          %v489 = vld [vmem:[%s465 + $0x88] sm:$0xff]
          %v490 = vld [vmem:[%s465 + $0x90] sm:$0xff]
          %v491 = vld [vmem:[%s465 + $0x98] sm:$0xff]
          %v492 = vld [vmem:[%s465 + $0xa0] sm:$0xff]
          %v493 = vld [vmem:[%s465 + $0xa8] sm:$0xff]
          %v494 = vld [vmem:[%s465 + $0xb0] sm:$0xff]
          %v495 = vld [vmem:[%s465 + $0xb8] sm:$0xff]
          %v496 = vld [vmem:[%s465 + $0xc0] sm:$0xff]
          %v497 = vld [vmem:[%s465 + $0xc8] sm:$0xff]
          %v498 = vld [vmem:[%s465 + $0xd0] sm:$0xff]
          %v499 = vld [vmem:[%s465 + $0xd8] sm:$0xff]
          %v500 = vld [vmem:[%s465 + $0xe0] sm:$0xff]
          %v501 = vld [vmem:[%s465 + $0xe8] sm:$0xff]
          %v502 = vld [vmem:[%s465 + $0xf0] sm:$0xff]
          %v503 = vld [vmem:[%s465 + $0xf8] sm:$0xff]
          %v504 = vmul.f32 %v488, %v488
          %v505 = vmul.f32 %v489, %v489
          %v506 = vmul.f32 %v490, %v490
          %v507 = vmul.f32 %v491, %v491
          %v508 = vmul.f32 %v492, %v492
          %v509 = vmul.f32 %v493, %v493
          %v510 = vmul.f32 %v494, %v494
          %v511 = vmul.f32 %v495, %v495
          %v512 = vmul.f32 %v496, %v496
          %v513 = vmul.f32 %v497, %v497
          %v514 = vmul.f32 %v498, %v498
          %v515 = vmul.f32 %v499, %v499
          %v516 = vmul.f32 %v500, %v500
          %v517 = vmul.f32 %v501, %v501
          %v518 = vmul.f32 %v502, %v502
          %v519 = vmul.f32 %v503, %v503
          %v520 = vadd.f32 %v504, %v505
          %v521 = vadd.f32 %v520, %v506
          %v522 = vadd.f32 %v521, %v507
          %v523 = vadd.f32 %v522, %v508
          %v524 = vadd.f32 %v523, %v509
          %v525 = vadd.f32 %v524, %v510
          %v526 = vadd.f32 %v525, %v511
          %527 = vadd.xlane.f32.xlu0 %v526
          %v528 = vpop.xlane.xlu0 %527
          %v529 = vadd.f32 %v512, %v513
          %v530 = vadd.f32 %v529, %v514
          %v531 = vadd.f32 %v530, %v515
          %v532 = vadd.f32 %v531, %v516
          %v533 = vadd.f32 %v532, %v517
          %v534 = vadd.f32 %v533, %v518
          %v535 = vadd.f32 %v534, %v519
          %536 = vadd.xlane.f32.xlu0 %v535
          %v537 = vpop.xlane.xlu0 %536
          %v538 = vmax.f32 %v528, 1e-24
          %v539 = vmax.f32 %v537, 1e-24
          %v540 = vrsqrt.pop %v538
          %v541 = vrsqrt.pop %v539
          %v542 = vmul.f32 %v488, %v540
          %v543 = vmul.f32 %v489, %v540
          %v544 = vmul.f32 %v490, %v540
          %v545 = vmul.f32 %v491, %v540
          %v546 = vmul.f32 %v492, %v540
          %v547 = vmul.f32 %v493, %v540
          %v548 = vmul.f32 %v494, %v540
          %v549 = vmul.f32 %v495, %v540
          %v550 = vmul.f32 %v496, %v541
          %v551 = vmul.f32 %v497, %v541
          %v552 = vmul.f32 %v498, %v541
          %v553 = vmul.f32 %v499, %v541
          %v554 = vmul.f32 %v500, %v541
          %v555 = vmul.f32 %v501, %v541
          %v556 = vmul.f32 %v502, %v541
          %v557 = vmul.f32 %v503, %v541
          %v558 = vmul.f32 %v472, %v472
          %v559 = vmul.f32 %v473, %v473
          %v560 = vmul.f32 %v474, %v474
          %v561 = vmul.f32 %v475, %v475
          %v562 = vmul.f32 %v476, %v476
          %v563 = vmul.f32 %v477, %v477
          %v564 = vmul.f32 %v478, %v478
          %v565 = vmul.f32 %v479, %v479
          %v566 = vmul.f32 %v480, %v480
          %v567 = vmul.f32 %v481, %v481
          %v568 = vmul.f32 %v482, %v482
          %v569 = vmul.f32 %v483, %v483
          %v570 = vmul.f32 %v484, %v484
          %v571 = vmul.f32 %v485, %v485
          %v572 = vmul.f32 %v486, %v486
          %v573 = vmul.f32 %v487, %v487
          %v574 = vadd.f32 %v558, %v559
          %v575 = vadd.f32 %v574, %v560
          %v576 = vadd.f32 %v575, %v561
          %v577 = vadd.f32 %v576, %v562
          %v578 = vadd.f32 %v577, %v563
          %v579 = vadd.f32 %v578, %v564
          %v580 = vadd.f32 %v579, %v565
          %581 = vadd.xlane.f32.xlu0 %v580
          %v582 = vpop.xlane.xlu0 %581
          %v583 = vadd.f32 %v566, %v567
          %v584 = vadd.f32 %v583, %v568
          %v585 = vadd.f32 %v584, %v569
          %v586 = vadd.f32 %v585, %v570
          %v587 = vadd.f32 %v586, %v571
          %v588 = vadd.f32 %v587, %v572
          %v589 = vadd.f32 %v588, %v573
          %590 = vadd.xlane.f32.xlu0 %v589
          %v591 = vpop.xlane.xlu0 %590
          %v592 = vmax.f32 %v582, 1e-24
          %v593 = vmax.f32 %v591, 1e-24
          %v594 = vrsqrt.pop %v592
          %v595 = vrsqrt.pop %v593
          %v596 = vmul.f32 %v472, %v594
          %v597 = vmul.f32 %v473, %v594
          %v598 = vmul.f32 %v474, %v594
          %v599 = vmul.f32 %v475, %v594
          %v600 = vmul.f32 %v476, %v594
          %v601 = vmul.f32 %v477, %v594
          %v602 = vmul.f32 %v478, %v594
          %v603 = vmul.f32 %v479, %v594
          %v604 = vmul.f32 %v480, %v595
          %v605 = vmul.f32 %v481, %v595
          %v606 = vmul.f32 %v482, %v595
          %v607 = vmul.f32 %v483, %v595
          %v608 = vmul.f32 %v484, %v595
          %v609 = vmul.f32 %v485, %v595
          %v610 = vmul.f32 %v486, %v595
          %v611 = vmul.f32 %v487, %v595
          %612 = vmatprep.subr.mxu0 %v597
          %613 = vmatpush1.xpose.msra.mxu0 %v596
          %614 = vmatprep.subr.mxu0 %v605
          %615 = vmatpush1.xpose.msra.mxu0 %v604
          %616 = vmatprep.subr.mxu0 0.0
          %617 = vmatpush1.xpose.msra.mxu0 0.0
          %618 = vmatprep.subr.mxu0 0.0
          %619 = vmatpush1.xpose.msra.mxu0 0.0
          %620 = vmatprep.subr.mxu0 0.0
          %621 = vmatpush1.xpose.msra.mxu0 0.0
          %622 = vmatprep.subr.mxu0 0.0
          %623 = vmatpush1.xpose.msra.mxu0 0.0
          %624 = vmatprep.subr.mxu0 0.0
          %625 = vmatpush1.xpose.msra.mxu0 0.0
          %626 = vmatprep.subr.mxu0 0.0
          %627 = vmatpush1.xpose.msra.mxu0 0.0
          %628 = vmatprep.subr.mxu0 0.0
          %629 = vmatpush1.xpose.msra.mxu0 0.0
          %630 = vmatprep.subr.mxu0 0.0
          %631 = vmatpush1.xpose.msra.mxu0 0.0
          %632 = vmatprep.subr.mxu0 0.0
          %633 = vmatpush1.xpose.msra.mxu0 0.0
          %634 = vmatprep.subr.mxu0 0.0
          %635 = vmatpush1.xpose.msra.mxu0 0.0
          %636 = vmatprep.subr.mxu0 0.0
          %637 = vmatpush1.xpose.msra.mxu0 0.0
          %638 = vmatprep.subr.mxu0 0.0
          %639 = vmatpush1.xpose.msra.mxu0 0.0
          %640 = vmatprep.subr.mxu0 0.0
          %641 = vmatpush1.xpose.msra.mxu0 0.0
          %642 = vmatprep.subr.mxu0 0.0
          %643 = vmatpush1.xpose.msra.mxu0 0.0
          %644 = vmatprep.subr.mxu0 0.0
          %645 = vmatpush1.xpose.msra.mxu0 0.0
          %646 = vmatprep.subr.mxu0 0.0
          %647 = vmatpush1.xpose.msra.mxu0 0.0
          %648 = vmatprep.subr.mxu0 0.0
          %649 = vmatpush1.xpose.msra.mxu0 0.0
          %650 = vmatprep.subr.mxu0 0.0
          %651 = vmatpush1.xpose.msra.mxu0 0.0
          %652 = vmatprep.subr.mxu0 0.0
          %653 = vmatpush1.xpose.msra.mxu0 0.0
          %654 = vmatprep.subr.mxu0 0.0
          %655 = vmatpush1.xpose.msra.mxu0 0.0
          %656 = vmatprep.subr.mxu0 0.0
          %657 = vmatpush1.xpose.msra.mxu0 0.0
          %658 = vmatprep.subr.mxu0 0.0
          %659 = vmatpush1.xpose.msra.mxu0 0.0
          %660 = vmatprep.subr.mxu0 0.0
          %661 = vmatpush1.xpose.msra.mxu0 0.0
          %662 = vmatprep.subr.mxu0 0.0
          %663 = vmatpush1.xpose.msra.mxu0 0.0
          %664 = vmatprep.subr.mxu0 0.0
          %665 = vmatpush1.xpose.msra.mxu0 0.0
          %666 = vmatprep.subr.mxu0 0.0
          %667 = vmatpush1.xpose.msra.mxu0 0.0
          %668 = vmatprep.subr.mxu0 0.0
          %669 = vmatpush1.xpose.msra.mxu0 0.0
          %670 = vmatprep.subr.mxu0 0.0
          %671 = vmatpush1.xpose.msra.mxu0 0.0
          %672 = vmatprep.subr.mxu0 0.0
          %673 = vmatpush1.xpose.msra.mxu0 0.0
          %674 = vmatprep.subr.mxu0 0.0
          %675 = vmatpush1.xpose.msra.mxu0 0.0
          %676 = vmatprep.mubr.f32.mxu0 %v543
          %677 = vmatmul.mubr.f32.gmra.mrb[0].mxu0 %v542
          %v678 = vpop.f32.mrb[0].mxu0
          %v679 = vadd.f32 0.0, %v678
          %v680 = vpop.f32.mrb[0].mxu0
          %681 = vmatprep.mubr.f32.mxu0 %v551
          %682 = vmatmul.mubr.f32.gmra.mrb[0].mxu0 %v550
          %v683 = vpop.f32.mrb[0].mxu0
          %v684 = vadd.f32 0.0, %v683
          %v685 = vpop.f32.mrb[0].mxu0
          %686 = vdwg.mxu0
          %687 = vmatprep.subr.mxu0 %v599
          %688 = vmatpush1.xpose.msra.mxu0 %v598
          %689 = vmatprep.subr.mxu0 %v607
          %690 = vmatpush1.xpose.msra.mxu0 %v606
          %691 = vmatprep.subr.mxu0 0.0
          %692 = vmatpush1.xpose.msra.mxu0 0.0
          %693 = vmatprep.subr.mxu0 0.0
          %694 = vmatpush1.xpose.msra.mxu0 0.0
          %695 = vmatprep.subr.mxu0 0.0
          %696 = vmatpush1.xpose.msra.mxu0 0.0
          %697 = vmatprep.subr.mxu0 0.0
          %698 = vmatpush1.xpose.msra.mxu0 0.0
          %699 = vmatprep.subr.mxu0 0.0
          %700 = vmatpush1.xpose.msra.mxu0 0.0
          %701 = vmatprep.subr.mxu0 0.0
          %702 = vmatpush1.xpose.msra.mxu0 0.0
          %703 = vmatprep.subr.mxu0 0.0
          %704 = vmatpush1.xpose.msra.mxu0 0.0
          %705 = vmatprep.subr.mxu0 0.0
          %706 = vmatpush1.xpose.msra.mxu0 0.0
          %707 = vmatprep.subr.mxu0 0.0
          %708 = vmatpush1.xpose.msra.mxu0 0.0
          %709 = vmatprep.subr.mxu0 0.0
          %710 = vmatpush1.xpose.msra.mxu0 0.0
          %711 = vmatprep.subr.mxu0 0.0
          %712 = vmatpush1.xpose.msra.mxu0 0.0
          %713 = vmatprep.subr.mxu0 0.0
          %714 = vmatpush1.xpose.msra.mxu0 0.0
          %715 = vmatprep.subr.mxu0 0.0
          %716 = vmatpush1.xpose.msra.mxu0 0.0
          %717 = vmatprep.subr.mxu0 0.0
          %718 = vmatpush1.xpose.msra.mxu0 0.0
          %719 = vmatprep.subr.mxu0 0.0
          %720 = vmatpush1.xpose.msra.mxu0 0.0
          %721 = vmatprep.subr.mxu0 0.0
          %722 = vmatpush1.xpose.msra.mxu0 0.0
          %723 = vmatprep.subr.mxu0 0.0
          %724 = vmatpush1.xpose.msra.mxu0 0.0
          %725 = vmatprep.subr.mxu0 0.0
          %726 = vmatpush1.xpose.msra.mxu0 0.0
          %727 = vmatprep.subr.mxu0 0.0
          %728 = vmatpush1.xpose.msra.mxu0 0.0
          %729 = vmatprep.subr.mxu0 0.0
          %730 = vmatpush1.xpose.msra.mxu0 0.0
          %731 = vmatprep.subr.mxu0 0.0
          %732 = vmatpush1.xpose.msra.mxu0 0.0
          %733 = vmatprep.subr.mxu0 0.0
          %734 = vmatpush1.xpose.msra.mxu0 0.0
          %735 = vmatprep.subr.mxu0 0.0
          %736 = vmatpush1.xpose.msra.mxu0 0.0
          %737 = vmatprep.subr.mxu0 0.0
          %738 = vmatpush1.xpose.msra.mxu0 0.0
          %739 = vmatprep.subr.mxu0 0.0
          %740 = vmatpush1.xpose.msra.mxu0 0.0
          %741 = vmatprep.subr.mxu0 0.0
          %742 = vmatpush1.xpose.msra.mxu0 0.0
          %743 = vmatprep.subr.mxu0 0.0
          %744 = vmatpush1.xpose.msra.mxu0 0.0
          %745 = vmatprep.subr.mxu0 0.0
          %746 = vmatpush1.xpose.msra.mxu0 0.0
          %747 = vmatprep.subr.mxu0 0.0
          %748 = vmatpush1.xpose.msra.mxu0 0.0
          %749 = vmatprep.subr.mxu0 0.0
          %750 = vmatpush1.xpose.msra.mxu0 0.0
          %751 = vmatprep.mubr.f32.mxu0 %v545
          %752 = vmatmul.mubr.f32.gmra.mrb[0].mxu0 %v544
          %v753 = vpop.f32.mrb[0].mxu0
          %v754 = vadd.f32 %v679, %v753
          %v755 = vpop.f32.mrb[0].mxu0
          %756 = vmatprep.mubr.f32.mxu0 %v553
          %757 = vmatmul.mubr.f32.gmra.mrb[0].mxu0 %v552
          %v758 = vpop.f32.mrb[0].mxu0
          %v759 = vadd.f32 %v684, %v758
          %v760 = vpop.f32.mrb[0].mxu0
          %761 = vdwg.mxu0
          %762 = vmatprep.subr.mxu0 %v601
          %763 = vmatpush1.xpose.msra.mxu0 %v600
          %764 = vmatprep.subr.mxu0 %v609
          %765 = vmatpush1.xpose.msra.mxu0 %v608
          %766 = vmatprep.subr.mxu0 0.0
          %767 = vmatpush1.xpose.msra.mxu0 0.0
          %768 = vmatprep.subr.mxu0 0.0
          %769 = vmatpush1.xpose.msra.mxu0 0.0
          %770 = vmatprep.subr.mxu0 0.0
          %771 = vmatpush1.xpose.msra.mxu0 0.0
          %772 = vmatprep.subr.mxu0 0.0
          %773 = vmatpush1.xpose.msra.mxu0 0.0
          %774 = vmatprep.subr.mxu0 0.0
          %775 = vmatpush1.xpose.msra.mxu0 0.0
          %776 = vmatprep.subr.mxu0 0.0
          %777 = vmatpush1.xpose.msra.mxu0 0.0
          %778 = vmatprep.subr.mxu0 0.0
          %779 = vmatpush1.xpose.msra.mxu0 0.0
          %780 = vmatprep.subr.mxu0 0.0
          %781 = vmatpush1.xpose.msra.mxu0 0.0
          %782 = vmatprep.subr.mxu0 0.0
          %783 = vmatpush1.xpose.msra.mxu0 0.0
          %784 = vmatprep.subr.mxu0 0.0
          %785 = vmatpush1.xpose.msra.mxu0 0.0
          %786 = vmatprep.subr.mxu0 0.0
          %787 = vmatpush1.xpose.msra.mxu0 0.0
          %788 = vmatprep.subr.mxu0 0.0
          %789 = vmatpush1.xpose.msra.mxu0 0.0
          %790 = vmatprep.subr.mxu0 0.0
          %791 = vmatpush1.xpose.msra.mxu0 0.0
          %792 = vmatprep.subr.mxu0 0.0
          %793 = vmatpush1.xpose.msra.mxu0 0.0
          %794 = vmatprep.subr.mxu0 0.0
          %795 = vmatpush1.xpose.msra.mxu0 0.0
          %796 = vmatprep.subr.mxu0 0.0
          %797 = vmatpush1.xpose.msra.mxu0 0.0
          %798 = vmatprep.subr.mxu0 0.0
          %799 = vmatpush1.xpose.msra.mxu0 0.0
          %800 = vmatprep.subr.mxu0 0.0
          %801 = vmatpush1.xpose.msra.mxu0 0.0
          %802 = vmatprep.subr.mxu0 0.0
          %803 = vmatpush1.xpose.msra.mxu0 0.0
          %804 = vmatprep.subr.mxu0 0.0
          %805 = vmatpush1.xpose.msra.mxu0 0.0
          %806 = vmatprep.subr.mxu0 0.0
          %807 = vmatpush1.xpose.msra.mxu0 0.0
          %808 = vmatprep.subr.mxu0 0.0
          %809 = vmatpush1.xpose.msra.mxu0 0.0
          %810 = vmatprep.subr.mxu0 0.0
          %811 = vmatpush1.xpose.msra.mxu0 0.0
          %812 = vmatprep.subr.mxu0 0.0
          %813 = vmatpush1.xpose.msra.mxu0 0.0
          %814 = vmatprep.subr.mxu0 0.0
          %815 = vmatpush1.xpose.msra.mxu0 0.0
          %816 = vmatprep.subr.mxu0 0.0
          %817 = vmatpush1.xpose.msra.mxu0 0.0
          %818 = vmatprep.subr.mxu0 0.0
          %819 = vmatpush1.xpose.msra.mxu0 0.0
          %820 = vmatprep.subr.mxu0 0.0
          %821 = vmatpush1.xpose.msra.mxu0 0.0
          %822 = vmatprep.subr.mxu0 0.0
          %823 = vmatpush1.xpose.msra.mxu0 0.0
          %824 = vmatprep.subr.mxu0 0.0
          %825 = vmatpush1.xpose.msra.mxu0 0.0
          %826 = vmatprep.mubr.f32.mxu0 %v547
          %827 = vmatmul.mubr.f32.gmra.mrb[0].mxu0 %v546
          %v828 = vpop.f32.mrb[0].mxu0
          %v829 = vadd.f32 %v754, %v828
          %v830 = vpop.f32.mrb[0].mxu0
          %831 = vmatprep.mubr.f32.mxu0 %v555
          %832 = vmatmul.mubr.f32.gmra.mrb[0].mxu0 %v554
          %v833 = vpop.f32.mrb[0].mxu0
          %v834 = vadd.f32 %v759, %v833
          %v835 = vpop.f32.mrb[0].mxu0
          %836 = vdwg.mxu0
          %837 = vmatprep.subr.mxu0 %v603
          %838 = vmatpush1.xpose.msra.mxu0 %v602
          %839 = vmatprep.subr.mxu0 %v611
          %840 = vmatpush1.xpose.msra.mxu0 %v610
          %841 = vmatprep.subr.mxu0 0.0
          %842 = vmatpush1.xpose.msra.mxu0 0.0
          %843 = vmatprep.subr.mxu0 0.0
          %844 = vmatpush1.xpose.msra.mxu0 0.0
          %845 = vmatprep.subr.mxu0 0.0
          %846 = vmatpush1.xpose.msra.mxu0 0.0
          %847 = vmatprep.subr.mxu0 0.0
          %848 = vmatpush1.xpose.msra.mxu0 0.0
          %849 = vmatprep.subr.mxu0 0.0
          %850 = vmatpush1.xpose.msra.mxu0 0.0
          %851 = vmatprep.subr.mxu0 0.0
          %852 = vmatpush1.xpose.msra.mxu0 0.0
          %853 = vmatprep.subr.mxu0 0.0
          %854 = vmatpush1.xpose.msra.mxu0 0.0
          %855 = vmatprep.subr.mxu0 0.0
          %856 = vmatpush1.xpose.msra.mxu0 0.0
          %857 = vmatprep.subr.mxu0 0.0
          %858 = vmatpush1.xpose.msra.mxu0 0.0
          %859 = vmatprep.subr.mxu0 0.0
          %860 = vmatpush1.xpose.msra.mxu0 0.0
          %861 = vmatprep.subr.mxu0 0.0
          %862 = vmatpush1.xpose.msra.mxu0 0.0
          %863 = vmatprep.subr.mxu0 0.0
          %864 = vmatpush1.xpose.msra.mxu0 0.0
          %865 = vmatprep.subr.mxu0 0.0
          %866 = vmatpush1.xpose.msra.mxu0 0.0
          %867 = vmatprep.subr.mxu0 0.0
          %868 = vmatpush1.xpose.msra.mxu0 0.0
          %869 = vmatprep.subr.mxu0 0.0
          %870 = vmatpush1.xpose.msra.mxu0 0.0
          %871 = vmatprep.subr.mxu0 0.0
          %872 = vmatpush1.xpose.msra.mxu0 0.0
          %873 = vmatprep.subr.mxu0 0.0
          %874 = vmatpush1.xpose.msra.mxu0 0.0
          %875 = vmatprep.subr.mxu0 0.0
          %876 = vmatpush1.xpose.msra.mxu0 0.0
          %877 = vmatprep.subr.mxu0 0.0
          %878 = vmatpush1.xpose.msra.mxu0 0.0
          %879 = vmatprep.subr.mxu0 0.0
          %880 = vmatpush1.xpose.msra.mxu0 0.0
          %881 = vmatprep.subr.mxu0 0.0
          %882 = vmatpush1.xpose.msra.mxu0 0.0
          %883 = vmatprep.subr.mxu0 0.0
          %884 = vmatpush1.xpose.msra.mxu0 0.0
          %885 = vmatprep.subr.mxu0 0.0
          %886 = vmatpush1.xpose.msra.mxu0 0.0
          %887 = vmatprep.subr.mxu0 0.0
          %888 = vmatpush1.xpose.msra.mxu0 0.0
          %889 = vmatprep.subr.mxu0 0.0
          %890 = vmatpush1.xpose.msra.mxu0 0.0
          %891 = vmatprep.subr.mxu0 0.0
          %892 = vmatpush1.xpose.msra.mxu0 0.0
          %893 = vmatprep.subr.mxu0 0.0
          %894 = vmatpush1.xpose.msra.mxu0 0.0
          %895 = vmatprep.subr.mxu0 0.0
          %896 = vmatpush1.xpose.msra.mxu0 0.0
          %897 = vmatprep.subr.mxu0 0.0
          %898 = vmatpush1.xpose.msra.mxu0 0.0
          %899 = vmatprep.subr.mxu0 0.0
          %900 = vmatpush1.xpose.msra.mxu0 0.0
          %901 = vmatprep.mubr.f32.mxu0 %v549
          %902 = vmatmul.mubr.f32.gmra.mrb[0].mxu0 %v548
          %v903 = vpop.f32.mrb[0].mxu0
          %v904 = vadd.f32 %v829, %v903
          %v905 = vpop.f32.mrb[0].mxu0
          %906 = vmatprep.mubr.f32.mxu0 %v557
          %907 = vmatmul.mubr.f32.gmra.mrb[0].mxu0 %v556
          %v908 = vpop.f32.mrb[0].mxu0
          %v909 = vadd.f32 %v834, %v908
          %v910 = vpop.f32.mrb[0].mxu0
          %911 = vdwg.mxu0
          %s912 = sld [smem:[#allocation3]]
          %v913 = vstv %s912
          %v914 = vmul.f32 %v904, %v913
          %v915 = vmul.f32 %v909, %v913
          %vm916 = vcmask 130048
          %v917 = vsel %vm916, %v914, -inf
          %918 = vmax.xlane.f32.xlu0 %v917
          %v919 = vpop.xlane.xlu0 %918
          %v920 = vsel %vm916, %v915, -inf
          %921 = vmax.xlane.f32.xlu0 %v920
          %v922 = vpop.xlane.xlu0 %921
          %v923 = vsub.f32 %v914, %v919
          %v924 = vsub.f32 %v915, %v922
          %v925 = vmul.f32 %v923, 1.442695
          %v926 = vpow.pop %v925
          %v927 = vmul.f32 %v924, 1.442695
          %v928 = vpow.pop %v927
          %v929 = vsel %vm916, %v926, 0.0
          %930 = vadd.xlane.f32.xlu0 %v929
          %v931 = vpop.xlane.xlu0 %930
          %v932 = vsel %vm916, %v928, 0.0
          %933 = vadd.xlane.f32.xlu0 %v932
          %v934 = vpop.xlane.xlu0 %933
          %v935 = vrcp.pop %v931
          %v936 = vmul.f32 %v926, %v935
          %v937 = vrcp.pop %v934
          %v938 = vmul.f32 %v928, %v937
          %939 = vst.msk [vmem:[#allocation2] sm:$0xff] %vm916, %v936
          %940 = vst.msk [vmem:[#allocation2 + $0x8] sm:$0xff] %vm916, %v938
          %v941 = vld [vmem:[%s418] sm:$0xff]
          %v942 = vld [vmem:[%s418 + $0x8] sm:$0xff]
          %v943 = vld [vmem:[%s418 + $0x10] sm:$0xff]
          %v944 = vld [vmem:[%s418 + $0x18] sm:$0xff]
          %v945 = vld [vmem:[%s418 + $0x20] sm:$0xff]
          %v946 = vld [vmem:[%s418 + $0x28] sm:$0xff]
          %v947 = vld [vmem:[%s418 + $0x30] sm:$0xff]
          %v948 = vld [vmem:[%s418 + $0x38] sm:$0xff]
          %v949 = vmul.f32 %v945, %v945
          %v950 = vmul.f32 %v946, %v946
          %v951 = vmul.f32 %v947, %v947
          %v952 = vmul.f32 %v948, %v948
          %v953 = vadd.f32 %v949, %v950
          %954 = vadd.xlane.f32.xlu0 %v953
          %v955 = vpop.xlane.xlu0 %954
          %v956 = vadd.f32 %v951, %v952
          %957 = vadd.xlane.f32.xlu0 %v956
          %v958 = vpop.xlane.xlu0 %957
          %v959 = vmax.f32 %v955, 1e-24
          %v960 = vmax.f32 %v958, 1e-24
          %v961 = vrsqrt.pop %v959
          %v962 = vrsqrt.pop %v960
          %v963 = vmul.f32 %v945, %v961
          %v964 = vmul.f32 %v946, %v961
          %v965 = vmul.f32 %v947, %v962
          %v966 = vmul.f32 %v948, %v962
          %v967 = vmul.f32 %v941, %v941
          %v968 = vmul.f32 %v942, %v942
          %v969 = vmul.f32 %v943, %v943
          %v970 = vmul.f32 %v944, %v944
          %v971 = vadd.f32 %v967, %v968
          %972 = vadd.xlane.f32.xlu0 %v971
          %v973 = vpop.xlane.xlu0 %972
          %v974 = vadd.f32 %v969, %v970
          %975 = vadd.xlane.f32.xlu0 %v974
          %v976 = vpop.xlane.xlu0 %975
          %v977 = vmax.f32 %v973, 1e-24
          %v978 = vmax.f32 %v976, 1e-24
          %v979 = vrsqrt.pop %v977
          %v980 = vrsqrt.pop %v978
          %v981 = vmul.f32 %v941, %v979
          %v982 = vmul.f32 %v942, %v979
          %v983 = vmul.f32 %v943, %v980
          %v984 = vmul.f32 %v944, %v980
          %985 = vmatprep.subr.mxu0 %v982
          %986 = vmatpush1.xpose.msra.mxu0 %v981
          %987 = vmatprep.subr.mxu0 %v984
          %988 = vmatpush1.xpose.msra.mxu0 %v983
          %989 = vmatprep.subr.mxu0 0.0
          %990 = vmatpush1.xpose.msra.mxu0 0.0
          %991 = vmatprep.subr.mxu0 0.0
          %992 = vmatpush1.xpose.msra.mxu0 0.0
          %993 = vmatprep.subr.mxu0 0.0
          %994 = vmatpush1.xpose.msra.mxu0 0.0
          %995 = vmatprep.subr.mxu0 0.0
          %996 = vmatpush1.xpose.msra.mxu0 0.0
          %997 = vmatprep.subr.mxu0 0.0
          %998 = vmatpush1.xpose.msra.mxu0 0.0
          %999 = vmatprep.subr.mxu0 0.0
          %1000 = vmatpush1.xpose.msra.mxu0 0.0
          %1001 = vmatprep.subr.mxu0 0.0
          %1002 = vmatpush1.xpose.msra.mxu0 0.0
          %1003 = vmatprep.subr.mxu0 0.0
          %1004 = vmatpush1.xpose.msra.mxu0 0.0
          %1005 = vmatprep.subr.mxu0 0.0
          %1006 = vmatpush1.xpose.msra.mxu0 0.0
          %1007 = vmatprep.subr.mxu0 0.0
          %1008 = vmatpush1.xpose.msra.mxu0 0.0
          %1009 = vmatprep.subr.mxu0 0.0
          %1010 = vmatpush1.xpose.msra.mxu0 0.0
          %1011 = vmatprep.subr.mxu0 0.0
          %1012 = vmatpush1.xpose.msra.mxu0 0.0
          %1013 = vmatprep.subr.mxu0 0.0
          %1014 = vmatpush1.xpose.msra.mxu0 0.0
          %1015 = vmatprep.subr.mxu0 0.0
          %1016 = vmatpush1.xpose.msra.mxu0 0.0
          %1017 = vmatprep.subr.mxu0 0.0
          %1018 = vmatpush1.xpose.msra.mxu0 0.0
          %1019 = vmatprep.subr.mxu0 0.0
          %1020 = vmatpush1.xpose.msra.mxu0 0.0
          %1021 = vmatprep.subr.mxu0 0.0
          %1022 = vmatpush1.xpose.msra.mxu0 0.0
          %1023 = vmatprep.subr.mxu0 0.0
          %1024 = vmatpush1.xpose.msra.mxu0 0.0
          %1025 = vmatprep.subr.mxu0 0.0
          %1026 = vmatpush1.xpose.msra.mxu0 0.0
          %1027 = vmatprep.subr.mxu0 0.0
          %1028 = vmatpush1.xpose.msra.mxu0 0.0
          %1029 = vmatprep.subr.mxu0 0.0
          %1030 = vmatpush1.xpose.msra.mxu0 0.0
          %1031 = vmatprep.subr.mxu0 0.0
          %1032 = vmatpush1.xpose.msra.mxu0 0.0
          %1033 = vmatprep.subr.mxu0 0.0
          %1034 = vmatpush1.xpose.msra.mxu0 0.0
          %1035 = vmatprep.subr.mxu0 0.0
          %1036 = vmatpush1.xpose.msra.mxu0 0.0
          %1037 = vmatprep.subr.mxu0 0.0
          %1038 = vmatpush1.xpose.msra.mxu0 0.0
          %1039 = vmatprep.subr.mxu0 0.0
          %1040 = vmatpush1.xpose.msra.mxu0 0.0
          %1041 = vmatprep.subr.mxu0 0.0
          %1042 = vmatpush1.xpose.msra.mxu0 0.0
          %1043 = vmatprep.subr.mxu0 0.0
          %1044 = vmatpush1.xpose.msra.mxu0 0.0
          %1045 = vmatprep.subr.mxu0 0.0
          %1046 = vmatpush1.xpose.msra.mxu0 0.0
          %1047 = vmatprep.subr.mxu0 0.0
          %1048 = vmatpush1.xpose.msra.mxu0 0.0
          %1049 = vmatprep.mubr.f32.mxu0 %v964
          %1050 = vmatmul.mubr.f32.gmra.mrb[0].mxu0 %v963
          %v1051 = vpop.f32.mrb[0].mxu0
          %v1052 = vadd.f32 0.0, %v1051
          %v1053 = vpop.f32.mrb[0].mxu0
          %1054 = vmatprep.mubr.f32.mxu0 %v966
          %1055 = vmatmul.mubr.f32.gmra.mrb[0].mxu0 %v965
          %v1056 = vpop.f32.mrb[0].mxu0
          %v1057 = vadd.f32 0.0, %v1056
          %v1058 = vpop.f32.mrb[0].mxu0
          %1059 = vdwg.mxu0
          %s1060 = sld [smem:[#allocation3 + $0x1]]
          %v1061 = vstv %s1060
          %v1062 = vmul.f32 %v1052, %v1061
          %v1063 = vmul.f32 %v1057, %v1061
          %v1064 = vsel %vm916, %v1062, -inf
          %1065 = vmax.xlane.f32.xlu0 %v1064
          %v1066 = vpop.xlane.xlu0 %1065
          %v1067 = vsel %vm916, %v1063, -inf
          %1068 = vmax.xlane.f32.xlu0 %v1067
          %v1069 = vpop.xlane.xlu0 %1068
          %v1070 = vsub.f32 %v1062, %v1066
          %v1071 = vsub.f32 %v1063, %v1069
          %v1072 = vmul.f32 %v1070, 1.442695
          %v1073 = vpow.pop %v1072
          %v1074 = vmul.f32 %v1071, 1.442695
          %v1075 = vpow.pop %v1074
          %v1076 = vsel %vm916, %v1073, 0.0
          %1077 = vadd.xlane.f32.xlu0 %v1076
          %v1078 = vpop.xlane.xlu0 %1077
          %v1079 = vsel %vm916, %v1075, 0.0
          %1080 = vadd.xlane.f32.xlu0 %v1079
          %v1081 = vpop.xlane.xlu0 %1080
          %v1082 = vrcp.pop %v1078
          %v1083 = vmul.f32 %v1073, %v1082
          %v1084 = vrcp.pop %v1081
          %v1085 = vmul.f32 %v1075, %v1084
          %s1086 = scalar_lea.vmem [#allocation2], 16
          %1087 = vst.msk [vmem:[%s1086] sm:$0xff] %vm916, %v1083
          %1088 = vst.msk [vmem:[%s1086 + $0x8] sm:$0xff] %vm916, %v1085
          %s1089 = scalar_lea.vmem %s418, 64 [#allocation5]
          %v1090 = vld [vmem:[%s1089] sm:$0xff]
          %v1091 = vld [vmem:[%s1089 + $0x8] sm:$0xff]
          %v1092 = vld [vmem:[%s1089 + $0x10] sm:$0xff]
          %v1093 = vld [vmem:[%s1089 + $0x18] sm:$0xff]
          %v1094 = vld [vmem:[%s1089 + $0x20] sm:$0xff]
          %v1095 = vld [vmem:[%s1089 + $0x28] sm:$0xff]
          %v1096 = vld [vmem:[%s1089 + $0x30] sm:$0xff]
          %v1097 = vld [vmem:[%s1089 + $0x38] sm:$0xff]
          %v1098 = vmul.f32 %v1094, %v1094
          %v1099 = vmul.f32 %v1095, %v1095
          %v1100 = vmul.f32 %v1096, %v1096
          %v1101 = vmul.f32 %v1097, %v1097
          %v1102 = vadd.f32 %v1098, %v1099
          %1103 = vadd.xlane.f32.xlu0 %v1102
          %v1104 = vpop.xlane.xlu0 %1103
          %v1105 = vadd.f32 %v1100, %v1101
          %1106 = vadd.xlane.f32.xlu0 %v1105
          %v1107 = vpop.xlane.xlu0 %1106
          %v1108 = vmax.f32 %v1104, 1e-24
          %v1109 = vmax.f32 %v1107, 1e-24
          %v1110 = vrsqrt.pop %v1108
          %v1111 = vrsqrt.pop %v1109
          %v1112 = vmul.f32 %v1094, %v1110
          %v1113 = vmul.f32 %v1095, %v1110
          %v1114 = vmul.f32 %v1096, %v1111
          %v1115 = vmul.f32 %v1097, %v1111
          %v1116 = vmul.f32 %v1090, %v1090
          %v1117 = vmul.f32 %v1091, %v1091
          %v1118 = vmul.f32 %v1092, %v1092
          %v1119 = vmul.f32 %v1093, %v1093
          %v1120 = vadd.f32 %v1116, %v1117
          %1121 = vadd.xlane.f32.xlu0 %v1120
          %v1122 = vpop.xlane.xlu0 %1121
          %v1123 = vadd.f32 %v1118, %v1119
          %1124 = vadd.xlane.f32.xlu0 %v1123
          %v1125 = vpop.xlane.xlu0 %1124
          %v1126 = vmax.f32 %v1122, 1e-24
          %v1127 = vmax.f32 %v1125, 1e-24
          %v1128 = vrsqrt.pop %v1126
          %v1129 = vrsqrt.pop %v1127
          %v1130 = vmul.f32 %v1090, %v1128
          %v1131 = vmul.f32 %v1091, %v1128
          %v1132 = vmul.f32 %v1092, %v1129
          %v1133 = vmul.f32 %v1093, %v1129
          %1134 = vmatprep.subr.mxu0 %v1131
          %1135 = vmatpush1.xpose.msra.mxu0 %v1130
          %1136 = vmatprep.subr.mxu0 %v1133
          %1137 = vmatpush1.xpose.msra.mxu0 %v1132
          %1138 = vmatprep.subr.mxu0 0.0
          %1139 = vmatpush1.xpose.msra.mxu0 0.0
          %1140 = vmatprep.subr.mxu0 0.0
          %1141 = vmatpush1.xpose.msra.mxu0 0.0
          %1142 = vmatprep.subr.mxu0 0.0
          %1143 = vmatpush1.xpose.msra.mxu0 0.0
          %1144 = vmatprep.subr.mxu0 0.0
          %1145 = vmatpush1.xpose.msra.mxu0 0.0
          %1146 = vmatprep.subr.mxu0 0.0
          %1147 = vmatpush1.xpose.msra.mxu0 0.0
          %1148 = vmatprep.subr.mxu0 0.0
          %1149 = vmatpush1.xpose.msra.mxu0 0.0
          %1150 = vmatprep.subr.mxu0 0.0
          %1151 = vmatpush1.xpose.msra.mxu0 0.0
          %1152 = vmatprep.subr.mxu0 0.0
          %1153 = vmatpush1.xpose.msra.mxu0 0.0
          %1154 = vmatprep.subr.mxu0 0.0
          %1155 = vmatpush1.xpose.msra.mxu0 0.0
          %1156 = vmatprep.subr.mxu0 0.0
          %1157 = vmatpush1.xpose.msra.mxu0 0.0
          %1158 = vmatprep.subr.mxu0 0.0
          %1159 = vmatpush1.xpose.msra.mxu0 0.0
          %1160 = vmatprep.subr.mxu0 0.0
          %1161 = vmatpush1.xpose.msra.mxu0 0.0
          %1162 = vmatprep.subr.mxu0 0.0
          %1163 = vmatpush1.xpose.msra.mxu0 0.0
          %1164 = vmatprep.subr.mxu0 0.0
          %1165 = vmatpush1.xpose.msra.mxu0 0.0
          %1166 = vmatprep.subr.mxu0 0.0
          %1167 = vmatpush1.xpose.msra.mxu0 0.0
          %1168 = vmatprep.subr.mxu0 0.0
          %1169 = vmatpush1.xpose.msra.mxu0 0.0
          %1170 = vmatprep.subr.mxu0 0.0
          %1171 = vmatpush1.xpose.msra.mxu0 0.0
          %1172 = vmatprep.subr.mxu0 0.0
          %1173 = vmatpush1.xpose.msra.mxu0 0.0
          %1174 = vmatprep.subr.mxu0 0.0
          %1175 = vmatpush1.xpose.msra.mxu0 0.0
          %1176 = vmatprep.subr.mxu0 0.0
          %1177 = vmatpush1.xpose.msra.mxu0 0.0
          %1178 = vmatprep.subr.mxu0 0.0
          %1179 = vmatpush1.xpose.msra.mxu0 0.0
          %1180 = vmatprep.subr.mxu0 0.0
          %1181 = vmatpush1.xpose.msra.mxu0 0.0
          %1182 = vmatprep.subr.mxu0 0.0
          %1183 = vmatpush1.xpose.msra.mxu0 0.0
          %1184 = vmatprep.subr.mxu0 0.0
          %1185 = vmatpush1.xpose.msra.mxu0 0.0
          %1186 = vmatprep.subr.mxu0 0.0
          %1187 = vmatpush1.xpose.msra.mxu0 0.0
          %1188 = vmatprep.subr.mxu0 0.0
          %1189 = vmatpush1.xpose.msra.mxu0 0.0
          %1190 = vmatprep.subr.mxu0 0.0
          %1191 = vmatpush1.xpose.msra.mxu0 0.0
          %1192 = vmatprep.subr.mxu0 0.0
          %1193 = vmatpush1.xpose.msra.mxu0 0.0
          %1194 = vmatprep.subr.mxu0 0.0
          %1195 = vmatpush1.xpose.msra.mxu0 0.0
          %1196 = vmatprep.subr.mxu0 0.0
          %1197 = vmatpush1.xpose.msra.mxu0 0.0
          %1198 = vmatprep.mubr.f32.mxu0 %v1113
          %1199 = vmatmul.mubr.f32.gmra.mrb[0].mxu0 %v1112
          %v1200 = vpop.f32.mrb[0].mxu0
          %v1201 = vadd.f32 0.0, %v1200
          %v1202 = vpop.f32.mrb[0].mxu0
          %1203 = vmatprep.mubr.f32.mxu0 %v1115
          %1204 = vmatmul.mubr.f32.gmra.mrb[0].mxu0 %v1114
          %v1205 = vpop.f32.mrb[0].mxu0
          %v1206 = vadd.f32 0.0, %v1205
          %v1207 = vpop.f32.mrb[0].mxu0
          %1208 = vdwg.mxu0
          %s1209 = sld [smem:[#allocation3 + $0x2]]
          %v1210 = vstv %s1209
          %v1211 = vmul.f32 %v1201, %v1210
          %v1212 = vmul.f32 %v1206, %v1210
          %v1213 = vsel %vm916, %v1211, -inf
          %1214 = vmax.xlane.f32.xlu0 %v1213
          %v1215 = vpop.xlane.xlu0 %1214
          %v1216 = vsel %vm916, %v1212, -inf
          %1217 = vmax.xlane.f32.xlu0 %v1216
          %v1218 = vpop.xlane.xlu0 %1217
          %v1219 = vsub.f32 %v1211, %v1215
          %v1220 = vsub.f32 %v1212, %v1218
          %v1221 = vmul.f32 %v1219, 1.442695
          %v1222 = vpow.pop %v1221
          %v1223 = vmul.f32 %v1220, 1.442695
          %v1224 = vpow.pop %v1223
          %v1225 = vsel %vm916, %v1222, 0.0
          %1226 = vadd.xlane.f32.xlu0 %v1225
          %v1227 = vpop.xlane.xlu0 %1226
          %v1228 = vsel %vm916, %v1224, 0.0
          %1229 = vadd.xlane.f32.xlu0 %v1228
          %v1230 = vpop.xlane.xlu0 %1229
          %v1231 = vrcp.pop %v1227
          %v1232 = vmul.f32 %v1222, %v1231
          %v1233 = vrcp.pop %v1230
          %v1234 = vmul.f32 %v1224, %v1233
          %s1235 = scalar_lea.vmem [#allocation2], 32
          %1236 = vst.msk [vmem:[%s1235] sm:$0xff] %vm916, %v1232
          %1237 = vst.msk [vmem:[%s1235 + $0x8] sm:$0xff] %vm916, %v1234
          %s1238 = scalar_lea.vmem %s418, 128 [#allocation5]
          %v1239 = vld [vmem:[%s1238] sm:$0xff]
          %v1240 = vld [vmem:[%s1238 + $0x8] sm:$0xff]
          %v1241 = vld [vmem:[%s1238 + $0x10] sm:$0xff]
          %v1242 = vld [vmem:[%s1238 + $0x18] sm:$0xff]
          %v1243 = vld [vmem:[%s1238 + $0x20] sm:$0xff]
          %v1244 = vld [vmem:[%s1238 + $0x28] sm:$0xff]
          %v1245 = vld [vmem:[%s1238 + $0x30] sm:$0xff]
          %v1246 = vld [vmem:[%s1238 + $0x38] sm:$0xff]
          %v1247 = vmul.f32 %v1243, %v1243
          %v1248 = vmul.f32 %v1244, %v1244
          %v1249 = vmul.f32 %v1245, %v1245
          %v1250 = vmul.f32 %v1246, %v1246
          %v1251 = vadd.f32 %v1247, %v1248
          %1252 = vadd.xlane.f32.xlu0 %v1251
          %v1253 = vpop.xlane.xlu0 %1252
          %v1254 = vadd.f32 %v1249, %v1250
          %1255 = vadd.xlane.f32.xlu0 %v1254
          %v1256 = vpop.xlane.xlu0 %1255
          %v1257 = vmax.f32 %v1253, 1e-24
          %v1258 = vmax.f32 %v1256, 1e-24
          %v1259 = vrsqrt.pop %v1257
          %v1260 = vrsqrt.pop %v1258
          %v1261 = vmul.f32 %v1243, %v1259
          %v1262 = vmul.f32 %v1244, %v1259
          %v1263 = vmul.f32 %v1245, %v1260
          %v1264 = vmul.f32 %v1246, %v1260
          %v1265 = vmul.f32 %v1239, %v1239
          %v1266 = vmul.f32 %v1240, %v1240
          %v1267 = vmul.f32 %v1241, %v1241
          %v1268 = vmul.f32 %v1242, %v1242
          %v1269 = vadd.f32 %v1265, %v1266
          %1270 = vadd.xlane.f32.xlu0 %v1269
          %v1271 = vpop.xlane.xlu0 %1270
          %v1272 = vadd.f32 %v1267, %v1268
          %1273 = vadd.xlane.f32.xlu0 %v1272
          %v1274 = vpop.xlane.xlu0 %1273
          %v1275 = vmax.f32 %v1271, 1e-24
          %v1276 = vmax.f32 %v1274, 1e-24
          %v1277 = vrsqrt.pop %v1275
          %v1278 = vrsqrt.pop %v1276
          %v1279 = vmul.f32 %v1239, %v1277
          %v1280 = vmul.f32 %v1240, %v1277
          %v1281 = vmul.f32 %v1241, %v1278
          %v1282 = vmul.f32 %v1242, %v1278
          %1283 = vmatprep.subr.mxu0 %v1280
          %1284 = vmatpush1.xpose.msra.mxu0 %v1279
          %1285 = vmatprep.subr.mxu0 %v1282
          %1286 = vmatpush1.xpose.msra.mxu0 %v1281
          %1287 = vmatprep.subr.mxu0 0.0
          %1288 = vmatpush1.xpose.msra.mxu0 0.0
          %1289 = vmatprep.subr.mxu0 0.0
          %1290 = vmatpush1.xpose.msra.mxu0 0.0
          %1291 = vmatprep.subr.mxu0 0.0
          %1292 = vmatpush1.xpose.msra.mxu0 0.0
          %1293 = vmatprep.subr.mxu0 0.0
          %1294 = vmatpush1.xpose.msra.mxu0 0.0
          %1295 = vmatprep.subr.mxu0 0.0
          %1296 = vmatpush1.xpose.msra.mxu0 0.0
          %1297 = vmatprep.subr.mxu0 0.0
          %1298 = vmatpush1.xpose.msra.mxu0 0.0
          %1299 = vmatprep.subr.mxu0 0.0
          %1300 = vmatpush1.xpose.msra.mxu0 0.0
          %1301 = vmatprep.subr.mxu0 0.0
          %1302 = vmatpush1.xpose.msra.mxu0 0.0
          %1303 = vmatprep.subr.mxu0 0.0
          %1304 = vmatpush1.xpose.msra.mxu0 0.0
          %1305 = vmatprep.subr.mxu0 0.0
          %1306 = vmatpush1.xpose.msra.mxu0 0.0
          %1307 = vmatprep.subr.mxu0 0.0
          %1308 = vmatpush1.xpose.msra.mxu0 0.0
          %1309 = vmatprep.subr.mxu0 0.0
          %1310 = vmatpush1.xpose.msra.mxu0 0.0
          %1311 = vmatprep.subr.mxu0 0.0
          %1312 = vmatpush1.xpose.msra.mxu0 0.0
          %1313 = vmatprep.subr.mxu0 0.0
          %1314 = vmatpush1.xpose.msra.mxu0 0.0
          %1315 = vmatprep.subr.mxu0 0.0
          %1316 = vmatpush1.xpose.msra.mxu0 0.0
          %1317 = vmatprep.subr.mxu0 0.0
          %1318 = vmatpush1.xpose.msra.mxu0 0.0
          %1319 = vmatprep.subr.mxu0 0.0
          %1320 = vmatpush1.xpose.msra.mxu0 0.0
          %1321 = vmatprep.subr.mxu0 0.0
          %1322 = vmatpush1.xpose.msra.mxu0 0.0
          %1323 = vmatprep.subr.mxu0 0.0
          %1324 = vmatpush1.xpose.msra.mxu0 0.0
          %1325 = vmatprep.subr.mxu0 0.0
          %1326 = vmatpush1.xpose.msra.mxu0 0.0
          %1327 = vmatprep.subr.mxu0 0.0
          %1328 = vmatpush1.xpose.msra.mxu0 0.0
          %1329 = vmatprep.subr.mxu0 0.0
          %1330 = vmatpush1.xpose.msra.mxu0 0.0
          %1331 = vmatprep.subr.mxu0 0.0
          %1332 = vmatpush1.xpose.msra.mxu0 0.0
          %1333 = vmatprep.subr.mxu0 0.0
          %1334 = vmatpush1.xpose.msra.mxu0 0.0
          %1335 = vmatprep.subr.mxu0 0.0
          %1336 = vmatpush1.xpose.msra.mxu0 0.0
          %1337 = vmatprep.subr.mxu0 0.0
          %1338 = vmatpush1.xpose.msra.mxu0 0.0
          %1339 = vmatprep.subr.mxu0 0.0
          %1340 = vmatpush1.xpose.msra.mxu0 0.0
          %1341 = vmatprep.subr.mxu0 0.0
          %1342 = vmatpush1.xpose.msra.mxu0 0.0
          %1343 = vmatprep.subr.mxu0 0.0
          %1344 = vmatpush1.xpose.msra.mxu0 0.0
          %1345 = vmatprep.subr.mxu0 0.0
          %1346 = vmatpush1.xpose.msra.mxu0 0.0
          %1347 = vmatprep.mubr.f32.mxu0 %v1262
          %1348 = vmatmul.mubr.f32.gmra.mrb[0].mxu0 %v1261
          %v1349 = vpop.f32.mrb[0].mxu0
          %v1350 = vadd.f32 0.0, %v1349
          %v1351 = vpop.f32.mrb[0].mxu0
          %1352 = vmatprep.mubr.f32.mxu0 %v1264
          %1353 = vmatmul.mubr.f32.gmra.mrb[0].mxu0 %v1263
          %v1354 = vpop.f32.mrb[0].mxu0
          %v1355 = vadd.f32 0.0, %v1354
          %v1356 = vpop.f32.mrb[0].mxu0
          %1357 = vdwg.mxu0
          %s1358 = sld [smem:[#allocation3 + $0x3]]
          %v1359 = vstv %s1358
          %v1360 = vmul.f32 %v1350, %v1359
          %v1361 = vmul.f32 %v1355, %v1359
          %v1362 = vsel %vm916, %v1360, -inf
          %1363 = vmax.xlane.f32.xlu0 %v1362
          %v1364 = vpop.xlane.xlu0 %1363
          %v1365 = vsel %vm916, %v1361, -inf
          %1366 = vmax.xlane.f32.xlu0 %v1365
          %v1367 = vpop.xlane.xlu0 %1366
          %v1368 = vsub.f32 %v1360, %v1364
          %v1369 = vsub.f32 %v1361, %v1367
          %v1370 = vmul.f32 %v1368, 1.442695
          %v1371 = vpow.pop %v1370
          %v1372 = vmul.f32 %v1369, 1.442695
          %v1373 = vpow.pop %v1372
          %v1374 = vsel %vm916, %v1371, 0.0
          %1375 = vadd.xlane.f32.xlu0 %v1374
          %v1376 = vpop.xlane.xlu0 %1375
          %v1377 = vsel %vm916, %v1373, 0.0
          %1378 = vadd.xlane.f32.xlu0 %v1377
          %v1379 = vpop.xlane.xlu0 %1378
          %v1380 = vrcp.pop %v1376
          %v1381 = vmul.f32 %v1371, %v1380
          %v1382 = vrcp.pop %v1379
          %v1383 = vmul.f32 %v1373, %v1382
          %s1384 = scalar_lea.vmem [#allocation2], 48
          %1385 = vst.msk [vmem:[%s1384] sm:$0xff] %vm916, %v1381
          %1386 = vst.msk [vmem:[%s1384 + $0x8] sm:$0xff] %vm916, %v1383
        $region98: #{multiscale_attention_forward.4} parent=81 // pred_fallthru
          _
        %v1387 = vld [vmem:[%s425] sm:$0xff]
        %v1388 = vld [vmem:[%s425 + $0x8] sm:$0xff]
        %v1389 = vld [vmem:[%s425 + $0x10] sm:$0xff]
        %v1390 = vld [vmem:[%s425 + $0x18] sm:$0xff]
        %v1391 = vld [vmem:[%s425 + $0x20] sm:$0xff]
        %v1392 = vld [vmem:[%s425 + $0x28] sm:$0xff]
        %v1393 = vld [vmem:[%s425 + $0x30] sm:$0xff]
        %v1394 = vld [vmem:[%s425 + $0x38] sm:$0xff]
        %v1395 = vld [vmem:[%s425 + $0x40] sm:$0xff]
        %v1396 = vld [vmem:[%s425 + $0x48] sm:$0xff]
        %v1397 = vld [vmem:[%s425 + $0x50] sm:$0xff]
        %v1398 = vld [vmem:[%s425 + $0x58] sm:$0xff]
        %v1399 = vld [vmem:[%s425 + $0x60] sm:$0xff]
        %v1400 = vld [vmem:[%s425 + $0x68] sm:$0xff]
        %v1401 = vld [vmem:[%s425 + $0x70] sm:$0xff]
        %v1402 = vld [vmem:[%s425 + $0x78] sm:$0xff]
        %v1403 = vld [vmem:[%s425 + $0x80] sm:$0xff]
        %v1404 = vld [vmem:[%s425 + $0x88] sm:$0xff]
        %v1405 = vld [vmem:[%s425 + $0x90] sm:$0xff]
        %v1406 = vld [vmem:[%s425 + $0x98] sm:$0xff]
        %v1407 = vld [vmem:[%s425 + $0xa0] sm:$0xff]
        %v1408 = vld [vmem:[%s425 + $0xa8] sm:$0xff]
        %v1409 = vld [vmem:[%s425 + $0xb0] sm:$0xff]
        %v1410 = vld [vmem:[%s425 + $0xb8] sm:$0xff]
        %v1411 = vld [vmem:[%s425 + $0xc0] sm:$0xff]
        %v1412 = vld [vmem:[%s425 + $0xc8] sm:$0xff]
        %v1413 = vld [vmem:[%s425 + $0xd0] sm:$0xff]
        %v1414 = vld [vmem:[%s425 + $0xd8] sm:$0xff]
        %v1415 = vld [vmem:[%s425 + $0xe0] sm:$0xff]
        %v1416 = vld [vmem:[%s425 + $0xe8] sm:$0xff]
        %v1417 = vld [vmem:[%s425 + $0xf0] sm:$0xff]
        %v1418 = vld [vmem:[%s425 + $0xf8] sm:$0xff]
        %v1419 = vld [vmem:[%s1] sm:$0xff]
        %v1420 = vld [vmem:[%s1 + $0x8] sm:$0xff]
        %v1421 = vld [vmem:[%s1 + $0x10] sm:$0xff]
        %v1422 = vld [vmem:[%s1 + $0x18] sm:$0xff]
        %v1423 = vld [vmem:[%s1 + $0x20] sm:$0xff]
        %v1424 = vld [vmem:[%s1 + $0x28] sm:$0xff]
        %v1425 = vld [vmem:[%s1 + $0x30] sm:$0xff]
        %v1426 = vld [vmem:[%s1 + $0x38] sm:$0xff]
        %v1427 = vld [vmem:[%s2] sm:$0xff]
        %v1428 = vld [vmem:[%s2 + $0x8] sm:$0xff]
        %v1429 = vld [vmem:[%s2 + $0x10] sm:$0xff]
        %v1430 = vld [vmem:[%s2 + $0x18] sm:$0xff]
        %v1431 = vld [vmem:[%s2 + $0x20] sm:$0xff]
        %v1432 = vld [vmem:[%s2 + $0x28] sm:$0xff]
        %v1433 = vld [vmem:[%s2 + $0x30] sm:$0xff]
        %v1434 = vld [vmem:[%s2 + $0x38] sm:$0xff]
        %1436 = vset.pattern.permute.xlu0 0
        %1437 = vperm.xlu0 %1436, %v1427
        %v1438 = vpop.permute.xlu0 %1437
        %1441 = vset.pattern.permute.xlu0 0
        %1442 = vperm.xlu0 %1441, %v1428
        %v1443 = vpop.permute.xlu0 %1442
        %1446 = vset.pattern.permute.xlu0 0
        %1447 = vperm.xlu0 %1446, %v1429
        %v1448 = vpop.permute.xlu0 %1447
        %1451 = vset.pattern.permute.xlu0 0
        %1452 = vperm.xlu0 %1451, %v1430
        %v1453 = vpop.permute.xlu0 %1452
        %1456 = vset.pattern.permute.xlu0 0
        %1457 = vperm.xlu0 %1456, %v1431
        %v1458 = vpop.permute.xlu0 %1457
        %1461 = vset.pattern.permute.xlu0 0
        %1462 = vperm.xlu0 %1461, %v1432
        %v1463 = vpop.permute.xlu0 %1462
        %1466 = vset.pattern.permute.xlu0 0
        %1467 = vperm.xlu0 %1466, %v1433
        %v1468 = vpop.permute.xlu0 %1467
        %1471 = vset.pattern.permute.xlu0 0
        %1472 = vperm.xlu0 %1471, %v1434
        %v1473 = vpop.permute.xlu0 %1472
        %vm1475 = vcmask 523264
        %v1477 = vsel %vm1475, %v1419, 0
        %v1480 = vsel %vm1475, %v1420, 0
        %v1483 = vsel %vm1475, %v1421, 0
        %v1486 = vsel %vm1475, %v1422, 0
        %v1489 = vsel %vm1475, %v1423, 0
        %v1492 = vsel %vm1475, %v1424, 0
        %v1495 = vsel %vm1475, %v1425, 0
        %v1498 = vsel %vm1475, %v1426, 0
        %1500 = vmatprep.subr.mxu0 %v1388
        %1501 = vmatpush1.msra.mxu0 %v1387
        %1502 = vmatprep.subr.mxu0 %v1392
        %1503 = vmatpush1.msra.mxu0 %v1391
        %1504 = vmatprep.subr.mxu0 %v1396
        %1505 = vmatpush1.msra.mxu0 %v1395
        %1506 = vmatprep.subr.mxu0 %v1400
        %1507 = vmatpush1.msra.mxu0 %v1399
        %1508 = vmatprep.subr.mxu0 %v1404
        %1509 = vmatpush1.msra.mxu0 %v1403
        %1510 = vmatprep.subr.mxu0 %v1408
        %1511 = vmatpush1.msra.mxu0 %v1407
        %1512 = vmatprep.subr.mxu0 %v1412
        %1513 = vmatpush1.msra.mxu0 %v1411
        %1514 = vmatprep.subr.mxu0 %v1416
        %1515 = vmatpush1.msra.mxu0 %v1415
        %1516 = vmatprep.subr.mxu0 0.0
        %1517 = vmatpush1.msra.mxu0 0.0
        %1518 = vmatprep.subr.mxu0 0.0
        %1519 = vmatpush1.msra.mxu0 0.0
        %1520 = vmatprep.subr.mxu0 0.0
        %1521 = vmatpush1.msra.mxu0 0.0
        %1522 = vmatprep.subr.mxu0 0.0
        %1523 = vmatpush1.msra.mxu0 0.0
        %1524 = vmatprep.subr.mxu0 0.0
        %1525 = vmatpush1.msra.mxu0 0.0
        %1526 = vmatprep.subr.mxu0 0.0
        %1527 = vmatpush1.msra.mxu0 0.0
        %1528 = vmatprep.subr.mxu0 0.0
        %1529 = vmatpush1.msra.mxu0 0.0
        %1530 = vmatprep.subr.mxu0 0.0
        %1531 = vmatpush1.msra.mxu0 0.0
        %1532 = vmatprep.subr.mxu0 0.0
        %1533 = vmatpush1.msra.mxu0 0.0
        %1534 = vmatprep.subr.mxu0 0.0
        %1535 = vmatpush1.msra.mxu0 0.0
        %1536 = vmatprep.subr.mxu0 0.0
        %1537 = vmatpush1.msra.mxu0 0.0
        %1538 = vmatprep.subr.mxu0 0.0
        %1539 = vmatpush1.msra.mxu0 0.0
        %1540 = vmatprep.subr.mxu0 0.0
        %1541 = vmatpush1.msra.mxu0 0.0
        %1542 = vmatprep.subr.mxu0 0.0
        %1543 = vmatpush1.msra.mxu0 0.0
        %1544 = vmatprep.subr.mxu0 0.0
        %1545 = vmatpush1.msra.mxu0 0.0
        %1546 = vmatprep.subr.mxu0 0.0
        %1547 = vmatpush1.msra.mxu0 0.0
        %1548 = vmatprep.subr.mxu0 0.0
        %1549 = vmatpush1.msra.mxu0 0.0
        %1550 = vmatprep.subr.mxu0 0.0
        %1551 = vmatpush1.msra.mxu0 0.0
        %1552 = vmatprep.subr.mxu0 0.0
        %1553 = vmatpush1.msra.mxu0 0.0
        %1554 = vmatprep.subr.mxu0 0.0
        %1555 = vmatpush1.msra.mxu0 0.0
        %1556 = vmatprep.subr.mxu0 0.0
        %1557 = vmatpush1.msra.mxu0 0.0
        %1558 = vmatprep.subr.mxu0 0.0
        %1559 = vmatpush1.msra.mxu0 0.0
        %1560 = vmatprep.subr.mxu0 0.0
        %1561 = vmatpush1.msra.mxu0 0.0
        %1562 = vmatprep.subr.mxu0 0.0
        %1563 = vmatpush1.msra.mxu0 0.0
        %1564 = vmatprep.mubr.f32.mxu0 0.0
        %1565 = vmatmul.mubr.f32.gmra.mrb[0].mxu0 %v1477
        %v1566 = vpop.f32.mrb[0].mxu0
        %v1567 = vadd.f32 %v1438, %v1566
        %v1568 = vpop.f32.mrb[0].mxu0
        %v1569 = vadd.f32 %v1438, %v1568
        %1570 = vmatprep.mubr.f32.mxu0 0.0
        %1571 = vmatmul.mubr.f32.gmra.mrb[0].mxu0 %v1480
        %v1572 = vpop.f32.mrb[0].mxu0
        %v1573 = vadd.f32 %v1443, %v1572
        %v1574 = vpop.f32.mrb[0].mxu0
        %v1575 = vadd.f32 %v1443, %v1574
        %1576 = vmatprep.mubr.f32.mxu0 0.0
        %1577 = vmatmul.mubr.f32.gmra.mrb[0].mxu0 %v1483
        %v1578 = vpop.f32.mrb[0].mxu0
        %v1579 = vadd.f32 %v1448, %v1578
        %v1580 = vpop.f32.mrb[0].mxu0
        %v1581 = vadd.f32 %v1448, %v1580
        %1582 = vmatprep.mubr.f32.mxu0 0.0
        %1583 = vmatmul.mubr.f32.gmra.mrb[0].mxu0 %v1486
        %v1584 = vpop.f32.mrb[0].mxu0
        %v1585 = vadd.f32 %v1453, %v1584
        %v1586 = vpop.f32.mrb[0].mxu0
        %v1587 = vadd.f32 %v1453, %v1586
        %1588 = vmatprep.mubr.f32.mxu0 0.0
        %1589 = vmatmul.mubr.f32.gmra.mrb[0].mxu0 %v1489
        %v1590 = vpop.f32.mrb[0].mxu0
        %v1591 = vadd.f32 %v1458, %v1590
        %v1592 = vpop.f32.mrb[0].mxu0
        %v1593 = vadd.f32 %v1458, %v1592
        %1594 = vmatprep.mubr.f32.mxu0 0.0
        %1595 = vmatmul.mubr.f32.gmra.mrb[0].mxu0 %v1492
        %v1596 = vpop.f32.mrb[0].mxu0
        %v1597 = vadd.f32 %v1463, %v1596
        %v1598 = vpop.f32.mrb[0].mxu0
        %v1599 = vadd.f32 %v1463, %v1598
        %1600 = vmatprep.mubr.f32.mxu0 0.0
        %1601 = vmatmul.mubr.f32.gmra.mrb[0].mxu0 %v1495
        %v1602 = vpop.f32.mrb[0].mxu0
        %v1603 = vadd.f32 %v1468, %v1602
        %v1604 = vpop.f32.mrb[0].mxu0
        %v1605 = vadd.f32 %v1468, %v1604
        %1606 = vmatprep.mubr.f32.mxu0 0.0
        %1607 = vmatmul.mubr.f32.gmra.mrb[0].mxu0 %v1498
        %v1608 = vpop.f32.mrb[0].mxu0
        %v1609 = vadd.f32 %v1473, %v1608
        %v1610 = vpop.f32.mrb[0].mxu0
        %v1611 = vadd.f32 %v1473, %v1610
        %1612 = vdwg.mxu0
        %1613 = vmatprep.subr.mxu0 %v1390
        %1614 = vmatpush1.msra.mxu0 %v1389
        %1615 = vmatprep.subr.mxu0 %v1394
        %1616 = vmatpush1.msra.mxu0 %v1393
        %1617 = vmatprep.subr.mxu0 %v1398
        %1618 = vmatpush1.msra.mxu0 %v1397
        %1619 = vmatprep.subr.mxu0 %v1402
        %1620 = vmatpush1.msra.mxu0 %v1401
        %1621 = vmatprep.subr.mxu0 %v1406
        %1622 = vmatpush1.msra.mxu0 %v1405
        %1623 = vmatprep.subr.mxu0 %v1410
        %1624 = vmatpush1.msra.mxu0 %v1409
        %1625 = vmatprep.subr.mxu0 %v1414
        %1626 = vmatpush1.msra.mxu0 %v1413
        %1627 = vmatprep.subr.mxu0 %v1418
        %1628 = vmatpush1.msra.mxu0 %v1417
        %1629 = vmatprep.subr.mxu0 0.0
        %1630 = vmatpush1.msra.mxu0 0.0
        %1631 = vmatprep.subr.mxu0 0.0
        %1632 = vmatpush1.msra.mxu0 0.0
        %1633 = vmatprep.subr.mxu0 0.0
        %1634 = vmatpush1.msra.mxu0 0.0
        %1635 = vmatprep.subr.mxu0 0.0
        %1636 = vmatpush1.msra.mxu0 0.0
        %1637 = vmatprep.subr.mxu0 0.0
        %1638 = vmatpush1.msra.mxu0 0.0
        %1639 = vmatprep.subr.mxu0 0.0
        %1640 = vmatpush1.msra.mxu0 0.0
        %1641 = vmatprep.subr.mxu0 0.0
        %1642 = vmatpush1.msra.mxu0 0.0
        %1643 = vmatprep.subr.mxu0 0.0
        %1644 = vmatpush1.msra.mxu0 0.0
        %1645 = vmatprep.subr.mxu0 0.0
        %1646 = vmatpush1.msra.mxu0 0.0
        %1647 = vmatprep.subr.mxu0 0.0
        %1648 = vmatpush1.msra.mxu0 0.0
        %1649 = vmatprep.subr.mxu0 0.0
        %1650 = vmatpush1.msra.mxu0 0.0
        %1651 = vmatprep.subr.mxu0 0.0
        %1652 = vmatpush1.msra.mxu0 0.0
        %1653 = vmatprep.subr.mxu0 0.0
        %1654 = vmatpush1.msra.mxu0 0.0
        %1655 = vmatprep.subr.mxu0 0.0
        %1656 = vmatpush1.msra.mxu0 0.0
        %1657 = vmatprep.subr.mxu0 0.0
        %1658 = vmatpush1.msra.mxu0 0.0
        %1659 = vmatprep.subr.mxu0 0.0
        %1660 = vmatpush1.msra.mxu0 0.0
        %1661 = vmatprep.subr.mxu0 0.0
        %1662 = vmatpush1.msra.mxu0 0.0
        %1663 = vmatprep.subr.mxu0 0.0
        %1664 = vmatpush1.msra.mxu0 0.0
        %1665 = vmatprep.subr.mxu0 0.0
        %1666 = vmatpush1.msra.mxu0 0.0
        %1667 = vmatprep.subr.mxu0 0.0
        %1668 = vmatpush1.msra.mxu0 0.0
        %1669 = vmatprep.subr.mxu0 0.0
        %1670 = vmatpush1.msra.mxu0 0.0
        %1671 = vmatprep.subr.mxu0 0.0
        %1672 = vmatpush1.msra.mxu0 0.0
        %1673 = vmatprep.subr.mxu0 0.0
        %1674 = vmatpush1.msra.mxu0 0.0
        %1675 = vmatprep.subr.mxu0 0.0
        %1676 = vmatpush1.msra.mxu0 0.0
        %1677 = vmatprep.mubr.f32.mxu0 0.0
        %1678 = vmatmul.mubr.f32.gmra.mrb[0].mxu0 %v1477
        %v1679 = vpop.f32.mrb[0].mxu0
        %v1680 = vadd.f32 %v1438, %v1679
        %v1681 = vpop.f32.mrb[0].mxu0
        %v1682 = vadd.f32 %v1438, %v1681
        %1683 = vmatprep.mubr.f32.mxu0 0.0
        %1684 = vmatmul.mubr.f32.gmra.mrb[0].mxu0 %v1480
        %v1685 = vpop.f32.mrb[0].mxu0
        %v1686 = vadd.f32 %v1443, %v1685
        %v1687 = vpop.f32.mrb[0].mxu0
        %v1688 = vadd.f32 %v1443, %v1687
        %1689 = vmatprep.mubr.f32.mxu0 0.0
        %1690 = vmatmul.mubr.f32.gmra.mrb[0].mxu0 %v1483
        %v1691 = vpop.f32.mrb[0].mxu0
        %v1692 = vadd.f32 %v1448, %v1691
        %v1693 = vpop.f32.mrb[0].mxu0
        %v1694 = vadd.f32 %v1448, %v1693
        %1695 = vmatprep.mubr.f32.mxu0 0.0
        %1696 = vmatmul.mubr.f32.gmra.mrb[0].mxu0 %v1486
        %v1697 = vpop.f32.mrb[0].mxu0
        %v1698 = vadd.f32 %v1453, %v1697
        %v1699 = vpop.f32.mrb[0].mxu0
        %v1700 = vadd.f32 %v1453, %v1699
        %1701 = vmatprep.mubr.f32.mxu0 0.0
        %1702 = vmatmul.mubr.f32.gmra.mrb[0].mxu0 %v1489
        %v1703 = vpop.f32.mrb[0].mxu0
        %v1704 = vadd.f32 %v1458, %v1703
        %v1705 = vpop.f32.mrb[0].mxu0
        %v1706 = vadd.f32 %v1458, %v1705
        %1707 = vmatprep.mubr.f32.mxu0 0.0
        %1708 = vmatmul.mubr.f32.gmra.mrb[0].mxu0 %v1492
        %v1709 = vpop.f32.mrb[0].mxu0
        %v1710 = vadd.f32 %v1463, %v1709
        %v1711 = vpop.f32.mrb[0].mxu0
        %v1712 = vadd.f32 %v1463, %v1711
        %1713 = vmatprep.mubr.f32.mxu0 0.0
        %1714 = vmatmul.mubr.f32.gmra.mrb[0].mxu0 %v1495
        %v1715 = vpop.f32.mrb[0].mxu0
        %v1716 = vadd.f32 %v1468, %v1715
        %v1717 = vpop.f32.mrb[0].mxu0
        %v1718 = vadd.f32 %v1468, %v1717
        %1719 = vmatprep.mubr.f32.mxu0 0.0
        %1720 = vmatmul.mubr.f32.gmra.mrb[0].mxu0 %v1498
        %v1721 = vpop.f32.mrb[0].mxu0
        %v1722 = vadd.f32 %v1473, %v1721
        %v1723 = vpop.f32.mrb[0].mxu0
        %v1724 = vadd.f32 %v1473, %v1723
        %1725 = vdwg.mxu0
        %v1726 = vld [vmem:[#allocation2] sm:$0xff]
        %v1727 = vld [vmem:[#allocation2 + $0x8] sm:$0xff]
        %vm1728 = vcmask 130048
        %v1730 = vsel %vm1728, %v1726, 0
        %v1733 = vsel %vm1728, %v1727, 0
        %1735 = vmatprep.subr.mxu0 %v1569
        %1736 = vmatpush1.msra.mxu0 %v1567
        %1737 = vmatprep.subr.mxu0 %v1575
        %1738 = vmatpush1.msra.mxu0 %v1573
        %1739 = vmatprep.subr.mxu0 0.0
        %1740 = vmatpush1.msra.mxu0 0.0
        %1741 = vmatprep.subr.mxu0 0.0
        %1742 = vmatpush1.msra.mxu0 0.0
        %1743 = vmatprep.subr.mxu0 0.0
        %1744 = vmatpush1.msra.mxu0 0.0
        %1745 = vmatprep.subr.mxu0 0.0
        %1746 = vmatpush1.msra.mxu0 0.0
        %1747 = vmatprep.subr.mxu0 0.0
        %1748 = vmatpush1.msra.mxu0 0.0
        %1749 = vmatprep.subr.mxu0 0.0
        %1750 = vmatpush1.msra.mxu0 0.0
        %1751 = vmatprep.subr.mxu0 0.0
        %1752 = vmatpush1.msra.mxu0 0.0
        %1753 = vmatprep.subr.mxu0 0.0
        %1754 = vmatpush1.msra.mxu0 0.0
        %1755 = vmatprep.subr.mxu0 0.0
        %1756 = vmatpush1.msra.mxu0 0.0
        %1757 = vmatprep.subr.mxu0 0.0
        %1758 = vmatpush1.msra.mxu0 0.0
        %1759 = vmatprep.subr.mxu0 0.0
        %1760 = vmatpush1.msra.mxu0 0.0
        %1761 = vmatprep.subr.mxu0 0.0
        %1762 = vmatpush1.msra.mxu0 0.0
        %1763 = vmatprep.subr.mxu0 0.0
        %1764 = vmatpush1.msra.mxu0 0.0
        %1765 = vmatprep.subr.mxu0 0.0
        %1766 = vmatpush1.msra.mxu0 0.0
        %1767 = vmatprep.subr.mxu0 0.0
        %1768 = vmatpush1.msra.mxu0 0.0
        %1769 = vmatprep.subr.mxu0 0.0
        %1770 = vmatpush1.msra.mxu0 0.0
        %1771 = vmatprep.subr.mxu0 0.0
        %1772 = vmatpush1.msra.mxu0 0.0
        %1773 = vmatprep.subr.mxu0 0.0
        %1774 = vmatpush1.msra.mxu0 0.0
        %1775 = vmatprep.subr.mxu0 0.0
        %1776 = vmatpush1.msra.mxu0 0.0
        %1777 = vmatprep.subr.mxu0 0.0
        %1778 = vmatpush1.msra.mxu0 0.0
        %1779 = vmatprep.subr.mxu0 0.0
        %1780 = vmatpush1.msra.mxu0 0.0
        %1781 = vmatprep.subr.mxu0 0.0
        %1782 = vmatpush1.msra.mxu0 0.0
        %1783 = vmatprep.subr.mxu0 0.0
        %1784 = vmatpush1.msra.mxu0 0.0
        %1785 = vmatprep.subr.mxu0 0.0
        %1786 = vmatpush1.msra.mxu0 0.0
        %1787 = vmatprep.subr.mxu0 0.0
        %1788 = vmatpush1.msra.mxu0 0.0
        %1789 = vmatprep.subr.mxu0 0.0
        %1790 = vmatpush1.msra.mxu0 0.0
        %1791 = vmatprep.subr.mxu0 0.0
        %1792 = vmatpush1.msra.mxu0 0.0
        %1793 = vmatprep.subr.mxu0 0.0
        %1794 = vmatpush1.msra.mxu0 0.0
        %1795 = vmatprep.subr.mxu0 0.0
        %1796 = vmatpush1.msra.mxu0 0.0
        %1797 = vmatprep.subr.mxu0 0.0
        %1798 = vmatpush1.msra.mxu0 0.0
        %1799 = vmatprep.mubr.f32.mxu0 0.0
        %1800 = vmatmul.mubr.f32.gmra.mrb[0].mxu0 %v1730
        %v1801 = vpop.f32.mrb[0].mxu0
        %v1802 = vadd.f32 0.0, %v1801
        %v1803 = vpop.f32.mrb[0].mxu0
        %v1804 = vadd.f32 0.0, %v1803
        %1805 = vmatprep.mubr.f32.mxu0 0.0
        %1806 = vmatmul.mubr.f32.gmra.mrb[0].mxu0 %v1733
        %v1807 = vpop.f32.mrb[0].mxu0
        %v1808 = vadd.f32 0.0, %v1807
        %v1809 = vpop.f32.mrb[0].mxu0
        %v1810 = vadd.f32 0.0, %v1809
        %1811 = vdwg.mxu0
        %1812 = vmatprep.subr.mxu0 %v1682
        %1813 = vmatpush1.msra.mxu0 %v1680
        %1814 = vmatprep.subr.mxu0 %v1688
        %1815 = vmatpush1.msra.mxu0 %v1686
        %1816 = vmatprep.subr.mxu0 0.0
        %1817 = vmatpush1.msra.mxu0 0.0
        %1818 = vmatprep.subr.mxu0 0.0
        %1819 = vmatpush1.msra.mxu0 0.0
        %1820 = vmatprep.subr.mxu0 0.0
        %1821 = vmatpush1.msra.mxu0 0.0
        %1822 = vmatprep.subr.mxu0 0.0
        %1823 = vmatpush1.msra.mxu0 0.0
        %1824 = vmatprep.subr.mxu0 0.0
        %1825 = vmatpush1.msra.mxu0 0.0
        %1826 = vmatprep.subr.mxu0 0.0
        %1827 = vmatpush1.msra.mxu0 0.0
        %1828 = vmatprep.subr.mxu0 0.0
        %1829 = vmatpush1.msra.mxu0 0.0
        %1830 = vmatprep.subr.mxu0 0.0
        %1831 = vmatpush1.msra.mxu0 0.0
        %1832 = vmatprep.subr.mxu0 0.0
        %1833 = vmatpush1.msra.mxu0 0.0
        %1834 = vmatprep.subr.mxu0 0.0
        %1835 = vmatpush1.msra.mxu0 0.0
        %1836 = vmatprep.subr.mxu0 0.0
        %1837 = vmatpush1.msra.mxu0 0.0
        %1838 = vmatprep.subr.mxu0 0.0
        %1839 = vmatpush1.msra.mxu0 0.0
        %1840 = vmatprep.subr.mxu0 0.0
        %1841 = vmatpush1.msra.mxu0 0.0
        %1842 = vmatprep.subr.mxu0 0.0
        %1843 = vmatpush1.msra.mxu0 0.0
        %1844 = vmatprep.subr.mxu0 0.0
        %1845 = vmatpush1.msra.mxu0 0.0
        %1846 = vmatprep.subr.mxu0 0.0
        %1847 = vmatpush1.msra.mxu0 0.0
        %1848 = vmatprep.subr.mxu0 0.0
        %1849 = vmatpush1.msra.mxu0 0.0
        %1850 = vmatprep.subr.mxu0 0.0
        %1851 = vmatpush1.msra.mxu0 0.0
        %1852 = vmatprep.subr.mxu0 0.0
        %1853 = vmatpush1.msra.mxu0 0.0
        %1854 = vmatprep.subr.mxu0 0.0
        %1855 = vmatpush1.msra.mxu0 0.0
        %1856 = vmatprep.subr.mxu0 0.0
        %1857 = vmatpush1.msra.mxu0 0.0
        %1858 = vmatprep.subr.mxu0 0.0
        %1859 = vmatpush1.msra.mxu0 0.0
        %1860 = vmatprep.subr.mxu0 0.0
        %1861 = vmatpush1.msra.mxu0 0.0
        %1862 = vmatprep.subr.mxu0 0.0
        %1863 = vmatpush1.msra.mxu0 0.0
        %1864 = vmatprep.subr.mxu0 0.0
        %1865 = vmatpush1.msra.mxu0 0.0
        %1866 = vmatprep.subr.mxu0 0.0
        %1867 = vmatpush1.msra.mxu0 0.0
        %1868 = vmatprep.subr.mxu0 0.0
        %1869 = vmatpush1.msra.mxu0 0.0
        %1870 = vmatprep.subr.mxu0 0.0
        %1871 = vmatpush1.msra.mxu0 0.0
        %1872 = vmatprep.subr.mxu0 0.0
        %1873 = vmatpush1.msra.mxu0 0.0
        %1874 = vmatprep.subr.mxu0 0.0
        %1875 = vmatpush1.msra.mxu0 0.0
        %1876 = vmatprep.mubr.f32.mxu0 0.0
        %1877 = vmatmul.mubr.f32.gmra.mrb[0].mxu0 %v1730
        %v1878 = vpop.f32.mrb[0].mxu0
        %v1879 = vadd.f32 0.0, %v1878
        %v1880 = vpop.f32.mrb[0].mxu0
        %v1881 = vadd.f32 0.0, %v1880
        %1882 = vmatprep.mubr.f32.mxu0 0.0
        %1883 = vmatmul.mubr.f32.gmra.mrb[0].mxu0 %v1733
        %v1884 = vpop.f32.mrb[0].mxu0
        %v1885 = vadd.f32 0.0, %v1884
        %v1886 = vpop.f32.mrb[0].mxu0
        %v1887 = vadd.f32 0.0, %v1886
        %1888 = vdwg.mxu0
        %1889 = vst [vmem:[%s460] sm:$0xff] %v1802
        %1890 = vst [vmem:[%s460 + $0x8] sm:$0xff] %v1804
        %1891 = vst [vmem:[%s460 + $0x10] sm:$0xff] %v1879
        %1892 = vst [vmem:[%s460 + $0x18] sm:$0xff] %v1881
        %1893 = vst [vmem:[%s460 + $0x20] sm:$0xff] %v1808
        %1894 = vst [vmem:[%s460 + $0x28] sm:$0xff] %v1810
        %1895 = vst [vmem:[%s460 + $0x30] sm:$0xff] %v1885
        %1896 = vst [vmem:[%s460 + $0x38] sm:$0xff] %v1887
        %s1897 = scalar_lea.vmem [#allocation2], 16
        %v1898 = vld [vmem:[%s1897] sm:$0xff]
        %v1899 = vld [vmem:[%s1897 + $0x8] sm:$0xff]
        %v1901 = vsel %vm1728, %v1898, 0
        %v1904 = vsel %vm1728, %v1899, 0
        %1906 = vmatprep.subr.mxu0 %v1581
        %1907 = vmatpush1.msra.mxu0 %v1579
        %1908 = vmatprep.subr.mxu0 %v1587
        %1909 = vmatpush1.msra.mxu0 %v1585
        %1910 = vmatprep.subr.mxu0 0.0
        %1911 = vmatpush1.msra.mxu0 0.0
        %1912 = vmatprep.subr.mxu0 0.0
        %1913 = vmatpush1.msra.mxu0 0.0
        %1914 = vmatprep.subr.mxu0 0.0
        %1915 = vmatpush1.msra.mxu0 0.0
        %1916 = vmatprep.subr.mxu0 0.0
        %1917 = vmatpush1.msra.mxu0 0.0
        %1918 = vmatprep.subr.mxu0 0.0
        %1919 = vmatpush1.msra.mxu0 0.0
        %1920 = vmatprep.subr.mxu0 0.0
        %1921 = vmatpush1.msra.mxu0 0.0
        %1922 = vmatprep.subr.mxu0 0.0
        %1923 = vmatpush1.msra.mxu0 0.0
        %1924 = vmatprep.subr.mxu0 0.0
        %1925 = vmatpush1.msra.mxu0 0.0
        %1926 = vmatprep.subr.mxu0 0.0
        %1927 = vmatpush1.msra.mxu0 0.0
        %1928 = vmatprep.subr.mxu0 0.0
        %1929 = vmatpush1.msra.mxu0 0.0
        %1930 = vmatprep.subr.mxu0 0.0
        %1931 = vmatpush1.msra.mxu0 0.0
        %1932 = vmatprep.subr.mxu0 0.0
        %1933 = vmatpush1.msra.mxu0 0.0
        %1934 = vmatprep.subr.mxu0 0.0
        %1935 = vmatpush1.msra.mxu0 0.0
        %1936 = vmatprep.subr.mxu0 0.0
        %1937 = vmatpush1.msra.mxu0 0.0
        %1938 = vmatprep.subr.mxu0 0.0
        %1939 = vmatpush1.msra.mxu0 0.0
        %1940 = vmatprep.subr.mxu0 0.0
        %1941 = vmatpush1.msra.mxu0 0.0
        %1942 = vmatprep.subr.mxu0 0.0
        %1943 = vmatpush1.msra.mxu0 0.0
        %1944 = vmatprep.subr.mxu0 0.0
        %1945 = vmatpush1.msra.mxu0 0.0
        %1946 = vmatprep.subr.mxu0 0.0
        %1947 = vmatpush1.msra.mxu0 0.0
        %1948 = vmatprep.subr.mxu0 0.0
        %1949 = vmatpush1.msra.mxu0 0.0
        %1950 = vmatprep.subr.mxu0 0.0
        %1951 = vmatpush1.msra.mxu0 0.0
        %1952 = vmatprep.subr.mxu0 0.0
        %1953 = vmatpush1.msra.mxu0 0.0
        %1954 = vmatprep.subr.mxu0 0.0
        %1955 = vmatpush1.msra.mxu0 0.0
        %1956 = vmatprep.subr.mxu0 0.0
        %1957 = vmatpush1.msra.mxu0 0.0
        %1958 = vmatprep.subr.mxu0 0.0
        %1959 = vmatpush1.msra.mxu0 0.0
        %1960 = vmatprep.subr.mxu0 0.0
        %1961 = vmatpush1.msra.mxu0 0.0
        %1962 = vmatprep.subr.mxu0 0.0
        %1963 = vmatpush1.msra.mxu0 0.0
        %1964 = vmatprep.subr.mxu0 0.0
        %1965 = vmatpush1.msra.mxu0 0.0
        %1966 = vmatprep.subr.mxu0 0.0
        %1967 = vmatpush1.msra.mxu0 0.0
        %1968 = vmatprep.subr.mxu0 0.0
        %1969 = vmatpush1.msra.mxu0 0.0
        %1970 = vmatprep.mubr.f32.mxu0 0.0
        %1971 = vmatmul.mubr.f32.gmra.mrb[0].mxu0 %v1901
        %v1972 = vpop.f32.mrb[0].mxu0
        %v1973 = vadd.f32 0.0, %v1972
        %v1974 = vpop.f32.mrb[0].mxu0
        %v1975 = vadd.f32 0.0, %v1974
        %1976 = vmatprep.mubr.f32.mxu0 0.0
        %1977 = vmatmul.mubr.f32.gmra.mrb[0].mxu0 %v1904
        %v1978 = vpop.f32.mrb[0].mxu0
        %v1979 = vadd.f32 0.0, %v1978
        %v1980 = vpop.f32.mrb[0].mxu0
        %v1981 = vadd.f32 0.0, %v1980
        %1982 = vdwg.mxu0
        %1983 = vmatprep.subr.mxu0 %v1694
        %1984 = vmatpush1.msra.mxu0 %v1692
        %1985 = vmatprep.subr.mxu0 %v1700
        %1986 = vmatpush1.msra.mxu0 %v1698
        %1987 = vmatprep.subr.mxu0 0.0
        %1988 = vmatpush1.msra.mxu0 0.0
        %1989 = vmatprep.subr.mxu0 0.0
        %1990 = vmatpush1.msra.mxu0 0.0
        %1991 = vmatprep.subr.mxu0 0.0
        %1992 = vmatpush1.msra.mxu0 0.0
        %1993 = vmatprep.subr.mxu0 0.0
        %1994 = vmatpush1.msra.mxu0 0.0
        %1995 = vmatprep.subr.mxu0 0.0
        %1996 = vmatpush1.msra.mxu0 0.0
        %1997 = vmatprep.subr.mxu0 0.0
        %1998 = vmatpush1.msra.mxu0 0.0
        %1999 = vmatprep.subr.mxu0 0.0
        %2000 = vmatpush1.msra.mxu0 0.0
        %2001 = vmatprep.subr.mxu0 0.0
        %2002 = vmatpush1.msra.mxu0 0.0
        %2003 = vmatprep.subr.mxu0 0.0
        %2004 = vmatpush1.msra.mxu0 0.0
        %2005 = vmatprep.subr.mxu0 0.0
        %2006 = vmatpush1.msra.mxu0 0.0
        %2007 = vmatprep.subr.mxu0 0.0
        %2008 = vmatpush1.msra.mxu0 0.0
        %2009 = vmatprep.subr.mxu0 0.0
        %2010 = vmatpush1.msra.mxu0 0.0
        %2011 = vmatprep.subr.mxu0 0.0
        %2012 = vmatpush1.msra.mxu0 0.0
        %2013 = vmatprep.subr.mxu0 0.0
        %2014 = vmatpush1.msra.mxu0 0.0
        %2015 = vmatprep.subr.mxu0 0.0
        %2016 = vmatpush1.msra.mxu0 0.0
        %2017 = vmatprep.subr.mxu0 0.0
        %2018 = vmatpush1.msra.mxu0 0.0
        %2019 = vmatprep.subr.mxu0 0.0
        %2020 = vmatpush1.msra.mxu0 0.0
        %2021 = vmatprep.subr.mxu0 0.0
        %2022 = vmatpush1.msra.mxu0 0.0
        %2023 = vmatprep.subr.mxu0 0.0
        %2024 = vmatpush1.msra.mxu0 0.0
        %2025 = vmatprep.subr.mxu0 0.0
        %2026 = vmatpush1.msra.mxu0 0.0
        %2027 = vmatprep.subr.mxu0 0.0
        %2028 = vmatpush1.msra.mxu0 0.0
        %2029 = vmatprep.subr.mxu0 0.0
        %2030 = vmatpush1.msra.mxu0 0.0
        %2031 = vmatprep.subr.mxu0 0.0
        %2032 = vmatpush1.msra.mxu0 0.0
        %2033 = vmatprep.subr.mxu0 0.0
        %2034 = vmatpush1.msra.mxu0 0.0
        %2035 = vmatprep.subr.mxu0 0.0
        %2036 = vmatpush1.msra.mxu0 0.0
        %2037 = vmatprep.subr.mxu0 0.0
        %2038 = vmatpush1.msra.mxu0 0.0
        %2039 = vmatprep.subr.mxu0 0.0
        %2040 = vmatpush1.msra.mxu0 0.0
        %2041 = vmatprep.subr.mxu0 0.0
        %2042 = vmatpush1.msra.mxu0 0.0
        %2043 = vmatprep.subr.mxu0 0.0
        %2044 = vmatpush1.msra.mxu0 0.0
        %2045 = vmatprep.subr.mxu0 0.0
        %2046 = vmatpush1.msra.mxu0 0.0
        %2047 = vmatprep.mubr.f32.mxu0 0.0
        %2048 = vmatmul.mubr.f32.gmra.mrb[0].mxu0 %v1901
        %v2049 = vpop.f32.mrb[0].mxu0
        %v2050 = vadd.f32 0.0, %v2049
        %v2051 = vpop.f32.mrb[0].mxu0
        %v2052 = vadd.f32 0.0, %v2051
        %2053 = vmatprep.mubr.f32.mxu0 0.0
        %2054 = vmatmul.mubr.f32.gmra.mrb[0].mxu0 %v1904
        %v2055 = vpop.f32.mrb[0].mxu0
        %v2056 = vadd.f32 0.0, %v2055
        %v2057 = vpop.f32.mrb[0].mxu0
        %v2058 = vadd.f32 0.0, %v2057
        %2059 = vdwg.mxu0
        %2060 = vst [vmem:[%s460 + $0x40] sm:$0xff] %v1973
        %2061 = vst [vmem:[%s460 + $0x48] sm:$0xff] %v1975
        %2062 = vst [vmem:[%s460 + $0x50] sm:$0xff] %v2050
        %2063 = vst [vmem:[%s460 + $0x58] sm:$0xff] %v2052
        %2064 = vst [vmem:[%s460 + $0x60] sm:$0xff] %v1979
        %2065 = vst [vmem:[%s460 + $0x68] sm:$0xff] %v1981
        %2066 = vst [vmem:[%s460 + $0x70] sm:$0xff] %v2056
        %2067 = vst [vmem:[%s460 + $0x78] sm:$0xff] %v2058
        %s2068 = scalar_lea.vmem [#allocation2], 32
        %v2069 = vld [vmem:[%s2068] sm:$0xff]
        %v2070 = vld [vmem:[%s2068 + $0x8] sm:$0xff]
        %v2072 = vsel %vm1728, %v2069, 0
        %v2075 = vsel %vm1728, %v2070, 0
        %2077 = vmatprep.subr.mxu0 %v1593
        %2078 = vmatpush1.msra.mxu0 %v1591
        %2079 = vmatprep.subr.mxu0 %v1599
        %2080 = vmatpush1.msra.mxu0 %v1597
        %2081 = vmatprep.subr.mxu0 0.0
        %2082 = vmatpush1.msra.mxu0 0.0
        %2083 = vmatprep.subr.mxu0 0.0
        %2084 = vmatpush1.msra.mxu0 0.0
        %2085 = vmatprep.subr.mxu0 0.0
        %2086 = vmatpush1.msra.mxu0 0.0
        %2087 = vmatprep.subr.mxu0 0.0
        %2088 = vmatpush1.msra.mxu0 0.0
        %2089 = vmatprep.subr.mxu0 0.0
        %2090 = vmatpush1.msra.mxu0 0.0
        %2091 = vmatprep.subr.mxu0 0.0
        %2092 = vmatpush1.msra.mxu0 0.0
        %2093 = vmatprep.subr.mxu0 0.0
        %2094 = vmatpush1.msra.mxu0 0.0
        %2095 = vmatprep.subr.mxu0 0.0
        %2096 = vmatpush1.msra.mxu0 0.0
        %2097 = vmatprep.subr.mxu0 0.0
        %2098 = vmatpush1.msra.mxu0 0.0
        %2099 = vmatprep.subr.mxu0 0.0
        %2100 = vmatpush1.msra.mxu0 0.0
        %2101 = vmatprep.subr.mxu0 0.0
        %2102 = vmatpush1.msra.mxu0 0.0
        %2103 = vmatprep.subr.mxu0 0.0
        %2104 = vmatpush1.msra.mxu0 0.0
        %2105 = vmatprep.subr.mxu0 0.0
        %2106 = vmatpush1.msra.mxu0 0.0
        %2107 = vmatprep.subr.mxu0 0.0
        %2108 = vmatpush1.msra.mxu0 0.0
        %2109 = vmatprep.subr.mxu0 0.0
        %2110 = vmatpush1.msra.mxu0 0.0
        %2111 = vmatprep.subr.mxu0 0.0
        %2112 = vmatpush1.msra.mxu0 0.0
        %2113 = vmatprep.subr.mxu0 0.0
        %2114 = vmatpush1.msra.mxu0 0.0
        %2115 = vmatprep.subr.mxu0 0.0
        %2116 = vmatpush1.msra.mxu0 0.0
        %2117 = vmatprep.subr.mxu0 0.0
        %2118 = vmatpush1.msra.mxu0 0.0
        %2119 = vmatprep.subr.mxu0 0.0
        %2120 = vmatpush1.msra.mxu0 0.0
        %2121 = vmatprep.subr.mxu0 0.0
        %2122 = vmatpush1.msra.mxu0 0.0
        %2123 = vmatprep.subr.mxu0 0.0
        %2124 = vmatpush1.msra.mxu0 0.0
        %2125 = vmatprep.subr.mxu0 0.0
        %2126 = vmatpush1.msra.mxu0 0.0
        %2127 = vmatprep.subr.mxu0 0.0
        %2128 = vmatpush1.msra.mxu0 0.0
        %2129 = vmatprep.subr.mxu0 0.0
        %2130 = vmatpush1.msra.mxu0 0.0
        %2131 = vmatprep.subr.mxu0 0.0
        %2132 = vmatpush1.msra.mxu0 0.0
        %2133 = vmatprep.subr.mxu0 0.0
        %2134 = vmatpush1.msra.mxu0 0.0
        %2135 = vmatprep.subr.mxu0 0.0
        %2136 = vmatpush1.msra.mxu0 0.0
        %2137 = vmatprep.subr.mxu0 0.0
        %2138 = vmatpush1.msra.mxu0 0.0
        %2139 = vmatprep.subr.mxu0 0.0
        %2140 = vmatpush1.msra.mxu0 0.0
        %2141 = vmatprep.mubr.f32.mxu0 0.0
        %2142 = vmatmul.mubr.f32.gmra.mrb[0].mxu0 %v2072
        %v2143 = vpop.f32.mrb[0].mxu0
        %v2144 = vadd.f32 0.0, %v2143
        %v2145 = vpop.f32.mrb[0].mxu0
        %v2146 = vadd.f32 0.0, %v2145
        %2147 = vmatprep.mubr.f32.mxu0 0.0
        %2148 = vmatmul.mubr.f32.gmra.mrb[0].mxu0 %v2075
        %v2149 = vpop.f32.mrb[0].mxu0
        %v2150 = vadd.f32 0.0, %v2149
        %v2151 = vpop.f32.mrb[0].mxu0
        %v2152 = vadd.f32 0.0, %v2151
        %2153 = vdwg.mxu0
        %2154 = vmatprep.subr.mxu0 %v1706
        %2155 = vmatpush1.msra.mxu0 %v1704
        %2156 = vmatprep.subr.mxu0 %v1712
        %2157 = vmatpush1.msra.mxu0 %v1710
        %2158 = vmatprep.subr.mxu0 0.0
        %2159 = vmatpush1.msra.mxu0 0.0
        %2160 = vmatprep.subr.mxu0 0.0
        %2161 = vmatpush1.msra.mxu0 0.0
        %2162 = vmatprep.subr.mxu0 0.0
        %2163 = vmatpush1.msra.mxu0 0.0
        %2164 = vmatprep.subr.mxu0 0.0
        %2165 = vmatpush1.msra.mxu0 0.0
        %2166 = vmatprep.subr.mxu0 0.0
        %2167 = vmatpush1.msra.mxu0 0.0
        %2168 = vmatprep.subr.mxu0 0.0
        %2169 = vmatpush1.msra.mxu0 0.0
        %2170 = vmatprep.subr.mxu0 0.0
        %2171 = vmatpush1.msra.mxu0 0.0
        %2172 = vmatprep.subr.mxu0 0.0
        %2173 = vmatpush1.msra.mxu0 0.0
        %2174 = vmatprep.subr.mxu0 0.0
        %2175 = vmatpush1.msra.mxu0 0.0
        %2176 = vmatprep.subr.mxu0 0.0
        %2177 = vmatpush1.msra.mxu0 0.0
        %2178 = vmatprep.subr.mxu0 0.0
        %2179 = vmatpush1.msra.mxu0 0.0
        %2180 = vmatprep.subr.mxu0 0.0
        %2181 = vmatpush1.msra.mxu0 0.0
        %2182 = vmatprep.subr.mxu0 0.0
        %2183 = vmatpush1.msra.mxu0 0.0
        %2184 = vmatprep.subr.mxu0 0.0
        %2185 = vmatpush1.msra.mxu0 0.0
        %2186 = vmatprep.subr.mxu0 0.0
        %2187 = vmatpush1.msra.mxu0 0.0
        %2188 = vmatprep.subr.mxu0 0.0
        %2189 = vmatpush1.msra.mxu0 0.0
        %2190 = vmatprep.subr.mxu0 0.0
        %2191 = vmatpush1.msra.mxu0 0.0
        %2192 = vmatprep.subr.mxu0 0.0
        %2193 = vmatpush1.msra.mxu0 0.0
        %2194 = vmatprep.subr.mxu0 0.0
        %2195 = vmatpush1.msra.mxu0 0.0
        %2196 = vmatprep.subr.mxu0 0.0
        %2197 = vmatpush1.msra.mxu0 0.0
        %2198 = vmatprep.subr.mxu0 0.0
        %2199 = vmatpush1.msra.mxu0 0.0
        %2200 = vmatprep.subr.mxu0 0.0
        %2201 = vmatpush1.msra.mxu0 0.0
        %2202 = vmatprep.subr.mxu0 0.0
        %2203 = vmatpush1.msra.mxu0 0.0
        %2204 = vmatprep.subr.mxu0 0.0
        %2205 = vmatpush1.msra.mxu0 0.0
        %2206 = vmatprep.subr.mxu0 0.0
        %2207 = vmatpush1.msra.mxu0 0.0
        %2208 = vmatprep.subr.mxu0 0.0
        %2209 = vmatpush1.msra.mxu0 0.0
        %2210 = vmatprep.subr.mxu0 0.0
        %2211 = vmatpush1.msra.mxu0 0.0
        %2212 = vmatprep.subr.mxu0 0.0
        %2213 = vmatpush1.msra.mxu0 0.0
        %2214 = vmatprep.subr.mxu0 0.0
        %2215 = vmatpush1.msra.mxu0 0.0
        %2216 = vmatprep.subr.mxu0 0.0
        %2217 = vmatpush1.msra.mxu0 0.0
        %2218 = vmatprep.mubr.f32.mxu0 0.0
        %2219 = vmatmul.mubr.f32.gmra.mrb[0].mxu0 %v2072
        %v2220 = vpop.f32.mrb[0].mxu0
        %v2221 = vadd.f32 0.0, %v2220
        %v2222 = vpop.f32.mrb[0].mxu0
        %v2223 = vadd.f32 0.0, %v2222
        %2224 = vmatprep.mubr.f32.mxu0 0.0
        %2225 = vmatmul.mubr.f32.gmra.mrb[0].mxu0 %v2075
        %v2226 = vpop.f32.mrb[0].mxu0
        %v2227 = vadd.f32 0.0, %v2226
        %v2228 = vpop.f32.mrb[0].mxu0
        %v2229 = vadd.f32 0.0, %v2228
        %2230 = vdwg.mxu0
        %2231 = vst [vmem:[%s460 + $0x80] sm:$0xff] %v2144
        %2232 = vst [vmem:[%s460 + $0x88] sm:$0xff] %v2146
        %2233 = vst [vmem:[%s460 + $0x90] sm:$0xff] %v2221
        %2234 = vst [vmem:[%s460 + $0x98] sm:$0xff] %v2223
        %2235 = vst [vmem:[%s460 + $0xa0] sm:$0xff] %v2150
        %2236 = vst [vmem:[%s460 + $0xa8] sm:$0xff] %v2152
        %2237 = vst [vmem:[%s460 + $0xb0] sm:$0xff] %v2227
        %2238 = vst [vmem:[%s460 + $0xb8] sm:$0xff] %v2229
        %s2239 = scalar_lea.vmem [#allocation2], 48
        %v2240 = vld [vmem:[%s2239] sm:$0xff]
        %v2241 = vld [vmem:[%s2239 + $0x8] sm:$0xff]
        %v2243 = vsel %vm1728, %v2240, 0
        %v2246 = vsel %vm1728, %v2241, 0
        %2248 = vmatprep.subr.mxu0 %v1605
        %2249 = vmatpush1.msra.mxu0 %v1603
        %2250 = vmatprep.subr.mxu0 %v1611
        %2251 = vmatpush1.msra.mxu0 %v1609
        %2252 = vmatprep.subr.mxu0 0.0
        %2253 = vmatpush1.msra.mxu0 0.0
        %2254 = vmatprep.subr.mxu0 0.0
        %2255 = vmatpush1.msra.mxu0 0.0
        %2256 = vmatprep.subr.mxu0 0.0
        %2257 = vmatpush1.msra.mxu0 0.0
        %2258 = vmatprep.subr.mxu0 0.0
        %2259 = vmatpush1.msra.mxu0 0.0
        %2260 = vmatprep.subr.mxu0 0.0
        %2261 = vmatpush1.msra.mxu0 0.0
        %2262 = vmatprep.subr.mxu0 0.0
        %2263 = vmatpush1.msra.mxu0 0.0
        %2264 = vmatprep.subr.mxu0 0.0
        %2265 = vmatpush1.msra.mxu0 0.0
        %2266 = vmatprep.subr.mxu0 0.0
        %2267 = vmatpush1.msra.mxu0 0.0
        %2268 = vmatprep.subr.mxu0 0.0
        %2269 = vmatpush1.msra.mxu0 0.0
        %2270 = vmatprep.subr.mxu0 0.0
        %2271 = vmatpush1.msra.mxu0 0.0
        %2272 = vmatprep.subr.mxu0 0.0
        %2273 = vmatpush1.msra.mxu0 0.0
        %2274 = vmatprep.subr.mxu0 0.0
        %2275 = vmatpush1.msra.mxu0 0.0
        %2276 = vmatprep.subr.mxu0 0.0
        %2277 = vmatpush1.msra.mxu0 0.0
        %2278 = vmatprep.subr.mxu0 0.0
        %2279 = vmatpush1.msra.mxu0 0.0
        %2280 = vmatprep.subr.mxu0 0.0
        %2281 = vmatpush1.msra.mxu0 0.0
        %2282 = vmatprep.subr.mxu0 0.0
        %2283 = vmatpush1.msra.mxu0 0.0
        %2284 = vmatprep.subr.mxu0 0.0
        %2285 = vmatpush1.msra.mxu0 0.0
        %2286 = vmatprep.subr.mxu0 0.0
        %2287 = vmatpush1.msra.mxu0 0.0
        %2288 = vmatprep.subr.mxu0 0.0
        %2289 = vmatpush1.msra.mxu0 0.0
        %2290 = vmatprep.subr.mxu0 0.0
        %2291 = vmatpush1.msra.mxu0 0.0
        %2292 = vmatprep.subr.mxu0 0.0
        %2293 = vmatpush1.msra.mxu0 0.0
        %2294 = vmatprep.subr.mxu0 0.0
        %2295 = vmatpush1.msra.mxu0 0.0
        %2296 = vmatprep.subr.mxu0 0.0
        %2297 = vmatpush1.msra.mxu0 0.0
        %2298 = vmatprep.subr.mxu0 0.0
        %2299 = vmatpush1.msra.mxu0 0.0
        %2300 = vmatprep.subr.mxu0 0.0
        %2301 = vmatpush1.msra.mxu0 0.0
        %2302 = vmatprep.subr.mxu0 0.0
        %2303 = vmatpush1.msra.mxu0 0.0
        %2304 = vmatprep.subr.mxu0 0.0
        %2305 = vmatpush1.msra.mxu0 0.0
        %2306 = vmatprep.subr.mxu0 0.0
        %2307 = vmatpush1.msra.mxu0 0.0
        %2308 = vmatprep.subr.mxu0 0.0
        %2309 = vmatpush1.msra.mxu0 0.0
        %2310 = vmatprep.subr.mxu0 0.0
        %2311 = vmatpush1.msra.mxu0 0.0
        %2312 = vmatprep.mubr.f32.mxu0 0.0
        %2313 = vmatmul.mubr.f32.gmra.mrb[0].mxu0 %v2243
        %v2314 = vpop.f32.mrb[0].mxu0
        %v2315 = vadd.f32 0.0, %v2314
        %v2316 = vpop.f32.mrb[0].mxu0
        %v2317 = vadd.f32 0.0, %v2316
        %2318 = vmatprep.mubr.f32.mxu0 0.0
        %2319 = vmatmul.mubr.f32.gmra.mrb[0].mxu0 %v2246
        %v2320 = vpop.f32.mrb[0].mxu0
        %v2321 = vadd.f32 0.0, %v2320
        %v2322 = vpop.f32.mrb[0].mxu0
        %v2323 = vadd.f32 0.0, %v2322
        %2324 = vdwg.mxu0
        %2325 = vmatprep.subr.mxu0 %v1718
        %2326 = vmatpush1.msra.mxu0 %v1716
        %2327 = vmatprep.subr.mxu0 %v1724
        %2328 = vmatpush1.msra.mxu0 %v1722
        %2329 = vmatprep.subr.mxu0 0.0
        %2330 = vmatpush1.msra.mxu0 0.0
        %2331 = vmatprep.subr.mxu0 0.0
        %2332 = vmatpush1.msra.mxu0 0.0
        %2333 = vmatprep.subr.mxu0 0.0
        %2334 = vmatpush1.msra.mxu0 0.0
        %2335 = vmatprep.subr.mxu0 0.0
        %2336 = vmatpush1.msra.mxu0 0.0
        %2337 = vmatprep.subr.mxu0 0.0
        %2338 = vmatpush1.msra.mxu0 0.0
        %2339 = vmatprep.subr.mxu0 0.0
        %2340 = vmatpush1.msra.mxu0 0.0
        %2341 = vmatprep.subr.mxu0 0.0
        %2342 = vmatpush1.msra.mxu0 0.0
        %2343 = vmatprep.subr.mxu0 0.0
        %2344 = vmatpush1.msra.mxu0 0.0
        %2345 = vmatprep.subr.mxu0 0.0
        %2346 = vmatpush1.msra.mxu0 0.0
        %2347 = vmatprep.subr.mxu0 0.0
        %2348 = vmatpush1.msra.mxu0 0.0
        %2349 = vmatprep.subr.mxu0 0.0
        %2350 = vmatpush1.msra.mxu0 0.0
        %2351 = vmatprep.subr.mxu0 0.0
        %2352 = vmatpush1.msra.mxu0 0.0
        %2353 = vmatprep.subr.mxu0 0.0
        %2354 = vmatpush1.msra.mxu0 0.0
        %2355 = vmatprep.subr.mxu0 0.0
        %2356 = vmatpush1.msra.mxu0 0.0
        %2357 = vmatprep.subr.mxu0 0.0
        %2358 = vmatpush1.msra.mxu0 0.0
        %2359 = vmatprep.subr.mxu0 0.0
        %2360 = vmatpush1.msra.mxu0 0.0
        %2361 = vmatprep.subr.mxu0 0.0
        %2362 = vmatpush1.msra.mxu0 0.0
        %2363 = vmatprep.subr.mxu0 0.0
        %2364 = vmatpush1.msra.mxu0 0.0
        %2365 = vmatprep.subr.mxu0 0.0
        %2366 = vmatpush1.msra.mxu0 0.0
        %2367 = vmatprep.subr.mxu0 0.0
        %2368 = vmatpush1.msra.mxu0 0.0
        %2369 = vmatprep.subr.mxu0 0.0
        %2370 = vmatpush1.msra.mxu0 0.0
        %2371 = vmatprep.subr.mxu0 0.0
        %2372 = vmatpush1.msra.mxu0 0.0
        %2373 = vmatprep.subr.mxu0 0.0
        %2374 = vmatpush1.msra.mxu0 0.0
        %2375 = vmatprep.subr.mxu0 0.0
        %2376 = vmatpush1.msra.mxu0 0.0
        %2377 = vmatprep.subr.mxu0 0.0
        %2378 = vmatpush1.msra.mxu0 0.0
        %2379 = vmatprep.subr.mxu0 0.0
        %2380 = vmatpush1.msra.mxu0 0.0
        %2381 = vmatprep.subr.mxu0 0.0
        %2382 = vmatpush1.msra.mxu0 0.0
        %2383 = vmatprep.subr.mxu0 0.0
        %2384 = vmatpush1.msra.mxu0 0.0
        %2385 = vmatprep.subr.mxu0 0.0
        %2386 = vmatpush1.msra.mxu0 0.0
        %2387 = vmatprep.subr.mxu0 0.0
        %2388 = vmatpush1.msra.mxu0 0.0
        %2389 = vmatprep.mubr.f32.mxu0 0.0
        %2390 = vmatmul.mubr.f32.gmra.mrb[0].mxu0 %v2243
        %v2391 = vpop.f32.mrb[0].mxu0
        %v2392 = vadd.f32 0.0, %v2391
        %v2393 = vpop.f32.mrb[0].mxu0
        %v2394 = vadd.f32 0.0, %v2393
        %2395 = vmatprep.mubr.f32.mxu0 0.0
        %2396 = vmatmul.mubr.f32.gmra.mrb[0].mxu0 %v2246
        %v2397 = vpop.f32.mrb[0].mxu0
        %v2398 = vadd.f32 0.0, %v2397
        %v2399 = vpop.f32.mrb[0].mxu0
        %v2400 = vadd.f32 0.0, %v2399
        %2401 = vdwg.mxu0
        %2402 = vst [vmem:[%s460 + $0xc0] sm:$0xff] %v2315
        %2403 = vst [vmem:[%s460 + $0xc8] sm:$0xff] %v2317
        %2404 = vst [vmem:[%s460 + $0xd0] sm:$0xff] %v2392
        %2405 = vst [vmem:[%s460 + $0xd8] sm:$0xff] %v2394
        %2406 = vst [vmem:[%s460 + $0xe0] sm:$0xff] %v2321
        %2407 = vst [vmem:[%s460 + $0xe8] sm:$0xff] %v2323
        %2408 = vst [vmem:[%s460 + $0xf0] sm:$0xff] %v2398
        %2409 = vst [vmem:[%s460 + $0xf8] sm:$0xff] %v2400
        %s2410 = sand.u32 %s183, 1
        %s2411 = sand.u32 %s183, 1
        %s2412 = smul.addr %s2411, 256
        %s2413 = scalar_lea.vmem [#allocation7], %s2412
        // Predicated region
        $region99: #{multiscale_attention_forward.4} parent=81 // pred_check
          %p2414 = pneg %p193
        $region100: #{multiscale_attention_forward.4} parent=81 // pred_check_branch
          %2416 = sbr.rel (%p2414) target = $region102
        $region101: #{multiscale_attention_forward.4} parent=81 // pred_region
          %s2417 = smul.u32 4, %s23
          %s2418 = smul.addr %s22, 64
          %s2419 = sadd.s32 %s2417, %s2418
          %s2420 = smul.addr %s2419, 8
          %s2421 = scalar_lea.vmem %s6, %s2420
          // Predicated region
          $region103: #{multiscale_attention_forward.4} parent=101 // pred_check
            _
          $region104: #{multiscale_attention_forward.4} parent=101 // pred_check_branch
            %2423 = sbr.rel (0) target = $region106
          $region105: #{multiscale_attention_forward.4} parent=101 // pred_region
            // Predicated region
            $region107: #{multiscale_attention_forward.4} parent=105 // pred_check
              _
            $region108: #{multiscale_attention_forward.4} parent=105 // pred_check_branch
              %2425 = sbr.rel (0) target = $region110
            $region109: #{multiscale_attention_forward.4} parent=105 // pred_region
              loop: start=0, step=1, limit=1
              $region111: #{multiscale_attention_forward.4} parent=109 // loop_pre_header
                _
              $region112: #{multiscale_attention_forward.4} parent=109 // loop_header
                %s2427 = sphi 0, %s2431
                %p2428 = scmp.ge.s32.totalorder %s2427, 1
                %s2432 = sphi %s2413, %s2413
                %s2433 = sphi %s2421, %s2421
              $region113: #{multiscale_attention_forward.4} parent=109 // loop_header_branch
                %2430 = sbr.rel (%p2428) target = $region117
              $region114: #{multiscale_attention_forward.4} parent=109 // loop_body
                %v2434 = vld [vmem:[%s2432] sm:$0xff]
                %2435 = vst [vmem:[%s2433] sm:$0xff] %v2434
                %v2436 = vld [vmem:[%s2432 + $0x8] sm:$0xff]
                %2437 = vst [vmem:[%s2433 + $0x8] sm:$0xff] %v2436
                %v2438 = vld [vmem:[%s2432 + $0x10] sm:$0xff]
                %2439 = vst [vmem:[%s2433 + $0x10] sm:$0xff] %v2438
                %v2440 = vld [vmem:[%s2432 + $0x18] sm:$0xff]
                %2441 = vst [vmem:[%s2433 + $0x18] sm:$0xff] %v2440
                %v2442 = vld [vmem:[%s2432 + $0x20] sm:$0xff]
                %2443 = vst [vmem:[%s2433 + $0x40] sm:$0xff] %v2442
                %v2444 = vld [vmem:[%s2432 + $0x28] sm:$0xff]
                %2445 = vst [vmem:[%s2433 + $0x48] sm:$0xff] %v2444
                %v2446 = vld [vmem:[%s2432 + $0x30] sm:$0xff]
                %2447 = vst [vmem:[%s2433 + $0x50] sm:$0xff] %v2446
                %v2448 = vld [vmem:[%s2432 + $0x38] sm:$0xff]
                %2449 = vst [vmem:[%s2433 + $0x58] sm:$0xff] %v2448
                %v2450 = vld [vmem:[%s2432 + $0x40] sm:$0xff]
                %2451 = vst [vmem:[%s2433 + $0x80] sm:$0xff] %v2450
                %v2452 = vld [vmem:[%s2432 + $0x48] sm:$0xff]
                %2453 = vst [vmem:[%s2433 + $0x88] sm:$0xff] %v2452
                %v2454 = vld [vmem:[%s2432 + $0x50] sm:$0xff]
                %2455 = vst [vmem:[%s2433 + $0x90] sm:$0xff] %v2454
                %v2456 = vld [vmem:[%s2432 + $0x58] sm:$0xff]
                %2457 = vst [vmem:[%s2433 + $0x98] sm:$0xff] %v2456
                %v2458 = vld [vmem:[%s2432 + $0x60] sm:$0xff]
                %2459 = vst [vmem:[%s2433 + $0xc0] sm:$0xff] %v2458
                %v2460 = vld [vmem:[%s2432 + $0x68] sm:$0xff]
                %2461 = vst [vmem:[%s2433 + $0xc8] sm:$0xff] %v2460
                %v2462 = vld [vmem:[%s2432 + $0x70] sm:$0xff]
                %2463 = vst [vmem:[%s2433 + $0xd0] sm:$0xff] %v2462
                %v2464 = vld [vmem:[%s2432 + $0x78] sm:$0xff]
                %2465 = vst [vmem:[%s2433 + $0xd8] sm:$0xff] %v2464
                %v2466 = vld [vmem:[%s2432 + $0x80] sm:$0xff]
                %2467 = vst [vmem:[%s2433 + $0x100] sm:$0xff] %v2466
                %v2468 = vld [vmem:[%s2432 + $0x88] sm:$0xff]
                %2469 = vst [vmem:[%s2433 + $0x108] sm:$0xff] %v2468
                %v2470 = vld [vmem:[%s2432 + $0x90] sm:$0xff]
                %2471 = vst [vmem:[%s2433 + $0x110] sm:$0xff] %v2470
                %v2472 = vld [vmem:[%s2432 + $0x98] sm:$0xff]
                %2473 = vst [vmem:[%s2433 + $0x118] sm:$0xff] %v2472
                %v2474 = vld [vmem:[%s2432 + $0xa0] sm:$0xff]
                %2475 = vst [vmem:[%s2433 + $0x140] sm:$0xff] %v2474
                %v2476 = vld [vmem:[%s2432 + $0xa8] sm:$0xff]
                %2477 = vst [vmem:[%s2433 + $0x148] sm:$0xff] %v2476
                %v2478 = vld [vmem:[%s2432 + $0xb0] sm:$0xff]
                %2479 = vst [vmem:[%s2433 + $0x150] sm:$0xff] %v2478
                %v2480 = vld [vmem:[%s2432 + $0xb8] sm:$0xff]
                %2481 = vst [vmem:[%s2433 + $0x158] sm:$0xff] %v2480
                %v2482 = vld [vmem:[%s2432 + $0xc0] sm:$0xff]
                %2483 = vst [vmem:[%s2433 + $0x180] sm:$0xff] %v2482
                %v2484 = vld [vmem:[%s2432 + $0xc8] sm:$0xff]
                %2485 = vst [vmem:[%s2433 + $0x188] sm:$0xff] %v2484
                %v2486 = vld [vmem:[%s2432 + $0xd0] sm:$0xff]
                %2487 = vst [vmem:[%s2433 + $0x190] sm:$0xff] %v2486
                %v2488 = vld [vmem:[%s2432 + $0xd8] sm:$0xff]
                %2489 = vst [vmem:[%s2433 + $0x198] sm:$0xff] %v2488
                %v2490 = vld [vmem:[%s2432 + $0xe0] sm:$0xff]
                %2491 = vst [vmem:[%s2433 + $0x1c0] sm:$0xff] %v2490
                %v2492 = vld [vmem:[%s2432 + $0xe8] sm:$0xff]
                %2493 = vst [vmem:[%s2433 + $0x1c8] sm:$0xff] %v2492
                %v2494 = vld [vmem:[%s2432 + $0xf0] sm:$0xff]
                %2495 = vst [vmem:[%s2433 + $0x1d0] sm:$0xff] %v2494
                %v2496 = vld [vmem:[%s2432 + $0xf8] sm:$0xff]
                %2497 = vst [vmem:[%s2433 + $0x1d8] sm:$0xff] %v2496
              $region115: #{multiscale_attention_forward.4} parent=109 // loop_footer
                %s2431 = sadd.s32 1, %s2427
              $region116: #{multiscale_attention_forward.4} parent=109 // loop_footer_branch
                %2426 = sbr.rel target = $region112
              $region117: #{multiscale_attention_forward.4} parent=109 // loop_exit
                _
            $region110: #{multiscale_attention_forward.4} parent=105 // pred_fallthru
              _
            // Predicated region
            $region118: #{multiscale_attention_forward.4} parent=105 // pred_check
              _
            $region119: #{multiscale_attention_forward.4} parent=105 // pred_check_branch
              %2499 = sbr.rel target = $region121
            $region120: #{multiscale_attention_forward.4} parent=105 // pred_region
              _
            $region121: #{multiscale_attention_forward.4} parent=105 // pred_fallthru
              _
          $region106: #{multiscale_attention_forward.4} parent=101 // pred_fallthru
            _
          %2500 = vnop
        $region102: #{multiscale_attention_forward.4} parent=81 // pred_fallthru
          _
      $region82: #{multiscale_attention_forward.4} parent=5 // pred_fallthru
        _
      %p2501 = scmp.le.s32.totalorder 2, %s13
      // Predicated region
      $region122: #{multiscale_attention_forward.4} parent=5 // pred_check
        %p2502 = pneg %p2501
      $region123: #{multiscale_attention_forward.4} parent=5 // pred_check_branch
        %2504 = sbr.rel (%p2502) target = $region125
      $region124: #{multiscale_attention_forward.4} parent=5 // pred_region
        %s2505 = ssub.s32 %s13, 2
        // Predicated region
        $region126: #{multiscale_attention_forward.4} parent=124 // pred_check
          %p2506 = pneg %p199
        $region127: #{multiscale_attention_forward.4} parent=124 // pred_check_branch
          %2508 = sbr.rel (%p2506) target = $region129
        $region128: #{multiscale_attention_forward.4} parent=124 // pred_region
          %s2509 = sand.u32 %s184, 1
          %s2510 = sand.u32 %s184, 1
          %s2511 = smul.addr %s2510, 256
          %s2512 = scalar_lea.vmem [#allocation7], %s2511
        $region129: #{multiscale_attention_forward.4} parent=124 // pred_fallthru
          _
      $region125: #{multiscale_attention_forward.4} parent=5 // pred_fallthru
        _
    $region6: #{multiscale_attention_forward.4} parent=1 // loop_footer
      %s17 = sadd.s32 1, %s13
    $region7: #{multiscale_attention_forward.4} parent=1 // loop_footer_branch
      %12 = sbr.rel target = $region3
    $region8: #{multiscale_attention_forward.4} parent=1 // loop_exit
      _
    %2513 = vsyncpa [#allocation4], 1
    %s2514 = scalar_lea.sflag [#allocation4], 1
    %2515 = vsyncpa %s2514, 1

// kernel: multiscale_attention_forward.5
$region0: #{multiscale_attention_forward.5}
  #allocation0 [shape = 'u32[]', space=smem, size = 0x4, offset = 0x4, fixed_abs, tag = 'smem constant byte address 0x4 - core index']
  #allocation1 [shape = 'u32[144,128]{1,0:T(1,128)}', space=vmem, size = 0x12000, scoped, tag = 'internal scratch']
  %s0 = inlined_call_operand.vmem [shape: f32[2,4,16,1024], index: 0, kind: input, shape index: {}]
  %s1 = inlined_call_operand.vmem [shape: f32[4,16,1], index: 1, kind: input, shape index: {}]
  %s2 = inlined_call_operand.vmem [shape: f32[4,16,1], index: 2, kind: input, shape index: {}]
  %s3 = inlined_call_operand.vmem [shape: f32[2,4,16,1024], index: 3, kind: output, shape index: {}]
  %s4 = sld [smem:[#allocation0]]
  $region45: #{multiscale_attention_forward.5} parent=0
    _
  %s6 = ssub.s32 1, %s4
  %s7 = scalar_select 0, %s6, %s4
  loop: start=0, step=1, limit=10
  $region2: #{multiscale_attention_forward.5} parent=0 // loop_pre_header
    _
  $region3: #{multiscale_attention_forward.5} parent=0 // loop_header
    %s9 = sphi 0, %s13
    %p10 = scmp.ge.s32.totalorder %s9, 10
    %s16 = sphi 0, %s28
    %s17 = sphi 0, %s24
    %s18 = sphi 0, %s16
    %s19 = sphi 0, %s17
    %s20 = sphi 0, %s18
    %s21 = sphi 0, %s19
    %s33 = sphi 0, %s35
    %s36 = sphi 0, %s33
    %s37 = sphi 0, %s36
    %s53 = sphi 0, %s37
    %s59 = sphi 0, %s61
    %s62 = sphi 0, %s59
    %s63 = sphi 0, %s62
    %s79 = sphi 0, %s63
    %s85 = sphi 0, %s87
    %s88 = sphi 0, %s85
    %s89 = sphi 0, %s88
    %s105 = sphi 0, %s89
    %s113 = sphi 0, %s115
    %s116 = sphi 0, %s113
    %s117 = sphi 0, %s116
    %s133 = sphi 0, %s117
  $region4: #{multiscale_attention_forward.5} parent=0 // loop_header_branch
    %12 = sbr.rel (%p10) target = $region8
  $region5: #{multiscale_attention_forward.5} parent=0 // loop_body
    %s14 = ssub.s32 %s9, 1
    %s15 = ssub.s32 %s9, 2
    %s22 = sadd.s32 1, %s17
    %p23 = scmp.ge.s32.totalorder %s22, 4
    %s24 = scalar_select %p23, 0, %s22
    %s25 = sadd.s32 1, %s16
    %s26 = scalar_select %p23, %s25, %s16
    %p27 = scmp.ge.s32.totalorder %s26, 2
    %s28 = scalar_select %p27, 0, %s26
    %s29 = ssub.s32 %s16, %s28
    %s30 = ssub.s32 %s17, %s24
    %s31 = sor.u32 %s29, %s30
    %p32 = scmp.eq.s32.totalorder %s31, 0
    %s34 = sadd.s32 %s33, 1
    %s35 = scalar_select %p32, %s33, %s34
    %p38 = pneg %p32
    %p39 = scmp.eq.s32.totalorder %s9, 7
    %p40 = por %p38, %p39
    %p41 = scmp.ne.s32.totalorder %s33, %s36
    %p42 = scmp.eq.s32.totalorder %s9, 0
    %p43 = por %p41, %p42
    %p44 = scmp.ne.s32.totalorder %s33, %s36
    %p45 = scmp.eq.s32.totalorder %s14, 7
    %p46 = por %p44, %p45
    %p47 = scmp.ne.s32.totalorder %s36, %s37
    %p48 = scmp.eq.s32.totalorder %s14, 0
    %p49 = por %p47, %p48
    %p50 = scmp.ne.s32.totalorder %s36, %s37
    %p51 = scmp.eq.s32.totalorder %s15, 7
    %p52 = por %p50, %p51
    %p54 = scmp.ne.s32.totalorder %s37, %s53
    %p55 = scmp.eq.s32.totalorder %s15, 0
    %p56 = por %p54, %p55
    %s57 = ssub.s32 %s17, %s24
    %p58 = scmp.eq.s32.totalorder %s57, 0
    %s60 = sadd.s32 %s59, 1
    %s61 = scalar_select %p58, %s59, %s60
    %p64 = pneg %p58
    %p65 = scmp.eq.s32.totalorder %s9, 7
    %p66 = por %p64, %p65
    %p67 = scmp.ne.s32.totalorder %s59, %s62
    %p68 = scmp.eq.s32.totalorder %s9, 0
    %p69 = por %p67, %p68
    %p70 = scmp.ne.s32.totalorder %s59, %s62
    %p71 = scmp.eq.s32.totalorder %s14, 7
    %p72 = por %p70, %p71
    %p73 = scmp.ne.s32.totalorder %s62, %s63
    %p74 = scmp.eq.s32.totalorder %s14, 0
    %p75 = por %p73, %p74
    %p76 = scmp.ne.s32.totalorder %s62, %s63
    %p77 = scmp.eq.s32.totalorder %s15, 7
    %p78 = por %p76, %p77
    %p80 = scmp.ne.s32.totalorder %s63, %s79
    %p81 = scmp.eq.s32.totalorder %s15, 0
    %p82 = por %p80, %p81
    %s83 = ssub.s32 %s17, %s24
    %p84 = scmp.eq.s32.totalorder %s83, 0
    %s86 = sadd.s32 %s85, 1
    %s87 = scalar_select %p84, %s85, %s86
    %p90 = pneg %p84
    %p91 = scmp.eq.s32.totalorder %s9, 7
    %p92 = por %p90, %p91
    %p93 = scmp.ne.s32.totalorder %s85, %s88
    %p94 = scmp.eq.s32.totalorder %s9, 0
    %p95 = por %p93, %p94
    %p96 = scmp.ne.s32.totalorder %s85, %s88
    %p97 = scmp.eq.s32.totalorder %s14, 7
    %p98 = por %p96, %p97
    %p99 = scmp.ne.s32.totalorder %s88, %s89
    %p100 = scmp.eq.s32.totalorder %s14, 0
    %p101 = por %p99, %p100
    %p102 = scmp.ne.s32.totalorder %s88, %s89
    %p103 = scmp.eq.s32.totalorder %s15, 7
    %p104 = por %p102, %p103
    %p106 = scmp.ne.s32.totalorder %s89, %s105
    %p107 = scmp.eq.s32.totalorder %s15, 0
    %p108 = por %p106, %p107
    %s109 = ssub.s32 %s16, %s28
    %s110 = ssub.s32 %s17, %s24
    %s111 = sor.u32 %s109, %s110
    %p112 = scmp.eq.s32.totalorder %s111, 0
    %s114 = sadd.s32 %s113, 1
    %s115 = scalar_select %p112, %s113, %s114
    %p118 = pneg %p112
    %p119 = scmp.eq.s32.totalorder %s9, 7
    %p120 = por %p118, %p119
    %p121 = scmp.ne.s32.totalorder %s113, %s116
    %p122 = scmp.eq.s32.totalorder %s9, 0
    %p123 = por %p121, %p122
    %p124 = scmp.ne.s32.totalorder %s113, %s116
    %p125 = scmp.eq.s32.totalorder %s14, 7
    %p126 = por %p124, %p125
    %p127 = scmp.ne.s32.totalorder %s116, %s117
    %p128 = scmp.eq.s32.totalorder %s14, 0
    %p129 = por %p127, %p128
    %p130 = scmp.ne.s32.totalorder %s116, %s117
    %p131 = scmp.eq.s32.totalorder %s15, 7
    %p132 = por %p130, %p131
    %p134 = scmp.ne.s32.totalorder %s117, %s133
    %p135 = scmp.eq.s32.totalorder %s15, 0
    %p136 = por %p134, %p135
    %p137 = scmp.le.s32.totalorder 1, %s9
    %p138 = scmp.lt.s32.totalorder %s9, 9
    %p139 = pnand %p137, %p138
    %p140 = pneg %p139
    // Predicated region
    $region9: #{multiscale_attention_forward.5} parent=5 // pred_check
      _
    $region10: #{multiscale_attention_forward.5} parent=5 // pred_check_branch
      %142 = sbr.rel (%p139) target = $region12
    $region11: #{multiscale_attention_forward.5} parent=5 // pred_region
      %s143 = ssub.s32 %s9, 1
    $region12: #{multiscale_attention_forward.5} parent=5 // pred_fallthru
      _
    %p144 = scmp.lt.s32.totalorder %s9, 8
    // Predicated region
    $region13: #{multiscale_attention_forward.5} parent=5 // pred_check
      %p145 = pneg %p144
    $region14: #{multiscale_attention_forward.5} parent=5 // pred_check_branch
      %147 = sbr.rel (%p145) target = $region16
    $region15: #{multiscale_attention_forward.5} parent=5 // pred_region
      // Predicated region
      $region17: #{multiscale_attention_forward.5} parent=15 // pred_check
        %p148 = pneg %p43
      $region18: #{multiscale_attention_forward.5} parent=15 // pred_check_branch
        %150 = sbr.rel (%p148) target = $region20
      $region19: #{multiscale_attention_forward.5} parent=15 // pred_region
        %p151 = scmp.lt.s32.totalorder %s16, 1
        %s152 = scalar_select %p151, %s16, 1
        %p153 = scmp.lt.s32.totalorder %s17, 3
        %s154 = scalar_select %p153, %s17, 3
        %s155 = smul.addr %s154, 16
        %s156 = smul.addr %s152, 64
        %s157 = sadd.s32 %s155, %s156
        %s158 = smul.addr %s157, 8
        %s159 = scalar_lea.vmem %s0, %s158
      $region20: #{multiscale_attention_forward.5} parent=15 // pred_fallthru
        _
      // Predicated region
      $region21: #{multiscale_attention_forward.5} parent=15 // pred_check
        %p160 = pneg %p69
      $region22: #{multiscale_attention_forward.5} parent=15 // pred_check_branch
        %162 = sbr.rel (%p160) target = $region24
      $region23: #{multiscale_attention_forward.5} parent=15 // pred_region
        %p163 = scmp.lt.s32.totalorder %s17, 3
        %s164 = scalar_select %p163, %s17, 3
        %s165 = smul.addr %s164, 2
        %s166 = smul.addr %s165, 8
        %s167 = scalar_lea.vmem %s1, %s166
      $region24: #{multiscale_attention_forward.5} parent=15 // pred_fallthru
        _
      // Predicated region
      $region25: #{multiscale_attention_forward.5} parent=15 // pred_check
        %p168 = pneg %p95
      $region26: #{multiscale_attention_forward.5} parent=15 // pred_check_branch
        %170 = sbr.rel (%p168) target = $region28
      $region27: #{multiscale_attention_forward.5} parent=15 // pred_region
        %p171 = scmp.lt.s32.totalorder %s17, 3
        %s172 = scalar_select %p171, %s17, 3
        %s173 = smul.addr %s172, 2
        %s174 = smul.addr %s173, 8
        %s175 = scalar_lea.vmem %s2, %s174
      $region28: #{multiscale_attention_forward.5} parent=15 // pred_fallthru
        _
    $region16: #{multiscale_attention_forward.5} parent=5 // pred_fallthru
      _
    %p176 = scmp.le.s32.totalorder 1, %s9
    %p177 = scmp.lt.s32.totalorder %s9, 9
    %p178 = pnand %p176, %p177
    %p179 = pneg %p178
    // Predicated region
    $region29: #{multiscale_attention_forward.5} parent=5 // pred_check
      _
    $region30: #{multiscale_attention_forward.5} parent=5 // pred_check_branch
      %181 = sbr.rel (%p178) target = $region32
    $region31: #{multiscale_attention_forward.5} parent=5 // pred_region
      %s182 = ssub.s32 %s9, 1
      %p183 = scmp.lt.s32.totalorder %s18, 1
      %s184 = scalar_select %p183, %s18, 1
      %p185 = scmp.lt.s32.totalorder %s19, 3
      %s186 = scalar_select %p185, %s19, 3
      %s187 = smul.addr %s186, 16
      %s188 = smul.addr %s184, 64
      %s189 = sadd.s32 %s187, %s188
      %s190 = smul.addr %s189, 8
      %s191 = scalar_lea.vmem %s0, %s190
      %p192 = pneg %p49
      %p193 = pneg %p46
      %p194 = scmp.lt.s32.totalorder %s19, 3
      %s195 = scalar_select %p194, %s19, 3
      %s196 = smul.addr %s195, 2
      %s197 = smul.addr %s196, 8
      %s198 = scalar_lea.vmem %s1, %s197
      %p199 = pneg %p75
      %p200 = pneg %p72
      %p201 = scmp.lt.s32.totalorder %s19, 3
      %s202 = scalar_select %p201, %s19, 3
      %s203 = smul.addr %s202, 2
      %s204 = smul.addr %s203, 8
      %s205 = scalar_lea.vmem %s2, %s204
      %p206 = pneg %p101
      %p207 = pneg %p98
      %p208 = pneg %p129
      %p209 = pneg %p126
      %p210 = scmp.lt.s32.totalorder %s18, 1
      %s211 = scalar_select %p210, %s18, 1
      %p212 = scmp.lt.s32.totalorder %s19, 3
      %s213 = scalar_select %p212, %s19, 3
      %s214 = smul.addr %s213, 16
      %s215 = smul.addr %s211, 64
      %s216 = sadd.s32 %s214, %s215
      %s217 = smul.addr %s216, 8
      %s218 = scalar_lea.vmem %s3, %s217
      %p219 = scmp.lt.s32.totalorder %s18, 1
      %s220 = scalar_select %p219, %s18, 1
      %p221 = scmp.lt.s32.totalorder %s19, 3
      %s222 = scalar_select %p221, %s19, 3
      %s223 = smul.addr %s222, 16
      %s224 = smul.addr %s220, 64
      %s225 = sadd.s32 %s223, %s224
      %s226 = smul.addr %s225, 8
      %s227 = scalar_lea.vmem %s0, %s226
      %p228 = scmp.lt.s32.totalorder %s19, 3
      %s229 = scalar_select %p228, %s19, 3
      %s230 = smul.addr %s229, 2
      %s231 = smul.addr %s230, 8
      %s232 = scalar_lea.vmem %s1, %s231
      %p233 = scmp.lt.s32.totalorder %s19, 3
      %s234 = scalar_select %p233, %s19, 3
      %s235 = smul.addr %s234, 2
      %s236 = smul.addr %s235, 8
      %s237 = scalar_lea.vmem %s2, %s236
      %p238 = scmp.lt.s32.totalorder %s18, 1
      %s239 = scalar_select %p238, %s18, 1
      %p240 = scmp.lt.s32.totalorder %s19, 3
      %s241 = scalar_select %p240, %s19, 3
      %s242 = smul.addr %s241, 16
      %s243 = smul.addr %s239, 64
      %s244 = sadd.s32 %s242, %s243
      %s245 = smul.addr %s244, 8
      %s246 = scalar_lea.vmem %s3, %s245
      %v247 = vld [vmem:[%s227] sm:$0xff]
      %v248 = vld [vmem:[%s227 + $0x8] sm:$0xff]
      %v249 = vld [vmem:[%s227 + $0x10] sm:$0xff]
      %v250 = vld [vmem:[%s227 + $0x18] sm:$0xff]
      %v251 = vld [vmem:[%s227 + $0x20] sm:$0xff]
      %v252 = vld [vmem:[%s227 + $0x28] sm:$0xff]
      %v253 = vld [vmem:[%s227 + $0x30] sm:$0xff]
      %v254 = vld [vmem:[%s227 + $0x38] sm:$0xff]
      %v255 = vld [vmem:[%s227 + $0x40] sm:$0xff]
      %v256 = vld [vmem:[%s227 + $0x48] sm:$0xff]
      %v257 = vld [vmem:[%s227 + $0x50] sm:$0xff]
      %v258 = vld [vmem:[%s227 + $0x58] sm:$0xff]
      %v259 = vld [vmem:[%s227 + $0x60] sm:$0xff]
      %v260 = vld [vmem:[%s227 + $0x68] sm:$0xff]
      %v261 = vld [vmem:[%s227 + $0x70] sm:$0xff]
      %v262 = vld [vmem:[%s227 + $0x78] sm:$0xff]
      %v263 = vadd.f32 %v247, %v248
      %v264 = vadd.f32 %v263, %v249
      %v265 = vadd.f32 %v264, %v250
      %v266 = vadd.f32 %v265, %v251
      %v267 = vadd.f32 %v266, %v252
      %v268 = vadd.f32 %v267, %v253
      %v269 = vadd.f32 %v268, %v254
      %270 = vadd.xlane.f32.xlu0 %v269
      %v271 = vpop.xlane.xlu0 %270
      %v272 = vadd.f32 %v255, %v256
      %v273 = vadd.f32 %v272, %v257
      %v274 = vadd.f32 %v273, %v258
      %v275 = vadd.f32 %v274, %v259
      %v276 = vadd.f32 %v275, %v260
      %v277 = vadd.f32 %v276, %v261
      %v278 = vadd.f32 %v277, %v262
      %279 = vadd.xlane.f32.xlu0 %v278
      %v280 = vpop.xlane.xlu0 %279
      %v281 = vadd.f32 %v271, %v280
      %v282 = vrot.slane %v281, 4
      %v283 = vadd.f32 %v281, %v282
      %v284 = vrot.slane %v283, 2
      %v285 = vadd.f32 %v283, %v284
      %v286 = vrot.slane %v285, 1
      %v287 = vadd.f32 %v285, %v286
      %v288 = vrcp.pop 16384.0
      %v289 = vmul.f32 %v287, %v288
      %v290 = vsub.f32 %v247, %v289
      %v291 = vsub.f32 %v248, %v289
      %v292 = vsub.f32 %v249, %v289
      %v293 = vsub.f32 %v250, %v289
      %v294 = vsub.f32 %v251, %v289
      %v295 = vsub.f32 %v252, %v289
      %v296 = vsub.f32 %v253, %v289
      %v297 = vsub.f32 %v254, %v289
      %v298 = vsub.f32 %v255, %v289
      %v299 = vsub.f32 %v256, %v289
      %v300 = vsub.f32 %v257, %v289
      %v301 = vsub.f32 %v258, %v289
      %v302 = vsub.f32 %v259, %v289
      %v303 = vsub.f32 %v260, %v289
      %v304 = vsub.f32 %v261, %v289
      %v305 = vsub.f32 %v262, %v289
      %v306 = vmul.f32 %v290, %v290
      %v307 = vmul.f32 %v291, %v291
      %v308 = vmul.f32 %v292, %v292
      %v309 = vmul.f32 %v293, %v293
      %v310 = vmul.f32 %v294, %v294
      %v311 = vmul.f32 %v295, %v295
      %v312 = vmul.f32 %v296, %v296
      %v313 = vmul.f32 %v297, %v297
      %v314 = vmul.f32 %v298, %v298
      %v315 = vmul.f32 %v299, %v299
      %v316 = vmul.f32 %v300, %v300
      %v317 = vmul.f32 %v301, %v301
      %v318 = vmul.f32 %v302, %v302
      %v319 = vmul.f32 %v303, %v303
      %v320 = vmul.f32 %v304, %v304
      %v321 = vmul.f32 %v305, %v305
      %v322 = vadd.f32 %v306, %v307
      %v323 = vadd.f32 %v322, %v308
      %v324 = vadd.f32 %v323, %v309
      %v325 = vadd.f32 %v324, %v310
      %v326 = vadd.f32 %v325, %v311
      %v327 = vadd.f32 %v326, %v312
      %v328 = vadd.f32 %v327, %v313
      %329 = vadd.xlane.f32.xlu0 %v328
      %v330 = vpop.xlane.xlu0 %329
      %v331 = vadd.f32 %v314, %v315
      %v332 = vadd.f32 %v331, %v316
      %v333 = vadd.f32 %v332, %v317
      %v334 = vadd.f32 %v333, %v318
      %v335 = vadd.f32 %v334, %v319
      %v336 = vadd.f32 %v335, %v320
      %v337 = vadd.f32 %v336, %v321
      %338 = vadd.xlane.f32.xlu0 %v337
      %v339 = vpop.xlane.xlu0 %338
      %v340 = vadd.f32 %v330, %v339
      %v341 = vrot.slane %v340, 4
      %v342 = vadd.f32 %v340, %v341
      %v343 = vrot.slane %v342, 2
      %v344 = vadd.f32 %v342, %v343
      %v345 = vrot.slane %v344, 1
      %v346 = vadd.f32 %v344, %v345
      %v347 = vmul.f32 %v346, %v288
      %v348 = vadd.f32 %v347, 1e-05
      %v349 = vrsqrt.pop %v348
      %v350 = vld [vmem:[%s232] sm:$0xff]
      %v351 = vld [vmem:[%s232 + $0x8] sm:$0xff]
      %v352 = vld [vmem:[%s237] sm:$0xff]
      %v353 = vld [vmem:[%s237 + $0x8] sm:$0xff]
      %v354 = vmul.f32 %v290, %v349
      %v355 = vmul.f32 %v291, %v349
      %v356 = vmul.f32 %v292, %v349
      %v357 = vmul.f32 %v293, %v349
      %v358 = vmul.f32 %v294, %v349
      %v359 = vmul.f32 %v295, %v349
      %v360 = vmul.f32 %v296, %v349
      %v361 = vmul.f32 %v297, %v349
      %v362 = vmul.f32 %v298, %v349
      %v363 = vmul.f32 %v299, %v349
      %v364 = vmul.f32 %v300, %v349
      %v365 = vmul.f32 %v301, %v349
      %v366 = vmul.f32 %v302, %v349
      %v367 = vmul.f32 %v303, %v349
      %v368 = vmul.f32 %v304, %v349
      %v369 = vmul.f32 %v305, %v349
      %371 = vset.pattern.permute.xlu0 0
      %372 = vperm.xlu0 %371, %v350
      %v373 = vpop.permute.xlu0 %372
      %376 = vset.pattern.permute.xlu0 0
      %377 = vperm.xlu0 %376, %v351
      %v378 = vpop.permute.xlu0 %377
      %v380 = vmul.f32 %v354, %v373
      %v381 = vmul.f32 %v355, %v373
      %v382 = vmul.f32 %v356, %v373
      %v383 = vmul.f32 %v357, %v373
      %v384 = vmul.f32 %v358, %v373
      %v385 = vmul.f32 %v359, %v373
      %v386 = vmul.f32 %v360, %v373
      %v387 = vmul.f32 %v361, %v373
      %v388 = vmul.f32 %v362, %v378
      %v389 = vmul.f32 %v363, %v378
      %v390 = vmul.f32 %v364, %v378
      %v391 = vmul.f32 %v365, %v378
      %v392 = vmul.f32 %v366, %v378
      %v393 = vmul.f32 %v367, %v378
      %v394 = vmul.f32 %v368, %v378
      %v395 = vmul.f32 %v369, %v378
      %397 = vset.pattern.permute.xlu0 0
      %398 = vperm.xlu0 %397, %v352
      %v399 = vpop.permute.xlu0 %398
      %402 = vset.pattern.permute.xlu0 0
      %403 = vperm.xlu0 %402, %v353
      %v404 = vpop.permute.xlu0 %403
      %v406 = vadd.f32 %v380, %v399
      %v407 = vadd.f32 %v381, %v399
      %v408 = vadd.f32 %v382, %v399
      %v409 = vadd.f32 %v383, %v399
      %v410 = vadd.f32 %v384, %v399
      %v411 = vadd.f32 %v385, %v399
      %v412 = vadd.f32 %v386, %v399
      %v413 = vadd.f32 %v387, %v399
      %v414 = vadd.f32 %v388, %v404
      %v415 = vadd.f32 %v389, %v404
      %v416 = vadd.f32 %v390, %v404
      %v417 = vadd.f32 %v391, %v404
      %v418 = vadd.f32 %v392, %v404
      %v419 = vadd.f32 %v393, %v404
      %v420 = vadd.f32 %v394, %v404
      %v421 = vadd.f32 %v395, %v404
      %v422 = vmax.f32 %v406, 0.0
      %v423 = vmax.f32 %v407, 0.0
      %v424 = vmax.f32 %v408, 0.0
      %v425 = vmax.f32 %v409, 0.0
      %v426 = vmax.f32 %v410, 0.0
      %v427 = vmax.f32 %v411, 0.0
      %v428 = vmax.f32 %v412, 0.0
      %v429 = vmax.f32 %v413, 0.0
      %v430 = vmax.f32 %v414, 0.0
      %v431 = vmax.f32 %v415, 0.0
      %v432 = vmax.f32 %v416, 0.0
      %v433 = vmax.f32 %v417, 0.0
      %v434 = vmax.f32 %v418, 0.0
      %v435 = vmax.f32 %v419, 0.0
      %v436 = vmax.f32 %v420, 0.0
      %v437 = vmax.f32 %v421, 0.0
      %438 = vst [vmem:[%s246] sm:$0xff] %v422
      %439 = vst [vmem:[%s246 + $0x8] sm:$0xff] %v423
      %440 = vst [vmem:[%s246 + $0x10] sm:$0xff] %v424
      %441 = vst [vmem:[%s246 + $0x18] sm:$0xff] %v425
      %442 = vst [vmem:[%s246 + $0x20] sm:$0xff] %v426
      %443 = vst [vmem:[%s246 + $0x28] sm:$0xff] %v427
      %444 = vst [vmem:[%s246 + $0x30] sm:$0xff] %v428
      %445 = vst [vmem:[%s246 + $0x38] sm:$0xff] %v429
      %446 = vst [vmem:[%s246 + $0x40] sm:$0xff] %v430
      %447 = vst [vmem:[%s246 + $0x48] sm:$0xff] %v431
      %448 = vst [vmem:[%s246 + $0x50] sm:$0xff] %v432
      %449 = vst [vmem:[%s246 + $0x58] sm:$0xff] %v433
      %450 = vst [vmem:[%s246 + $0x60] sm:$0xff] %v434
      %451 = vst [vmem:[%s246 + $0x68] sm:$0xff] %v435
      %452 = vst [vmem:[%s246 + $0x70] sm:$0xff] %v436
      %453 = vst [vmem:[%s246 + $0x78] sm:$0xff] %v437
      %p454 = scmp.lt.s32.totalorder %s18, 1
      %s455 = scalar_select %p454, %s18, 1
      %p456 = scmp.lt.s32.totalorder %s19, 3
      %s457 = scalar_select %p456, %s19, 3
      %s458 = smul.addr %s457, 16
      %s459 = smul.addr %s455, 64
      %s460 = sadd.s32 %s458, %s459
      %s461 = smul.addr %s460, 8
      %s462 = scalar_lea.vmem %s3, %s461
      // Predicated region
      $region33: #{multiscale_attention_forward.5} parent=31 // pred_check
        %p463 = pneg %p126
      $region34: #{multiscale_attention_forward.5} parent=31 // pred_check_branch
        %465 = sbr.rel (%p463) target = $region36
      $region35: #{multiscale_attention_forward.5} parent=31 // pred_region
        _
      $region36: #{multiscale_attention_forward.5} parent=31 // pred_fallthru
        _
    $region32: #{multiscale_attention_forward.5} parent=5 // pred_fallthru
      _
    %p466 = scmp.le.s32.totalorder 2, %s9
    // Predicated region
    $region37: #{multiscale_attention_forward.5} parent=5 // pred_check
      %p467 = pneg %p466
    $region38: #{multiscale_attention_forward.5} parent=5 // pred_check_branch
      %469 = sbr.rel (%p467) target = $region40
    $region39: #{multiscale_attention_forward.5} parent=5 // pred_region
      %s470 = ssub.s32 %s9, 2
      // Predicated region
      $region41: #{multiscale_attention_forward.5} parent=39 // pred_check
        %p471 = pneg %p132
      $region42: #{multiscale_attention_forward.5} parent=39 // pred_check_branch
        %473 = sbr.rel (%p471) target = $region44
      $region43: #{multiscale_attention_forward.5} parent=39 // pred_region
        %p474 = scmp.lt.s32.totalorder %s20, 1
        %s475 = scalar_select %p474, %s20, 1
        %p476 = scmp.lt.s32.totalorder %s21, 3
        %s477 = scalar_select %p476, %s21, 3
        %s478 = smul.addr %s477, 16
        %s479 = smul.addr %s475, 64
        %s480 = sadd.s32 %s478, %s479
        %s481 = smul.addr %s480, 8
        %s482 = scalar_lea.vmem %s3, %s481
      $region44: #{multiscale_attention_forward.5} parent=39 // pred_fallthru
        _
    $region40: #{multiscale_attention_forward.5} parent=5 // pred_fallthru
      _
  $region6: #{multiscale_attention_forward.5} parent=0 // loop_footer
    %s13 = sadd.s32 1, %s9
  $region7: #{multiscale_attention_forward.5} parent=0 // loop_footer_branch
    %8 = sbr.rel target = $region3
  $region8: #{multiscale_attention_forward.5} parent=0 // loop_exit
    _

</llo_original>
